<compile_context>
chip_gen: v6e
topology: v6e:2x2x1
jax: 0.10.0
libtpu: 0.0.40
codegen_flags: <defaults>
</compile_context>

<pallas_src>
import functools

import jax
import jax.numpy as jnp
from jax import lax
from jax.experimental import pallas as pl
from jax.experimental.pallas import tpu as pltpu

EPS = 1e-5  # nn.BatchNorm2d default eps


def _aspp_kernel(x_ref, xm_ref, w1_ref, w3a_ref, w3b_ref, wp_ref,
                 scale_ref, shift_ref, wproj_ref, sproj_ref, tproj_ref,
                 o_ref, *, TH, W, pad, rates):
    xp = x_ref[0]                        # (TH + 2*pad, W + 2*pad, Cin_p) bf16
    Cin_p = xp.shape[-1]
    rows = TH * W
    scale = scale_ref[...]               # (4, Cout_p) f32 BN scales
    shift = shift_ref[...]               # (4, Cout_p) f32 BN shifts

    # un-padded (center) pixels of this row band, flattened for MXU matmuls
    xc = xp[pad:pad + TH, pad:pad + W, :].reshape(rows, Cin_p)

    # ---- branch 0: 1x1 conv -> BN -> ReLU, projected immediately ----
    a0 = jnp.dot(xc, w1_ref[...], preferred_element_type=jnp.float32)
    b0 = jnp.maximum(a0 * scale[0] + shift[0], 0.0).astype(jnp.bfloat16)
    acc = jnp.dot(b0, wproj_ref[0], preferred_element_type=jnp.float32)

    # ---- branches 1/2: dilated 3x3 conv (9 shifted matmuls) -> BN -> ReLU ->
    #      projected immediately into the shared accumulator ----
    def dilated_proj(w_ref, r, bi):
        conv = None
        for ky in range(3):
            for kx in range(3):
                if ky == 1 and kx == 1:
                    patch = xc                      # reuse the center slice
                else:
                    ys = pad + (ky - 1) * r
                    xs = pad + (kx - 1) * r
                    patch = xp[ys:ys + TH, xs:xs + W, :].reshape(rows, Cin_p)
                part = jnp.dot(patch, w_ref[ky * 3 + kx],
                               preferred_element_type=jnp.float32)
                conv = part if conv is None else conv + part
        b = jnp.maximum(conv * scale[bi] + shift[bi], 0.0).astype(jnp.bfloat16)
        return jnp.dot(b, wproj_ref[bi], preferred_element_type=jnp.float32)

    acc = acc + dilated_proj(w3a_ref, rates[0], 1)
    acc = acc + dilated_proj(w3b_ref, rates[1], 2)

    # ---- branch 3: global-avg-pool 1x1 conv -> BN -> ReLU; projection done on
    #      the (1, Cout) vector and added as a broadcast bias
    #      (bilinear upsample from 1x1 == broadcast) ----
    a3 = jnp.dot(xm_ref[0], wp_ref[...], preferred_element_type=jnp.float32)
    b3 = jnp.maximum(a3 * scale[3] + shift[3], 0.0).astype(jnp.bfloat16)
    acc = acc + jnp.dot(b3, wproj_ref[3], preferred_element_type=jnp.float32)

    # ---- project BN + ReLU (Dropout is identity in eval mode) ----
    o_ref[0] = jnp.maximum(acc * sproj_ref[...] + tproj_ref[...], 0.0
                           ).astype(o_ref.dtype)


def _round_up(n, m):
    return ((n + m - 1) // m) * m


def _fold_bn(gamma, beta, mean, var):
    s = gamma / jnp.sqrt(var + EPS)
    return s, beta - mean * s


def _pad1(v, n):
    return jnp.pad(v, (0, n - v.shape[0]))


def _pick_tile_h(H, W, tile_h):
    if tile_h is not None:
        assert H % tile_h == 0, "tile_h must divide H"
        return tile_h
    best = 1
    for th in range(1, H + 1):
        if H % th == 0 and th * W <= 2048:
            best = th
    return best


def aspp_pallas(x_nchw, params, rates, tile_h=None):
    """x_nchw: (B, Cin, H, W) float32 -> (B, Cout, H, W) float32."""
    x = jnp.transpose(x_nchw, (0, 2, 3, 1)).astype(jnp.float32)   # NCHW -> NHWC
    B, H, W, Cin = x.shape
    Cout = params['w1'].shape[-1]
    Cin_p = _round_up(Cin, 128)          # lane-dense inputs
    Cp = _round_up(Cout, 128)            # lane-dense outputs (no masked stores)
    pad = max(rates)
    TH = _pick_tile_h(H, W, tile_h)
    n_tiles = H // TH
    rows = TH * W
    Hs = TH + 2 * pad                    # slab height (row band + halo)
    Wp = W + 2 * pad

    # --- fold BatchNorm (eval, running stats) into scale/shift, pad to Cp ---
    scales, shifts = [], []
    for name in ('bn0', 'bn1', 'bn2', 'bn3'):
        s, t = _fold_bn(*params[name])
        scales.append(_pad1(s, Cp))
        shifts.append(_pad1(t, Cp))
    scale = jnp.stack(scales)            # (4, Cp)
    shift = jnp.stack(shifts)            # (4, Cp)
    sp, tp = _fold_bn(*params['bn_proj'])
    sproj = _pad1(sp, Cp).reshape(1, Cp)
    tproj = _pad1(tp, Cp).reshape(1, Cp)

    # --- weights: zero-pad channels, cast to bf16 for the MXU ---
    def pad_w(w):
        padc = [(0, 0)] * (w.ndim - 2) + [(0, Cin_p - Cin), (0, Cp - Cout)]
        return jnp.pad(w, padc).astype(jnp.bfloat16)

    w1 = pad_w(params['w1'])                                    # (Cin_p, Cp)
    w3a = pad_w(params['w3a']).reshape(9, Cin_p, Cp)
    w3b = pad_w(params['w3b']).reshape(9, Cin_p, Cp)
    wp = pad_w(params['wp'])                                    # (Cin_p, Cp)
    wproj = params['wproj'].reshape(4, Cout, Cout)              # order b0..b3
    wproj = jnp.pad(wproj, ((0, 0), (0, Cp - Cout), (0, Cp - Cout))
                    ).astype(jnp.bfloat16)                      # (4, Cp, Cp)

    # --- inputs: bf16, channel pad, spatial halo pad, row-band slabs ---
    x_bf = x.astype(jnp.bfloat16)
    # TODO(synk): the global average pool is a cross-tile reduction; it is
    #             computed here in the wrapper (one XLA reduction pass) and the
    #             rest of the pooling branch runs inside the kernel.
    xmean = jnp.mean(x_bf.astype(jnp.float32), axis=(1, 2))     # (B, Cin)
    xmean = jnp.pad(xmean, ((0, 0), (0, Cin_p - Cin)))
    xmean = xmean.astype(jnp.bfloat16).reshape(B, 1, Cin_p)

    xpad = jnp.pad(x_bf, ((0, 0), (pad, pad), (pad, pad), (0, Cin_p - Cin)))
    slabs = [xpad[:, t * TH: t * TH + Hs] for t in range(n_tiles)]
    xtiles = jnp.stack(slabs, axis=1).reshape(B * n_tiles, Hs, Wp, Cin_p)

    kernel = functools.partial(_aspp_kernel, TH=TH, W=W, pad=pad,
                               rates=tuple(rates))

    flops = (2 * B * H * W * (19 * Cin_p * Cp + 3 * Cp * Cp)
             + 2 * B * (Cin_p * Cp + Cp * Cp))
    bytes_accessed = int(
        xtiles.size * 2 + xmean.size * 2
        + (w1.size + w3a.size + w3b.size + wp.size + wproj.size) * 2
        + (scale.size + shift.size + sproj.size + tproj.size) * 4
        + B * H * W * Cp * 4)

    out_flat = pl.pallas_call(
        kernel,
        out_shape=jax.ShapeDtypeStruct((B * n_tiles, rows, Cp), jnp.float32),
        grid=(B, n_tiles),
        in_specs=[
            pl.BlockSpec((1, Hs, Wp, Cin_p),
                         lambda b, t: (b * n_tiles + t, 0, 0, 0)),
            pl.BlockSpec((1, 1, Cin_p), lambda b, t: (b, 0, 0)),
            pl.BlockSpec((Cin_p, Cp), lambda b, t: (0, 0)),
            pl.BlockSpec((9, Cin_p, Cp), lambda b, t: (0, 0, 0)),
            pl.BlockSpec((9, Cin_p, Cp), lambda b, t: (0, 0, 0)),
            pl.BlockSpec((Cin_p, Cp), lambda b, t: (0, 0)),
            pl.BlockSpec((4, Cp), lambda b, t: (0, 0)),
            pl.BlockSpec((4, Cp), lambda b, t: (0, 0)),
            pl.BlockSpec((4, Cp, Cp), lambda b, t: (0, 0, 0)),
            pl.BlockSpec((1, Cp), lambda b, t: (0, 0)),
            pl.BlockSpec((1, Cp), lambda b, t: (0, 0)),
        ],
        out_specs=pl.BlockSpec((1, rows, Cp),
                               lambda b, t: (b * n_tiles + t, 0, 0)),
        compiler_params=pltpu.CompilerParams(
            dimension_semantics=("parallel", "parallel"),
            vmem_limit_bytes=48 * 1024 * 1024),
        cost_estimate=pl.CostEstimate(flops=flops, transcendentals=0,
                                      bytes_accessed=bytes_accessed),
    )(xtiles, xmean, w1, w3a, w3b, wp, scale, shift, wproj, sproj, tproj)

    out = out_flat.reshape(B, H, W, Cp)[..., :Cout]
    return jnp.transpose(out, (0, 3, 1, 2))          # NHWC -> NCHW


def aspp_reference(x_nchw, params, rates):
    """Pure-JAX f32 reference using lax convolutions (for validation)."""
    x = jnp.transpose(x_nchw, (0, 2, 3, 1)).astype(jnp.float32)
    B, H, W, Cin = x.shape
    Cout = params['w1'].shape[-1]
    dn = lax.conv_dimension_numbers(x.shape, (1, 1, Cin, Cout),
                                    ('NHWC', 'HWIO', 'NHWC'))

    def bn_relu(y, p):
        g, b, m, v = p
        return jnp.maximum((y - m) * g / jnp.sqrt(v + EPS) + b, 0.0)

    b0 = lax.conv_general_dilated(x, params['w1'].reshape(1, 1, Cin, Cout),
                                  (1, 1), 'VALID', dimension_numbers=dn)
    b0 = bn_relu(b0, params['bn0'])

    def dil(w, r, bnp):
        y = lax.conv_general_dilated(x, w, (1, 1), ((r, r), (r, r)),
                                     rhs_dilation=(r, r), dimension_numbers=dn)
        return bn_relu(y, bnp)

    b1 = dil(params['w3a'], rates[0], params['bn1'])
    b2 = dil(params['w3b'], rates[1], params['bn2'])

    xm = jnp.mean(x, axis=(1, 2))                    # (B, Cin)
    p = bn_relu(xm @ params['wp'], params['bn3'])    # (B, Cout)
    b3 = jnp.broadcast_to(p[:, None, None, :], (B, H, W, Cout))

    res = jnp.concatenate([b0, b1, b2, b3], axis=-1)  # (B, H, W, 4*Cout)
    proj = jnp.einsum('bhwc,cd->bhwd', res, params['wproj'])
    proj = bn_relu(proj, params['bn_proj'])
    return jnp.transpose(proj, (0, 3, 1, 2))


def init_params(key, Cin, Cout):
    ks = jax.random.split(key, 10)

    def w(k, shape):
        return 0.1 * jax.random.normal(k, shape, jnp.float32)

    def bn(k):
        k1, k2, k3, k4 = jax.random.split(k, 4)
        gamma = 1.0 + 0.1 * jax.random.normal(k1, (Cout,), jnp.float32)
        beta = 0.1 * jax.random.normal(k2, (Cout,), jnp.float32)
        mean = 0.1 * jax.random.normal(k3, (Cout,), jnp.float32)
        var = jnp.abs(jax.random.normal(k4, (Cout,), jnp.float32)) + 0.5
        return (gamma, beta, mean, var)

    return {
        'w1': w(ks[0], (Cin, Cout)),              # 1x1 conv (HWIO flattened)
        'w3a': w(ks[1], (3, 3, Cin, Cout)),       # 3x3 dilated conv, rate1
        'w3b': w(ks[2], (3, 3, Cin, Cout)),       # 3x3 dilated conv, rate2
        'wp': w(ks[3], (Cin, Cout)),              # pooling-branch 1x1 conv
        'wproj': w(ks[4], (4 * Cout, Cout)),      # project 1x1 conv
        'bn0': bn(ks[5]), 'bn1': bn(ks[6]), 'bn2': bn(ks[7]), 'bn3': bn(ks[8]),
        'bn_proj': bn(ks[9]),
    }


if __name__ == "__main__":
    key = jax.random.PRNGKey(0)
    kx, kp = jax.random.split(key)

    B, Cin, H, W = 2, 4, 16, 16
    Cout = 64
    rates = (2, 4)

    x = jax.random.normal(kx, (B, Cin, H, W), jnp.float32)
    params = init_params(kp, Cin, Cout)

    # Round conv operands through bf16 once so the Pallas kernel (bf16 MXU,
    # f32 accumulation) and the f32 reference see identical operand values.
    def q(a):
        return a.astype(jnp.bfloat16).astype(jnp.float32)

    x_q = q(x)
    params_q = dict(params)
    for name in ('w1', 'w3a', 'w3b', 'wp', 'wproj'):
        params_q[name] = q(params[name])

    out = aspp_pallas(x_q, params_q, rates, tile_h=8)   # 2 row-band tiles
    out = jax.block_until_ready(out)
    assert out.shape == (B, Cout, H, W), out.shape

    ref = aspp_reference(x_q, params_q, rates)
    err = float(jnp.max(jnp.abs(out - ref)))
    assert err < 2e-2, f"max abs err {err}"

    print("KERNEL_OK")
</pallas_src>

<mosaic_0001>
module attributes {stable_mosaic.version = 11 : i64} {
  func.func @_aspp_kernel(%arg0: i32, %arg1: i32, %arg2: memref<1x16x24x128xbf16, #tpu.memory_space<vmem>>, %arg3: memref<1x1x128xbf16, #tpu.memory_space<vmem>>, %arg4: memref<128x128xbf16, #tpu.memory_space<vmem>>, %arg5: memref<9x128x128xbf16, #tpu.memory_space<vmem>>, %arg6: memref<9x128x128xbf16, #tpu.memory_space<vmem>>, %arg7: memref<128x128xbf16, #tpu.memory_space<vmem>>, %arg8: memref<4x128xf32, #tpu.memory_space<vmem>>, %arg9: memref<4x128xf32, #tpu.memory_space<vmem>>, %arg10: memref<4x128x128xbf16, #tpu.memory_space<vmem>>, %arg11: memref<1x128xf32, #tpu.memory_space<vmem>>, %arg12: memref<1x128xf32, #tpu.memory_space<vmem>>, %arg13: memref<1x128x128xf32, #tpu.memory_space<vmem>>) attributes {dimension_semantics = [#tpu.dimension_semantics<parallel>, #tpu.dimension_semantics<parallel>], iteration_bounds = array<i64: 2, 2>, scalar_prefetch = 0 : i64, scratch_operands = 0 : i64, tpu.core_type = #tpu.core_type<tc>, window_params = [{transform_indices = @transform_0, window_bounds = array<i64: 1, 16, 24, 128>}, {transform_indices = @transform_1, window_bounds = array<i64: 1, 1, 128>}, {pipeline_mode = #tpu.pipeline_mode<synchronous>, transform_indices = @transform_2, window_bounds = array<i64: 128, 128>}, {pipeline_mode = #tpu.pipeline_mode<synchronous>, transform_indices = @transform_3, window_bounds = array<i64: 9, 128, 128>}, {pipeline_mode = #tpu.pipeline_mode<synchronous>, transform_indices = @transform_4, window_bounds = array<i64: 9, 128, 128>}, {pipeline_mode = #tpu.pipeline_mode<synchronous>, transform_indices = @transform_5, window_bounds = array<i64: 128, 128>}, {pipeline_mode = #tpu.pipeline_mode<synchronous>, transform_indices = @transform_6, window_bounds = array<i64: 4, 128>}, {pipeline_mode = #tpu.pipeline_mode<synchronous>, transform_indices = @transform_7, window_bounds = array<i64: 4, 128>}, {pipeline_mode = #tpu.pipeline_mode<synchronous>, transform_indices = @transform_8, window_bounds = array<i64: 4, 128, 128>}, {pipeline_mode = #tpu.pipeline_mode<synchronous>, transform_indices = @transform_9, window_bounds = array<i64: 1, 128>}, {pipeline_mode = #tpu.pipeline_mode<synchronous>, transform_indices = @transform_10, window_bounds = array<i64: 1, 128>}, {transform_indices = @transform_11, window_bounds = array<i64: 1, 128, 128>}]} {
    %c0 = arith.constant 0 : index
    %c0_0 = arith.constant 0 : index
    %c0_1 = arith.constant 0 : index
    %c0_2 = arith.constant 0 : index
    %0 = vector.load %arg2[%c0, %c0_0, %c0_1, %c0_2] : memref<1x16x24x128xbf16, #tpu.memory_space<vmem>>, vector<1x16x24x128xbf16>
    %1 = vector.shape_cast %0 : vector<1x16x24x128xbf16> to vector<16x24x128xbf16>
    %c0_3 = arith.constant 0 : index
    %c0_4 = arith.constant 0 : index
    %2 = vector.load %arg8[%c0_3, %c0_4] : memref<4x128xf32, #tpu.memory_space<vmem>>, vector<4x128xf32>
    %c0_5 = arith.constant 0 : index
    %c0_6 = arith.constant 0 : index
    %3 = vector.load %arg9[%c0_5, %c0_6] : memref<4x128xf32, #tpu.memory_space<vmem>>, vector<4x128xf32>
    %4 = vector.extract_strided_slice %1 {offsets = [4, 4, 0], sizes = [8, 16, 128], strides = [1, 1, 1]} : vector<16x24x128xbf16> to vector<8x16x128xbf16>
    %5 = vector.shape_cast %4 : vector<8x16x128xbf16> to vector<128x128xbf16>
    %c0_7 = arith.constant 0 : index
    %c0_8 = arith.constant 0 : index
    %6 = vector.load %arg4[%c0_7, %c0_8] : memref<128x128xbf16, #tpu.memory_space<vmem>>, vector<128x128xbf16>
    %cst = arith.constant dense<0.000000e+00> : vector<128x128xf32>
    %7 = tpu.matmul %5, %6, %cst {dimension_numbers = #tpu.dot_dimension_numbers<[1], [0], [0], [1], [0, 0, 1, 1], [], []>} : vector<128x128xbf16>, vector<128x128xbf16>, vector<128x128xf32> -> vector<128x128xf32>
    %8 = vector.extract_strided_slice %2 {offsets = [0, 0], sizes = [1, 128], strides = [1, 1]} : vector<4x128xf32> to vector<1x128xf32>
    %9 = vector.shape_cast %8 : vector<1x128xf32> to vector<128xf32>
    %10 = vector.shape_cast %9 : vector<128xf32> to vector<1x128xf32>
    %11 = vector.broadcast %10 : vector<1x128xf32> to vector<128x128xf32>
    %12 = arith.mulf %7, %11 : vector<128x128xf32>
    %13 = vector.extract_strided_slice %3 {offsets = [0, 0], sizes = [1, 128], strides = [1, 1]} : vector<4x128xf32> to vector<1x128xf32>
    %14 = vector.shape_cast %13 : vector<1x128xf32> to vector<128xf32>
    %15 = vector.shape_cast %14 : vector<128xf32> to vector<1x128xf32>
    %16 = vector.broadcast %15 : vector<1x128xf32> to vector<128x128xf32>
    %17 = arith.addf %12, %16 : vector<128x128xf32>
    %cst_9 = arith.constant 0.000000e+00 : f32
    %18 = vector.broadcast %cst_9 : f32 to vector<128x128xf32>
    %19 = arith.maximumf %17, %18 : vector<128x128xf32>
    %20 = arith.truncf %19 : vector<128x128xf32> to vector<128x128xbf16>
    %c0_10 = arith.constant 0 : index
    %c0_11 = arith.constant 0 : index
    %c0_12 = arith.constant 0 : index
    %21 = vector.load %arg10[%c0_10, %c0_11, %c0_12] : memref<4x128x128xbf16, #tpu.memory_space<vmem>>, vector<1x128x128xbf16>
    %22 = vector.shape_cast %21 : vector<1x128x128xbf16> to vector<128x128xbf16>
    %cst_13 = arith.constant dense<0.000000e+00> : vector<128x128xf32>
    %23 = tpu.matmul %20, %22, %cst_13 {dimension_numbers = #tpu.dot_dimension_numbers<[1], [0], [0], [1], [0, 0, 1, 1], [], []>} : vector<128x128xbf16>, vector<128x128xbf16>, vector<128x128xf32> -> vector<128x128xf32>
    %24 = vector.extract_strided_slice %1 {offsets = [2, 2, 0], sizes = [8, 16, 128], strides = [1, 1, 1]} : vector<16x24x128xbf16> to vector<8x16x128xbf16>
    %25 = vector.shape_cast %24 : vector<8x16x128xbf16> to vector<128x128xbf16>
    %c0_14 = arith.constant 0 : index
    %c0_15 = arith.constant 0 : index
    %c0_16 = arith.constant 0 : index
    %26 = vector.load %arg5[%c0_14, %c0_15, %c0_16] : memref<9x128x128xbf16, #tpu.memory_space<vmem>>, vector<1x128x128xbf16>
    %27 = vector.shape_cast %26 : vector<1x128x128xbf16> to vector<128x128xbf16>
    %cst_17 = arith.constant dense<0.000000e+00> : vector<128x128xf32>
    %28 = tpu.matmul %25, %27, %cst_17 {dimension_numbers = #tpu.dot_dimension_numbers<[1], [0], [0], [1], [0, 0, 1, 1], [], []>} : vector<128x128xbf16>, vector<128x128xbf16>, vector<128x128xf32> -> vector<128x128xf32>
    %29 = vector.extract_strided_slice %1 {offsets = [2, 4, 0], sizes = [8, 16, 128], strides = [1, 1, 1]} : vector<16x24x128xbf16> to vector<8x16x128xbf16>
    %30 = vector.shape_cast %29 : vector<8x16x128xbf16> to vector<128x128xbf16>
    %c1 = arith.constant 1 : index
    %c0_18 = arith.constant 0 : index
    %c0_19 = arith.constant 0 : index
    %31 = vector.load %arg5[%c1, %c0_18, %c0_19] : memref<9x128x128xbf16, #tpu.memory_space<vmem>>, vector<1x128x128xbf16>
    %32 = vector.shape_cast %31 : vector<1x128x128xbf16> to vector<128x128xbf16>
    %cst_20 = arith.constant dense<0.000000e+00> : vector<128x128xf32>
    %33 = tpu.matmul %30, %32, %cst_20 {dimension_numbers = #tpu.dot_dimension_numbers<[1], [0], [0], [1], [0, 0, 1, 1], [], []>} : vector<128x128xbf16>, vector<128x128xbf16>, vector<128x128xf32> -> vector<128x128xf32>
    %34 = arith.addf %28, %33 : vector<128x128xf32>
    %35 = vector.extract_strided_slice %1 {offsets = [2, 6, 0], sizes = [8, 16, 128], strides = [1, 1, 1]} : vector<16x24x128xbf16> to vector<8x16x128xbf16>
    %36 = vector.shape_cast %35 : vector<8x16x128xbf16> to vector<128x128xbf16>
    %c2 = arith.constant 2 : index
    %c0_21 = arith.constant 0 : index
    %c0_22 = arith.constant 0 : index
    %37 = vector.load %arg5[%c2, %c0_21, %c0_22] : memref<9x128x128xbf16, #tpu.memory_space<vmem>>, vector<1x128x128xbf16>
    %38 = vector.shape_cast %37 : vector<1x128x128xbf16> to vector<128x128xbf16>
    %cst_23 = arith.constant dense<0.000000e+00> : vector<128x128xf32>
    %39 = tpu.matmul %36, %38, %cst_23 {dimension_numbers = #tpu.dot_dimension_numbers<[1], [0], [0], [1], [0, 0, 1, 1], [], []>} : vector<128x128xbf16>, vector<128x128xbf16>, vector<128x128xf32> -> vector<128x128xf32>
    %40 = arith.addf %34, %39 : vector<128x128xf32>
    %41 = vector.extract_strided_slice %1 {offsets = [4, 2, 0], sizes = [8, 16, 128], strides = [1, 1, 1]} : vector<16x24x128xbf16> to vector<8x16x128xbf16>
    %42 = vector.shape_cast %41 : vector<8x16x128xbf16> to vector<128x128xbf16>
    %c3 = arith.constant 3 : index
    %c0_24 = arith.constant 0 : index
    %c0_25 = arith.constant 0 : index
    %43 = vector.load %arg5[%c3, %c0_24, %c0_25] : memref<9x128x128xbf16, #tpu.memory_space<vmem>>, vector<1x128x128xbf16>
    %44 = vector.shape_cast %43 : vector<1x128x128xbf16> to vector<128x128xbf16>
    %cst_26 = arith.constant dense<0.000000e+00> : vector<128x128xf32>
    %45 = tpu.matmul %42, %44, %cst_26 {dimension_numbers = #tpu.dot_dimension_numbers<[1], [0], [0], [1], [0, 0, 1, 1], [], []>} : vector<128x128xbf16>, vector<128x128xbf16>, vector<128x128xf32> -> vector<128x128xf32>
    %46 = arith.addf %40, %45 : vector<128x128xf32>
    %c4 = arith.constant 4 : index
    %c0_27 = arith.constant 0 : index
    %c0_28 = arith.constant 0 : index
    %47 = vector.load %arg5[%c4, %c0_27, %c0_28] : memref<9x128x128xbf16, #tpu.memory_space<vmem>>, vector<1x128x128xbf16>
    %48 = vector.shape_cast %47 : vector<1x128x128xbf16> to vector<128x128xbf16>
    %cst_29 = arith.constant dense<0.000000e+00> : vector<128x128xf32>
    %49 = tpu.matmul %5, %48, %cst_29 {dimension_numbers = #tpu.dot_dimension_numbers<[1], [0], [0], [1], [0, 0, 1, 1], [], []>} : vector<128x128xbf16>, vector<128x128xbf16>, vector<128x128xf32> -> vector<128x128xf32>
    %50 = arith.addf %46, %49 : vector<128x128xf32>
    %51 = vector.extract_strided_slice %1 {offsets = [4, 6, 0], sizes = [8, 16, 128], strides = [1, 1, 1]} : vector<16x24x128xbf16> to vector<8x16x128xbf16>
    %52 = vector.shape_cast %51 : vector<8x16x128xbf16> to vector<128x128xbf16>
    %c5 = arith.constant 5 : index
    %c0_30 = arith.constant 0 : index
    %c0_31 = arith.constant 0 : index
    %53 = vector.load %arg5[%c5, %c0_30, %c0_31] : memref<9x128x128xbf16, #tpu.memory_space<vmem>>, vector<1x128x128xbf16>
    %54 = vector.shape_cast %53 : vector<1x128x128xbf16> to vector<128x128xbf16>
    %cst_32 = arith.constant dense<0.000000e+00> : vector<128x128xf32>
    %55 = tpu.matmul %52, %54, %cst_32 {dimension_numbers = #tpu.dot_dimension_numbers<[1], [0], [0], [1], [0, 0, 1, 1], [], []>} : vector<128x128xbf16>, vector<128x128xbf16>, vector<128x128xf32> -> vector<128x128xf32>
    %56 = arith.addf %50, %55 : vector<128x128xf32>
    %57 = vector.extract_strided_slice %1 {offsets = [6, 2, 0], sizes = [8, 16, 128], strides = [1, 1, 1]} : vector<16x24x128xbf16> to vector<8x16x128xbf16>
    %58 = vector.shape_cast %57 : vector<8x16x128xbf16> to vector<128x128xbf16>
    %c6 = arith.constant 6 : index
    %c0_33 = arith.constant 0 : index
    %c0_34 = arith.constant 0 : index
    %59 = vector.load %arg5[%c6, %c0_33, %c0_34] : memref<9x128x128xbf16, #tpu.memory_space<vmem>>, vector<1x128x128xbf16>
    %60 = vector.shape_cast %59 : vector<1x128x128xbf16> to vector<128x128xbf16>
    %cst_35 = arith.constant dense<0.000000e+00> : vector<128x128xf32>
    %61 = tpu.matmul %58, %60, %cst_35 {dimension_numbers = #tpu.dot_dimension_numbers<[1], [0], [0], [1], [0, 0, 1, 1], [], []>} : vector<128x128xbf16>, vector<128x128xbf16>, vector<128x128xf32> -> vector<128x128xf32>
    %62 = arith.addf %56, %61 : vector<128x128xf32>
    %63 = vector.extract_strided_slice %1 {offsets = [6, 4, 0], sizes = [8, 16, 128], strides = [1, 1, 1]} : vector<16x24x128xbf16> to vector<8x16x128xbf16>
    %64 = vector.shape_cast %63 : vector<8x16x128xbf16> to vector<128x128xbf16>
    %c7 = arith.constant 7 : index
    %c0_36 = arith.constant 0 : index
    %c0_37 = arith.constant 0 : index
    %65 = vector.load %arg5[%c7, %c0_36, %c0_37] : memref<9x128x128xbf16, #tpu.memory_space<vmem>>, vector<1x128x128xbf16>
    %66 = vector.shape_cast %65 : vector<1x128x128xbf16> to vector<128x128xbf16>
    %cst_38 = arith.constant dense<0.000000e+00> : vector<128x128xf32>
    %67 = tpu.matmul %64, %66, %cst_38 {dimension_numbers = #tpu.dot_dimension_numbers<[1], [0], [0], [1], [0, 0, 1, 1], [], []>} : vector<128x128xbf16>, vector<128x128xbf16>, vector<128x128xf32> -> vector<128x128xf32>
    %68 = arith.addf %62, %67 : vector<128x128xf32>
    %69 = vector.extract_strided_slice %1 {offsets = [6, 6, 0], sizes = [8, 16, 128], strides = [1, 1, 1]} : vector<16x24x128xbf16> to vector<8x16x128xbf16>
    %70 = vector.shape_cast %69 : vector<8x16x128xbf16> to vector<128x128xbf16>
    %c8 = arith.constant 8 : index
    %c0_39 = arith.constant 0 : index
    %c0_40 = arith.constant 0 : index
    %71 = vector.load %arg5[%c8, %c0_39, %c0_40] : memref<9x128x128xbf16, #tpu.memory_space<vmem>>, vector<1x128x128xbf16>
    %72 = vector.shape_cast %71 : vector<1x128x128xbf16> to vector<128x128xbf16>
    %cst_41 = arith.constant dense<0.000000e+00> : vector<128x128xf32>
    %73 = tpu.matmul %70, %72, %cst_41 {dimension_numbers = #tpu.dot_dimension_numbers<[1], [0], [0], [1], [0, 0, 1, 1], [], []>} : vector<128x128xbf16>, vector<128x128xbf16>, vector<128x128xf32> -> vector<128x128xf32>
    %74 = arith.addf %68, %73 : vector<128x128xf32>
    %75 = vector.extract_strided_slice %2 {offsets = [1, 0], sizes = [1, 128], strides = [1, 1]} : vector<4x128xf32> to vector<1x128xf32>
    %76 = vector.shape_cast %75 : vector<1x128xf32> to vector<128xf32>
    %77 = vector.shape_cast %76 : vector<128xf32> to vector<1x128xf32>
    %78 = vector.broadcast %77 : vector<1x128xf32> to vector<128x128xf32>
    %79 = arith.mulf %74, %78 : vector<128x128xf32>
    %80 = vector.extract_strided_slice %3 {offsets = [1, 0], sizes = [1, 128], strides = [1, 1]} : vector<4x128xf32> to vector<1x128xf32>
    %81 = vector.shape_cast %80 : vector<1x128xf32> to vector<128xf32>
    %82 = vector.shape_cast %81 : vector<128xf32> to vector<1x128xf32>
    %83 = vector.broadcast %82 : vector<1x128xf32> to vector<128x128xf32>
    %84 = arith.addf %79, %83 : vector<128x128xf32>
    %cst_42 = arith.constant 0.000000e+00 : f32
    %85 = vector.broadcast %cst_42 : f32 to vector<128x128xf32>
    %86 = arith.maximumf %84, %85 : vector<128x128xf32>
    %87 = arith.truncf %86 : vector<128x128xf32> to vector<128x128xbf16>
    %c1_43 = arith.constant 1 : index
    %c0_44 = arith.constant 0 : index
    %c0_45 = arith.constant 0 : index
    %88 = vector.load %arg10[%c1_43, %c0_44, %c0_45] : memref<4x128x128xbf16, #tpu.memory_space<vmem>>, vector<1x128x128xbf16>
    %89 = vector.shape_cast %88 : vector<1x128x128xbf16> to vector<128x128xbf16>
    %cst_46 = arith.constant dense<0.000000e+00> : vector<128x128xf32>
    %90 = tpu.matmul %87, %89, %cst_46 {dimension_numbers = #tpu.dot_dimension_numbers<[1], [0], [0], [1], [0, 0, 1, 1], [], []>} : vector<128x128xbf16>, vector<128x128xbf16>, vector<128x128xf32> -> vector<128x128xf32>
    %91 = arith.addf %23, %90 : vector<128x128xf32>
    %92 = vector.extract_strided_slice %1 {offsets = [0, 0, 0], sizes = [8, 16, 128], strides = [1, 1, 1]} : vector<16x24x128xbf16> to vector<8x16x128xbf16>
    %93 = vector.shape_cast %92 : vector<8x16x128xbf16> to vector<128x128xbf16>
    %c0_47 = arith.constant 0 : index
    %c0_48 = arith.constant 0 : index
    %c0_49 = arith.constant 0 : index
    %94 = vector.load %arg6[%c0_47, %c0_48, %c0_49] : memref<9x128x128xbf16, #tpu.memory_space<vmem>>, vector<1x128x128xbf16>
    %95 = vector.shape_cast %94 : vector<1x128x128xbf16> to vector<128x128xbf16>
    %cst_50 = arith.constant dense<0.000000e+00> : vector<128x128xf32>
    %96 = tpu.matmul %93, %95, %cst_50 {dimension_numbers = #tpu.dot_dimension_numbers<[1], [0], [0], [1], [0, 0, 1, 1], [], []>} : vector<128x128xbf16>, vector<128x128xbf16>, vector<128x128xf32> -> vector<128x128xf32>
    %97 = vector.extract_strided_slice %1 {offsets = [0, 4, 0], sizes = [8, 16, 128], strides = [1, 1, 1]} : vector<16x24x128xbf16> to vector<8x16x128xbf16>
    %98 = vector.shape_cast %97 : vector<8x16x128xbf16> to vector<128x128xbf16>
    %c1_51 = arith.constant 1 : index
    %c0_52 = arith.constant 0 : index
    %c0_53 = arith.constant 0 : index
    %99 = vector.load %arg6[%c1_51, %c0_52, %c0_53] : memref<9x128x128xbf16, #tpu.memory_space<vmem>>, vector<1x128x128xbf16>
    %100 = vector.shape_cast %99 : vector<1x128x128xbf16> to vector<128x128xbf16>
    %cst_54 = arith.constant dense<0.000000e+00> : vector<128x128xf32>
    %101 = tpu.matmul %98, %100, %cst_54 {dimension_numbers = #tpu.dot_dimension_numbers<[1], [0], [0], [1], [0, 0, 1, 1], [], []>} : vector<128x128xbf16>, vector<128x128xbf16>, vector<128x128xf32> -> vector<128x128xf32>
    %102 = arith.addf %96, %101 : vector<128x128xf32>
    %103 = vector.extract_strided_slice %1 {offsets = [0, 8, 0], sizes = [8, 16, 128], strides = [1, 1, 1]} : vector<16x24x128xbf16> to vector<8x16x128xbf16>
    %104 = vector.shape_cast %103 : vector<8x16x128xbf16> to vector<128x128xbf16>
    %c2_55 = arith.constant 2 : index
    %c0_56 = arith.constant 0 : index
    %c0_57 = arith.constant 0 : index
    %105 = vector.load %arg6[%c2_55, %c0_56, %c0_57] : memref<9x128x128xbf16, #tpu.memory_space<vmem>>, vector<1x128x128xbf16>
    %106 = vector.shape_cast %105 : vector<1x128x128xbf16> to vector<128x128xbf16>
    %cst_58 = arith.constant dense<0.000000e+00> : vector<128x128xf32>
    %107 = tpu.matmul %104, %106, %cst_58 {dimension_numbers = #tpu.dot_dimension_numbers<[1], [0], [0], [1], [0, 0, 1, 1], [], []>} : vector<128x128xbf16>, vector<128x128xbf16>, vector<128x128xf32> -> vector<128x128xf32>
    %108 = arith.addf %102, %107 : vector<128x128xf32>
    %109 = vector.extract_strided_slice %1 {offsets = [4, 0, 0], sizes = [8, 16, 128], strides = [1, 1, 1]} : vector<16x24x128xbf16> to vector<8x16x128xbf16>
    %110 = vector.shape_cast %109 : vector<8x16x128xbf16> to vector<128x128xbf16>
    %c3_59 = arith.constant 3 : index
    %c0_60 = arith.constant 0 : index
    %c0_61 = arith.constant 0 : index
    %111 = vector.load %arg6[%c3_59, %c0_60, %c0_61] : memref<9x128x128xbf16, #tpu.memory_space<vmem>>, vector<1x128x128xbf16>
    %112 = vector.shape_cast %111 : vector<1x128x128xbf16> to vector<128x128xbf16>
    %cst_62 = arith.constant dense<0.000000e+00> : vector<128x128xf32>
    %113 = tpu.matmul %110, %112, %cst_62 {dimension_numbers = #tpu.dot_dimension_numbers<[1], [0], [0], [1], [0, 0, 1, 1], [], []>} : vector<128x128xbf16>, vector<128x128xbf16>, vector<128x128xf32> -> vector<128x128xf32>
    %114 = arith.addf %108, %113 : vector<128x128xf32>
    %c4_63 = arith.constant 4 : index
    %c0_64 = arith.constant 0 : index
    %c0_65 = arith.constant 0 : index
    %115 = vector.load %arg6[%c4_63, %c0_64, %c0_65] : memref<9x128x128xbf16, #tpu.memory_space<vmem>>, vector<1x128x128xbf16>
    %116 = vector.shape_cast %115 : vector<1x128x128xbf16> to vector<128x128xbf16>
    %cst_66 = arith.constant dense<0.000000e+00> : vector<128x128xf32>
    %117 = tpu.matmul %5, %116, %cst_66 {dimension_numbers = #tpu.dot_dimension_numbers<[1], [0], [0], [1], [0, 0, 1, 1], [], []>} : vector<128x128xbf16>, vector<128x128xbf16>, vector<128x128xf32> -> vector<128x128xf32>
    %118 = arith.addf %114, %117 : vector<128x128xf32>
    %119 = vector.extract_strided_slice %1 {offsets = [4, 8, 0], sizes = [8, 16, 128], strides = [1, 1, 1]} : vector<16x24x128xbf16> to vector<8x16x128xbf16>
    %120 = vector.shape_cast %119 : vector<8x16x128xbf16> to vector<128x128xbf16>
    %c5_67 = arith.constant 5 : index
    %c0_68 = arith.constant 0 : index
    %c0_69 = arith.constant 0 : index
    %121 = vector.load %arg6[%c5_67, %c0_68, %c0_69] : memref<9x128x128xbf16, #tpu.memory_space<vmem>>, vector<1x128x128xbf16>
    %122 = vector.shape_cast %121 : vector<1x128x128xbf16> to vector<128x128xbf16>
    %cst_70 = arith.constant dense<0.000000e+00> : vector<128x128xf32>
    %123 = tpu.matmul %120, %122, %cst_70 {dimension_numbers = #tpu.dot_dimension_numbers<[1], [0], [0], [1], [0, 0, 1, 1], [], []>} : vector<128x128xbf16>, vector<128x128xbf16>, vector<128x128xf32> -> vector<128x128xf32>
    %124 = arith.addf %118, %123 : vector<128x128xf32>
    %125 = vector.extract_strided_slice %1 {offsets = [8, 0, 0], sizes = [8, 16, 128], strides = [1, 1, 1]} : vector<16x24x128xbf16> to vector<8x16x128xbf16>
    %126 = vector.shape_cast %125 : vector<8x16x128xbf16> to vector<128x128xbf16>
    %c6_71 = arith.constant 6 : index
    %c0_72 = arith.constant 0 : index
    %c0_73 = arith.constant 0 : index
    %127 = vector.load %arg6[%c6_71, %c0_72, %c0_73] : memref<9x128x128xbf16, #tpu.memory_space<vmem>>, vector<1x128x128xbf16>
    %128 = vector.shape_cast %127 : vector<1x128x128xbf16> to vector<128x128xbf16>
    %cst_74 = arith.constant dense<0.000000e+00> : vector<128x128xf32>
    %129 = tpu.matmul %126, %128, %cst_74 {dimension_numbers = #tpu.dot_dimension_numbers<[1], [0], [0], [1], [0, 0, 1, 1], [], []>} : vector<128x128xbf16>, vector<128x128xbf16>, vector<128x128xf32> -> vector<128x128xf32>
    %130 = arith.addf %124, %129 : vector<128x128xf32>
    %131 = vector.extract_strided_slice %1 {offsets = [8, 4, 0], sizes = [8, 16, 128], strides = [1, 1, 1]} : vector<16x24x128xbf16> to vector<8x16x128xbf16>
    %132 = vector.shape_cast %131 : vector<8x16x128xbf16> to vector<128x128xbf16>
    %c7_75 = arith.constant 7 : index
    %c0_76 = arith.constant 0 : index
    %c0_77 = arith.constant 0 : index
    %133 = vector.load %arg6[%c7_75, %c0_76, %c0_77] : memref<9x128x128xbf16, #tpu.memory_space<vmem>>, vector<1x128x128xbf16>
    %134 = vector.shape_cast %133 : vector<1x128x128xbf16> to vector<128x128xbf16>
    %cst_78 = arith.constant dense<0.000000e+00> : vector<128x128xf32>
    %135 = tpu.matmul %132, %134, %cst_78 {dimension_numbers = #tpu.dot_dimension_numbers<[1], [0], [0], [1], [0, 0, 1, 1], [], []>} : vector<128x128xbf16>, vector<128x128xbf16>, vector<128x128xf32> -> vector<128x128xf32>
    %136 = arith.addf %130, %135 : vector<128x128xf32>
    %137 = vector.extract_strided_slice %1 {offsets = [8, 8, 0], sizes = [8, 16, 128], strides = [1, 1, 1]} : vector<16x24x128xbf16> to vector<8x16x128xbf16>
    %138 = vector.shape_cast %137 : vector<8x16x128xbf16> to vector<128x128xbf16>
    %c8_79 = arith.constant 8 : index
    %c0_80 = arith.constant 0 : index
    %c0_81 = arith.constant 0 : index
    %139 = vector.load %arg6[%c8_79, %c0_80, %c0_81] : memref<9x128x128xbf16, #tpu.memory_space<vmem>>, vector<1x128x128xbf16>
    %140 = vector.shape_cast %139 : vector<1x128x128xbf16> to vector<128x128xbf16>
    %cst_82 = arith.constant dense<0.000000e+00> : vector<128x128xf32>
    %141 = tpu.matmul %138, %140, %cst_82 {dimension_numbers = #tpu.dot_dimension_numbers<[1], [0], [0], [1], [0, 0, 1, 1], [], []>} : vector<128x128xbf16>, vector<128x128xbf16>, vector<128x128xf32> -> vector<128x128xf32>
    %142 = arith.addf %136, %141 : vector<128x128xf32>
    %143 = vector.extract_strided_slice %2 {offsets = [2, 0], sizes = [1, 128], strides = [1, 1]} : vector<4x128xf32> to vector<1x128xf32>
    %144 = vector.shape_cast %143 : vector<1x128xf32> to vector<128xf32>
    %145 = vector.shape_cast %144 : vector<128xf32> to vector<1x128xf32>
    %146 = vector.broadcast %145 : vector<1x128xf32> to vector<128x128xf32>
    %147 = arith.mulf %142, %146 : vector<128x128xf32>
    %148 = vector.extract_strided_slice %3 {offsets = [2, 0], sizes = [1, 128], strides = [1, 1]} : vector<4x128xf32> to vector<1x128xf32>
    %149 = vector.shape_cast %148 : vector<1x128xf32> to vector<128xf32>
    %150 = vector.shape_cast %149 : vector<128xf32> to vector<1x128xf32>
    %151 = vector.broadcast %150 : vector<1x128xf32> to vector<128x128xf32>
    %152 = arith.addf %147, %151 : vector<128x128xf32>
    %cst_83 = arith.constant 0.000000e+00 : f32
    %153 = vector.broadcast %cst_83 : f32 to vector<128x128xf32>
    %154 = arith.maximumf %152, %153 : vector<128x128xf32>
    %155 = arith.truncf %154 : vector<128x128xf32> to vector<128x128xbf16>
    %c2_84 = arith.constant 2 : index
    %c0_85 = arith.constant 0 : index
    %c0_86 = arith.constant 0 : index
    %156 = vector.load %arg10[%c2_84, %c0_85, %c0_86] : memref<4x128x128xbf16, #tpu.memory_space<vmem>>, vector<1x128x128xbf16>
    %157 = vector.shape_cast %156 : vector<1x128x128xbf16> to vector<128x128xbf16>
    %cst_87 = arith.constant dense<0.000000e+00> : vector<128x128xf32>
    %158 = tpu.matmul %155, %157, %cst_87 {dimension_numbers = #tpu.dot_dimension_numbers<[1], [0], [0], [1], [0, 0, 1, 1], [], []>} : vector<128x128xbf16>, vector<128x128xbf16>, vector<128x128xf32> -> vector<128x128xf32>
    %159 = arith.addf %91, %158 : vector<128x128xf32>
    %c0_88 = arith.constant 0 : index
    %c0_89 = arith.constant 0 : index
    %c0_90 = arith.constant 0 : index
    %160 = vector.load %arg3[%c0_88, %c0_89, %c0_90] : memref<1x1x128xbf16, #tpu.memory_space<vmem>>, vector<1x1x128xbf16>
    %161 = vector.shape_cast %160 : vector<1x1x128xbf16> to vector<1x128xbf16>
    %c0_91 = arith.constant 0 : index
    %c0_92 = arith.constant 0 : index
    %162 = vector.load %arg7[%c0_91, %c0_92] : memref<128x128xbf16, #tpu.memory_space<vmem>>, vector<128x128xbf16>
    %cst_93 = arith.constant dense<0.000000e+00> : vector<1x128xf32>
    %163 = tpu.matmul %161, %162, %cst_93 {dimension_numbers = #tpu.dot_dimension_numbers<[1], [0], [0], [1], [0, 0, 1, 1], [], []>} : vector<1x128xbf16>, vector<128x128xbf16>, vector<1x128xf32> -> vector<1x128xf32>
    %164 = vector.extract_strided_slice %2 {offsets = [3, 0], sizes = [1, 128], strides = [1, 1]} : vector<4x128xf32> to vector<1x128xf32>
    %165 = vector.shape_cast %164 : vector<1x128xf32> to vector<128xf32>
    %166 = vector.shape_cast %165 : vector<128xf32> to vector<1x128xf32>
    %167 = arith.mulf %163, %166 : vector<1x128xf32>
    %168 = vector.extract_strided_slice %3 {offsets = [3, 0], sizes = [1, 128], strides = [1, 1]} : vector<4x128xf32> to vector<1x128xf32>
    %169 = vector.shape_cast %168 : vector<1x128xf32> to vector<128xf32>
    %170 = vector.shape_cast %169 : vector<128xf32> to vector<1x128xf32>
    %171 = arith.addf %167, %170 : vector<1x128xf32>
    %cst_94 = arith.constant 0.000000e+00 : f32
    %172 = vector.broadcast %cst_94 : f32 to vector<1x128xf32>
    %173 = arith.maximumf %171, %172 : vector<1x128xf32>
    %174 = arith.truncf %173 : vector<1x128xf32> to vector<1x128xbf16>
    %c3_95 = arith.constant 3 : index
    %c0_96 = arith.constant 0 : index
    %c0_97 = arith.constant 0 : index
    %175 = vector.load %arg10[%c3_95, %c0_96, %c0_97] : memref<4x128x128xbf16, #tpu.memory_space<vmem>>, vector<1x128x128xbf16>
    %176 = vector.shape_cast %175 : vector<1x128x128xbf16> to vector<128x128xbf16>
    %cst_98 = arith.constant dense<0.000000e+00> : vector<1x128xf32>
    %177 = tpu.matmul %174, %176, %cst_98 {dimension_numbers = #tpu.dot_dimension_numbers<[1], [0], [0], [1], [0, 0, 1, 1], [], []>} : vector<1x128xbf16>, vector<128x128xbf16>, vector<1x128xf32> -> vector<1x128xf32>
    %178 = vector.broadcast %177 : vector<1x128xf32> to vector<128x128xf32>
    %179 = arith.addf %159, %178 : vector<128x128xf32>
    %c0_99 = arith.constant 0 : index
    %c0_100 = arith.constant 0 : index
    %180 = vector.load %arg11[%c0_99, %c0_100] : memref<1x128xf32, #tpu.memory_space<vmem>>, vector<1x128xf32>
    %181 = vector.broadcast %180 : vector<1x128xf32> to vector<128x128xf32>
    %182 = arith.mulf %179, %181 : vector<128x128xf32>
    %c0_101 = arith.constant 0 : index
    %c0_102 = arith.constant 0 : index
    %183 = vector.load %arg12[%c0_101, %c0_102] : memref<1x128xf32, #tpu.memory_space<vmem>>, vector<1x128xf32>
    %184 = vector.broadcast %183 : vector<1x128xf32> to vector<128x128xf32>
    %185 = arith.addf %182, %184 : vector<128x128xf32>
    %cst_103 = arith.constant 0.000000e+00 : f32
    %186 = vector.broadcast %cst_103 : f32 to vector<128x128xf32>
    %187 = arith.maximumf %185, %186 : vector<128x128xf32>
    %c0_104 = arith.constant 0 : index
    %c0_105 = arith.constant 0 : index
    %c0_106 = arith.constant 0 : index
    %188 = vector.load %arg13[%c0_104, %c0_105, %c0_106] : memref<1x128x128xf32, #tpu.memory_space<vmem>>, vector<1x128x128xf32>
    %189 = vector.shape_cast %188 : vector<1x128x128xf32> to vector<128x128xf32>
    %190 = vector.shape_cast %187 : vector<128x128xf32> to vector<1x128x128xf32>
    tpu.vector_store %arg13[%c0_104, %c0_105, %c0_106], %190 {strides = array<i32>} : memref<1x128x128xf32, #tpu.memory_space<vmem>>, vector<1x128x128xf32>,
    return
  }
  func.func @transform_0(%arg0: i32, %arg1: i32) -> (i32, i32, i32, i32) {
    %c2_i32 = arith.constant 2 : i32
    %0 = arith.muli %arg0, %c2_i32 : i32
    %1 = arith.addi %0, %arg1 : i32
    %c0_i32 = arith.constant 0 : i32
    %c0_i32_0 = arith.constant 0 : i32
    %c0_i32_1 = arith.constant 0 : i32
    %c0_i32_2 = arith.constant 0 : i32
    return %1, %c0_i32, %c0_i32_0, %c0_i32_1 : i32, i32, i32, i32
  }
  func.func @transform_1(%arg0: i32, %arg1: i32) -> (i32, i32, i32) {
    %c0_i32 = arith.constant 0 : i32
    %c0_i32_0 = arith.constant 0 : i32
    %c0_i32_1 = arith.constant 0 : i32
    return %arg0, %c0_i32, %c0_i32_0 : i32, i32, i32
  }
  func.func @transform_2(%arg0: i32, %arg1: i32) -> (i32, i32) {
    %c0_i32 = arith.constant 0 : i32
    %c0_i32_0 = arith.constant 0 : i32
    %c0_i32_1 = arith.constant 0 : i32
    return %c0_i32, %c0_i32_0 : i32, i32
  }
  func.func @transform_3(%arg0: i32, %arg1: i32) -> (i32, i32, i32) {
    %c0_i32 = arith.constant 0 : i32
    %c0_i32_0 = arith.constant 0 : i32
    %c0_i32_1 = arith.constant 0 : i32
    %c0_i32_2 = arith.constant 0 : i32
    return %c0_i32, %c0_i32_0, %c0_i32_1 : i32, i32, i32
  }
  func.func @transform_4(%arg0: i32, %arg1: i32) -> (i32, i32, i32) {
    %c0_i32 = arith.constant 0 : i32
    %c0_i32_0 = arith.constant 0 : i32
    %c0_i32_1 = arith.constant 0 : i32
    %c0_i32_2 = arith.constant 0 : i32
    return %c0_i32, %c0_i32_0, %c0_i32_1 : i32, i32, i32
  }
  func.func @transform_5(%arg0: i32, %arg1: i32) -> (i32, i32) {
    %c0_i32 = arith.constant 0 : i32
    %c0_i32_0 = arith.constant 0 : i32
    %c0_i32_1 = arith.constant 0 : i32
    return %c0_i32, %c0_i32_0 : i32, i32
  }
  func.func @transform_6(%arg0: i32, %arg1: i32) -> (i32, i32) {
    %c0_i32 = arith.constant 0 : i32
    %c0_i32_0 = arith.constant 0 : i32
    %c0_i32_1 = arith.constant 0 : i32
    return %c0_i32, %c0_i32_0 : i32, i32
  }
  func.func @transform_7(%arg0: i32, %arg1: i32) -> (i32, i32) {
    %c0_i32 = arith.constant 0 : i32
    %c0_i32_0 = arith.constant 0 : i32
    %c0_i32_1 = arith.constant 0 : i32
    return %c0_i32, %c0_i32_0 : i32, i32
  }
  func.func @transform_8(%arg0: i32, %arg1: i32) -> (i32, i32, i32) {
    %c0_i32 = arith.constant 0 : i32
    %c0_i32_0 = arith.constant 0 : i32
    %c0_i32_1 = arith.constant 0 : i32
    %c0_i32_2 = arith.constant 0 : i32
    return %c0_i32, %c0_i32_0, %c0_i32_1 : i32, i32, i32
  }
  func.func @transform_9(%arg0: i32, %arg1: i32) -> (i32, i32) {
    %c0_i32 = arith.constant 0 : i32
    %c0_i32_0 = arith.constant 0 : i32
    %c0_i32_1 = arith.constant 0 : i32
    return %c0_i32, %c0_i32_0 : i32, i32
  }
  func.func @transform_10(%arg0: i32, %arg1: i32) -> (i32, i32) {
    %c0_i32 = arith.constant 0 : i32
    %c0_i32_0 = arith.constant 0 : i32
    %c0_i32_1 = arith.constant 0 : i32
    return %c0_i32, %c0_i32_0 : i32, i32
  }
  func.func @transform_11(%arg0: i32, %arg1: i32) -> (i32, i32, i32) {
    %c2_i32 = arith.constant 2 : i32
    %0 = arith.muli %arg0, %c2_i32 : i32
    %1 = arith.addi %0, %arg1 : i32
    %c0_i32 = arith.constant 0 : i32
    %c0_i32_0 = arith.constant 0 : i32
    %c0_i32_1 = arith.constant 0 : i32
    return %1, %c0_i32, %c0_i32_0 : i32, i32, i32
  }
}

</mosaic_0001>

<llo_original>
// kernel: tpu_custom_call.1
$region0: #{tpu_custom_call.1}
  #allocation0 [shape = 'u32[]', space=smem, size = 0x4, offset = 0x4, fixed_abs, tag = 'smem constant byte address 0x4 - core index']
  #allocation1 [shape = 'u32[144,128]{1,0:T(1,128)}', space=vmem, size = 0x12000, scoped, tag = 'internal scratch']
  %s0 = inlined_call_operand.hbm [shape: bf16[4,16,24,128], index: 0, kind: input, shape index: {}]
  %s1 = inlined_call_operand.vmem [shape: bf16[2,1,128], index: 1, kind: input, shape index: {}]
  %s2 = inlined_call_operand.hbm [shape: bf16[128,128], index: 2, kind: input, shape index: {}]
  %s3 = inlined_call_operand.hbm [shape: bf16[9,128,128], index: 3, kind: input, shape index: {}]
  %s4 = inlined_call_operand.hbm [shape: bf16[9,128,128], index: 4, kind: input, shape index: {}]
  %s5 = inlined_call_operand.hbm [shape: bf16[128,128], index: 5, kind: input, shape index: {}]
  %s6 = inlined_call_operand.vmem [shape: f32[4,128], index: 6, kind: input, shape index: {}]
  %s7 = inlined_call_operand.vmem [shape: f32[4,128], index: 7, kind: input, shape index: {}]
  %s8 = inlined_call_operand.hbm [shape: bf16[4,128,128], index: 8, kind: input, shape index: {}]
  %s9 = inlined_call_operand.vmem [shape: f32[1,128], index: 9, kind: input, shape index: {}]
  %s10 = inlined_call_operand.vmem [shape: f32[1,128], index: 10, kind: input, shape index: {}]
  %s11 = inlined_call_operand.hbm [shape: f32[4,128,128], index: 11, kind: output, shape index: {}]
  %s12 = sld [smem:[#allocation0]]
  $region101: #{tpu_custom_call.1} parent=0
    _
  %s14 = ssub.s32 1, %s12
  %s15 = scalar_select 0, %s14, %s12
  $region1: #{tpu_custom_call.1} parent=0
    #allocation2 [shape = 'u8[196608]{0}', space=vmem, size = 0x30000, scoped, tag = 'input window, operand 0']
    #allocation3 [shape = 's32[2]{0}', space=sflag, size = 0x8, scoped, tag = 'scoped memory for tpu_custom_call.1']
    #allocation4 [shape = 's32[2]{0}', space=sflag, size = 0x8, scoped, tag = 'scoped memory for tpu_custom_call.1']
    #allocation5 [shape = 'u8[32768]{0}', space=vmem, size = 0x8000, scoped, tag = 'input window, operand 2, single buffered']
    #allocation6 [shape = 's32[1]{0}', space=sflag, size = 0x4, scoped, tag = 'scoped memory for tpu_custom_call.1']
    #allocation7 [shape = 'u8[294912]{0}', space=vmem, size = 0x48000, scoped, tag = 'input window, operand 3, single buffered']
    #allocation8 [shape = 'u8[294912]{0}', space=vmem, size = 0x48000, scoped, tag = 'input window, operand 4, single buffered']
    #allocation9 [shape = 's32[1]{0}', space=sflag, size = 0x4, scoped, tag = 'scoped memory for tpu_custom_call.1']
    #allocation10 [shape = 'u8[32768]{0}', space=vmem, size = 0x8000, scoped, tag = 'input window, operand 5, single buffered']
    #allocation11 [shape = 'u8[131072]{0}', space=vmem, size = 0x20000, scoped, tag = 'input window, operand 8, single buffered']
    #allocation12 [shape = 's32[1]{0}', space=sflag, size = 0x4, scoped, tag = 'scoped memory for tpu_custom_call.1']
    #allocation13 [shape = 'u8[131072]{0}', space=vmem, size = 0x20000, scoped, tag = 'output window, operand 0']
    %16 = vsyncpa [#allocation3], 0
    %s17 = scalar_lea.sflag [#allocation3], 1
    %18 = vsyncpa %s17, 0
    %19 = vsyncpa [#allocation6], 0
    %20 = vsyncpa [#allocation9], 0
    %21 = vsyncpa [#allocation12], 0
    %22 = vsyncpa [#allocation4], 0
    %s23 = scalar_lea.sflag [#allocation4], 1
    %24 = vsyncpa %s23, 0
    loop: start=0, step=1, limit=6
    $region2: #{tpu_custom_call.1} parent=1 // loop_pre_header
      _
    $region3: #{tpu_custom_call.1} parent=1 // loop_header
      %s26 = sphi 0, %s30
      %p27 = scmp.ge.s32.totalorder %s26, 6
      %s33 = sphi 0, %s45
      %s34 = sphi 0, %s41
      %s35 = sphi 0, %s33
      %s36 = sphi 0, %s34
      %s37 = sphi 0, %s35
      %s38 = sphi 0, %s36
      %s52 = sphi 0, %s54
      %s55 = sphi 0, %s52
      %s56 = sphi 0, %s55
      %s72 = sphi 0, %s56
      %s78 = sphi 0, %s80
      %s81 = sphi 0, %s78
      %s82 = sphi 0, %s81
      %s98 = sphi 0, %s82
      %s102 = sphi 0, %s102
      %s104 = sphi 0, %s102
      %s105 = sphi 0, %s104
      %s119 = sphi 0, %s105
      %s123 = sphi 0, %s123
      %s125 = sphi 0, %s123
      %s126 = sphi 0, %s125
      %s140 = sphi 0, %s126
      %s144 = sphi 0, %s144
      %s146 = sphi 0, %s144
      %s147 = sphi 0, %s146
      %s161 = sphi 0, %s147
      %s165 = sphi 0, %s165
      %s167 = sphi 0, %s165
      %s168 = sphi 0, %s167
      %s182 = sphi 0, %s168
      %s186 = sphi 0, %s186
      %s188 = sphi 0, %s186
      %s189 = sphi 0, %s188
      %s203 = sphi 0, %s189
      %s207 = sphi 0, %s207
      %s209 = sphi 0, %s207
      %s210 = sphi 0, %s209
      %s224 = sphi 0, %s210
      %s228 = sphi 0, %s228
      %s230 = sphi 0, %s228
      %s231 = sphi 0, %s230
      %s245 = sphi 0, %s231
      %s249 = sphi 0, %s249
      %s251 = sphi 0, %s249
      %s252 = sphi 0, %s251
      %s266 = sphi 0, %s252
      %s270 = sphi 0, %s270
      %s272 = sphi 0, %s270
      %s273 = sphi 0, %s272
      %s287 = sphi 0, %s273
      %s297 = sphi 0, %s299
      %s300 = sphi 0, %s297
      %s301 = sphi 0, %s300
      %s317 = sphi 0, %s301
    $region4: #{tpu_custom_call.1} parent=1 // loop_header_branch
      %29 = sbr.rel (%p27) target = $region8
    $region5: #{tpu_custom_call.1} parent=1 // loop_body
      %s31 = ssub.s32 %s26, 1
      %s32 = ssub.s32 %s26, 2
      %s39 = sadd.s32 1, %s34
      %p40 = scmp.ge.s32.totalorder %s39, 2
      %s41 = scalar_select %p40, 0, %s39
      %s42 = sadd.s32 1, %s33
      %s43 = scalar_select %p40, %s42, %s33
      %p44 = scmp.ge.s32.totalorder %s43, 2
      %s45 = scalar_select %p44, 0, %s43
      %s46 = smul.u32 %s33, 2
      %s47 = sadd.s32 %s46, %s34
      %s48 = smul.u32 %s45, 2
      %s49 = sadd.s32 %s48, %s41
      %s50 = ssub.s32 %s47, %s49
      %p51 = scmp.eq.s32.totalorder %s50, 0
      %s53 = sadd.s32 %s52, 1
      %s54 = scalar_select %p51, %s52, %s53
      %p57 = pneg %p51
      %p58 = scmp.eq.s32.totalorder %s26, 3
      %p59 = por %p57, %p58
      %p60 = scmp.ne.s32.totalorder %s52, %s55
      %p61 = scmp.eq.s32.totalorder %s26, 0
      %p62 = por %p60, %p61
      %p63 = scmp.ne.s32.totalorder %s52, %s55
      %p64 = scmp.eq.s32.totalorder %s31, 3
      %p65 = por %p63, %p64
      %p66 = scmp.ne.s32.totalorder %s55, %s56
      %p67 = scmp.eq.s32.totalorder %s31, 0
      %p68 = por %p66, %p67
      %p69 = scmp.ne.s32.totalorder %s55, %s56
      %p70 = scmp.eq.s32.totalorder %s32, 3
      %p71 = por %p69, %p70
      %p73 = scmp.ne.s32.totalorder %s56, %s72
      %p74 = scmp.eq.s32.totalorder %s32, 0
      %p75 = por %p73, %p74
      %s76 = ssub.s32 %s33, %s45
      %p77 = scmp.eq.s32.totalorder %s76, 0
      %s79 = sadd.s32 %s78, 1
      %s80 = scalar_select %p77, %s78, %s79
      %p83 = pneg %p77
      %p84 = scmp.eq.s32.totalorder %s26, 3
      %p85 = por %p83, %p84
      %p86 = scmp.ne.s32.totalorder %s78, %s81
      %p87 = scmp.eq.s32.totalorder %s26, 0
      %p88 = por %p86, %p87
      %p89 = scmp.ne.s32.totalorder %s78, %s81
      %p90 = scmp.eq.s32.totalorder %s31, 3
      %p91 = por %p89, %p90
      %p92 = scmp.ne.s32.totalorder %s81, %s82
      %p93 = scmp.eq.s32.totalorder %s31, 0
      %p94 = por %p92, %p93
      %p95 = scmp.ne.s32.totalorder %s81, %s82
      %p96 = scmp.eq.s32.totalorder %s32, 3
      %p97 = por %p95, %p96
      %p99 = scmp.ne.s32.totalorder %s82, %s98
      %p100 = scmp.eq.s32.totalorder %s32, 0
      %p101 = por %p99, %p100
      %s103 = sadd.s32 %s102, 1
      %p106 = scmp.eq.s32.totalorder %s26, 3
      %p107 = scmp.ne.s32.totalorder %s102, %s104
      %p108 = scmp.eq.s32.totalorder %s26, 0
      %p109 = por %p107, %p108
      %p110 = scmp.ne.s32.totalorder %s102, %s104
      %p111 = scmp.eq.s32.totalorder %s31, 3
      %p112 = por %p110, %p111
      %p113 = scmp.ne.s32.totalorder %s104, %s105
      %p114 = scmp.eq.s32.totalorder %s31, 0
      %p115 = por %p113, %p114
      %p116 = scmp.ne.s32.totalorder %s104, %s105
      %p117 = scmp.eq.s32.totalorder %s32, 3
      %p118 = por %p116, %p117
      %p120 = scmp.ne.s32.totalorder %s105, %s119
      %p121 = scmp.eq.s32.totalorder %s32, 0
      %p122 = por %p120, %p121
      %s124 = sadd.s32 %s123, 1
      %p127 = scmp.eq.s32.totalorder %s26, 3
      %p128 = scmp.ne.s32.totalorder %s123, %s125
      %p129 = scmp.eq.s32.totalorder %s26, 0
      %p130 = por %p128, %p129
      %p131 = scmp.ne.s32.totalorder %s123, %s125
      %p132 = scmp.eq.s32.totalorder %s31, 3
      %p133 = por %p131, %p132
      %p134 = scmp.ne.s32.totalorder %s125, %s126
      %p135 = scmp.eq.s32.totalorder %s31, 0
      %p136 = por %p134, %p135
      %p137 = scmp.ne.s32.totalorder %s125, %s126
      %p138 = scmp.eq.s32.totalorder %s32, 3
      %p139 = por %p137, %p138
      %p141 = scmp.ne.s32.totalorder %s126, %s140
      %p142 = scmp.eq.s32.totalorder %s32, 0
      %p143 = por %p141, %p142
      %s145 = sadd.s32 %s144, 1
      %p148 = scmp.eq.s32.totalorder %s26, 3
      %p149 = scmp.ne.s32.totalorder %s144, %s146
      %p150 = scmp.eq.s32.totalorder %s26, 0
      %p151 = por %p149, %p150
      %p152 = scmp.ne.s32.totalorder %s144, %s146
      %p153 = scmp.eq.s32.totalorder %s31, 3
      %p154 = por %p152, %p153
      %p155 = scmp.ne.s32.totalorder %s146, %s147
      %p156 = scmp.eq.s32.totalorder %s31, 0
      %p157 = por %p155, %p156
      %p158 = scmp.ne.s32.totalorder %s146, %s147
      %p159 = scmp.eq.s32.totalorder %s32, 3
      %p160 = por %p158, %p159
      %p162 = scmp.ne.s32.totalorder %s147, %s161
      %p163 = scmp.eq.s32.totalorder %s32, 0
      %p164 = por %p162, %p163
      %s166 = sadd.s32 %s165, 1
      %p169 = scmp.eq.s32.totalorder %s26, 3
      %p170 = scmp.ne.s32.totalorder %s165, %s167
      %p171 = scmp.eq.s32.totalorder %s26, 0
      %p172 = por %p170, %p171
      %p173 = scmp.ne.s32.totalorder %s165, %s167
      %p174 = scmp.eq.s32.totalorder %s31, 3
      %p175 = por %p173, %p174
      %p176 = scmp.ne.s32.totalorder %s167, %s168
      %p177 = scmp.eq.s32.totalorder %s31, 0
      %p178 = por %p176, %p177
      %p179 = scmp.ne.s32.totalorder %s167, %s168
      %p180 = scmp.eq.s32.totalorder %s32, 3
      %p181 = por %p179, %p180
      %p183 = scmp.ne.s32.totalorder %s168, %s182
      %p184 = scmp.eq.s32.totalorder %s32, 0
      %p185 = por %p183, %p184
      %s187 = sadd.s32 %s186, 1
      %p190 = scmp.eq.s32.totalorder %s26, 3
      %p191 = scmp.ne.s32.totalorder %s186, %s188
      %p192 = scmp.eq.s32.totalorder %s26, 0
      %p193 = por %p191, %p192
      %p194 = scmp.ne.s32.totalorder %s186, %s188
      %p195 = scmp.eq.s32.totalorder %s31, 3
      %p196 = por %p194, %p195
      %p197 = scmp.ne.s32.totalorder %s188, %s189
      %p198 = scmp.eq.s32.totalorder %s31, 0
      %p199 = por %p197, %p198
      %p200 = scmp.ne.s32.totalorder %s188, %s189
      %p201 = scmp.eq.s32.totalorder %s32, 3
      %p202 = por %p200, %p201
      %p204 = scmp.ne.s32.totalorder %s189, %s203
      %p205 = scmp.eq.s32.totalorder %s32, 0
      %p206 = por %p204, %p205
      %s208 = sadd.s32 %s207, 1
      %p211 = scmp.eq.s32.totalorder %s26, 3
      %p212 = scmp.ne.s32.totalorder %s207, %s209
      %p213 = scmp.eq.s32.totalorder %s26, 0
      %p214 = por %p212, %p213
      %p215 = scmp.ne.s32.totalorder %s207, %s209
      %p216 = scmp.eq.s32.totalorder %s31, 3
      %p217 = por %p215, %p216
      %p218 = scmp.ne.s32.totalorder %s209, %s210
      %p219 = scmp.eq.s32.totalorder %s31, 0
      %p220 = por %p218, %p219
      %p221 = scmp.ne.s32.totalorder %s209, %s210
      %p222 = scmp.eq.s32.totalorder %s32, 3
      %p223 = por %p221, %p222
      %p225 = scmp.ne.s32.totalorder %s210, %s224
      %p226 = scmp.eq.s32.totalorder %s32, 0
      %p227 = por %p225, %p226
      %s229 = sadd.s32 %s228, 1
      %p232 = scmp.eq.s32.totalorder %s26, 3
      %p233 = scmp.ne.s32.totalorder %s228, %s230
      %p234 = scmp.eq.s32.totalorder %s26, 0
      %p235 = por %p233, %p234
      %p236 = scmp.ne.s32.totalorder %s228, %s230
      %p237 = scmp.eq.s32.totalorder %s31, 3
      %p238 = por %p236, %p237
      %p239 = scmp.ne.s32.totalorder %s230, %s231
      %p240 = scmp.eq.s32.totalorder %s31, 0
      %p241 = por %p239, %p240
      %p242 = scmp.ne.s32.totalorder %s230, %s231
      %p243 = scmp.eq.s32.totalorder %s32, 3
      %p244 = por %p242, %p243
      %p246 = scmp.ne.s32.totalorder %s231, %s245
      %p247 = scmp.eq.s32.totalorder %s32, 0
      %p248 = por %p246, %p247
      %s250 = sadd.s32 %s249, 1
      %p253 = scmp.eq.s32.totalorder %s26, 3
      %p254 = scmp.ne.s32.totalorder %s249, %s251
      %p255 = scmp.eq.s32.totalorder %s26, 0
      %p256 = por %p254, %p255
      %p257 = scmp.ne.s32.totalorder %s249, %s251
      %p258 = scmp.eq.s32.totalorder %s31, 3
      %p259 = por %p257, %p258
      %p260 = scmp.ne.s32.totalorder %s251, %s252
      %p261 = scmp.eq.s32.totalorder %s31, 0
      %p262 = por %p260, %p261
      %p263 = scmp.ne.s32.totalorder %s251, %s252
      %p264 = scmp.eq.s32.totalorder %s32, 3
      %p265 = por %p263, %p264
      %p267 = scmp.ne.s32.totalorder %s252, %s266
      %p268 = scmp.eq.s32.totalorder %s32, 0
      %p269 = por %p267, %p268
      %s271 = sadd.s32 %s270, 1
      %p274 = scmp.eq.s32.totalorder %s26, 3
      %p275 = scmp.ne.s32.totalorder %s270, %s272
      %p276 = scmp.eq.s32.totalorder %s26, 0
      %p277 = por %p275, %p276
      %p278 = scmp.ne.s32.totalorder %s270, %s272
      %p279 = scmp.eq.s32.totalorder %s31, 3
      %p280 = por %p278, %p279
      %p281 = scmp.ne.s32.totalorder %s272, %s273
      %p282 = scmp.eq.s32.totalorder %s31, 0
      %p283 = por %p281, %p282
      %p284 = scmp.ne.s32.totalorder %s272, %s273
      %p285 = scmp.eq.s32.totalorder %s32, 3
      %p286 = por %p284, %p285
      %p288 = scmp.ne.s32.totalorder %s273, %s287
      %p289 = scmp.eq.s32.totalorder %s32, 0
      %p290 = por %p288, %p289
      %s291 = smul.u32 %s33, 2
      %s292 = sadd.s32 %s291, %s34
      %s293 = smul.u32 %s45, 2
      %s294 = sadd.s32 %s293, %s41
      %s295 = ssub.s32 %s292, %s294
      %p296 = scmp.eq.s32.totalorder %s295, 0
      %s298 = sadd.s32 %s297, 1
      %s299 = scalar_select %p296, %s297, %s298
      %p302 = pneg %p296
      %p303 = scmp.eq.s32.totalorder %s26, 3
      %p304 = por %p302, %p303
      %p305 = scmp.ne.s32.totalorder %s297, %s300
      %p306 = scmp.eq.s32.totalorder %s26, 0
      %p307 = por %p305, %p306
      %p308 = scmp.ne.s32.totalorder %s297, %s300
      %p309 = scmp.eq.s32.totalorder %s31, 3
      %p310 = por %p308, %p309
      %p311 = scmp.ne.s32.totalorder %s300, %s301
      %p312 = scmp.eq.s32.totalorder %s31, 0
      %p313 = por %p311, %p312
      %p314 = scmp.ne.s32.totalorder %s300, %s301
      %p315 = scmp.eq.s32.totalorder %s32, 3
      %p316 = por %p314, %p315
      %p318 = scmp.ne.s32.totalorder %s301, %s317
      %p319 = scmp.eq.s32.totalorder %s32, 0
      %p320 = por %p318, %p319
      %p321 = scmp.le.s32.totalorder 1, %s26
      %p322 = scmp.lt.s32.totalorder %s26, 5
      %p323 = pnand %p321, %p322
      %p324 = pneg %p323
      // Predicated region
      $region9: #{tpu_custom_call.1} parent=5 // pred_check
        _
      $region10: #{tpu_custom_call.1} parent=5 // pred_check_branch
        %326 = sbr.rel (%p323) target = $region12
      $region11: #{tpu_custom_call.1} parent=5 // pred_region
        %s327 = ssub.s32 %s26, 1
        // Predicated region
        $region13: #{tpu_custom_call.1} parent=11 // pred_check
          %p328 = pneg %p115
        $region14: #{tpu_custom_call.1} parent=11 // pred_check_branch
          %330 = sbr.rel (%p328) target = $region16
        $region15: #{tpu_custom_call.1} parent=11 // pred_region
          %s332 = ssub.s32 1024, 1024
          %333 = vsyncadd [#allocation6], %s332
          %s334 = sshll.u32 [#allocation5], 4
          %s335 = int_to_ptr.vmem [resolvable:$true] %s334
          %340 = dma.hbm_to_vmem [thread:$0]  %s2, 1024, %s335, [#allocation6], 64, 64, 4
        $region16: #{tpu_custom_call.1} parent=11 // pred_fallthru
          _
        // Predicated region
        $region17: #{tpu_custom_call.1} parent=11 // pred_check
          %p341 = pneg %p136
        $region18: #{tpu_custom_call.1} parent=11 // pred_check_branch
          %343 = sbr.rel (%p341) target = $region20
        $region19: #{tpu_custom_call.1} parent=11 // pred_region
          %s345 = ssub.s32 9216, 9216
          %346 = vsyncadd [#allocation6], %s345
          %s347 = sshll.u32 [#allocation7], 4
          %s348 = int_to_ptr.vmem [resolvable:$true] %s347
          %353 = dma.hbm_to_vmem [thread:$0]  %s3, 9216, %s348, [#allocation6], 64, 64, 4
        $region20: #{tpu_custom_call.1} parent=11 // pred_fallthru
          _
        // Predicated region
        $region21: #{tpu_custom_call.1} parent=11 // pred_check
          %p354 = pneg %p157
        $region22: #{tpu_custom_call.1} parent=11 // pred_check_branch
          %356 = sbr.rel (%p354) target = $region24
        $region23: #{tpu_custom_call.1} parent=11 // pred_region
          %s358 = ssub.s32 9216, 9216
          %359 = vsyncadd [#allocation9], %s358
          %s360 = sshll.u32 [#allocation8], 4
          %s361 = int_to_ptr.vmem [resolvable:$true] %s360
          %366 = dma.hbm_to_vmem [thread:$0]  %s4, 9216, %s361, [#allocation9], 64, 64, 4
        $region24: #{tpu_custom_call.1} parent=11 // pred_fallthru
          _
        // Predicated region
        $region25: #{tpu_custom_call.1} parent=11 // pred_check
          %p367 = pneg %p178
        $region26: #{tpu_custom_call.1} parent=11 // pred_check_branch
          %369 = sbr.rel (%p367) target = $region28
        $region27: #{tpu_custom_call.1} parent=11 // pred_region
          %s371 = ssub.s32 1024, 1024
          %372 = vsyncadd [#allocation9], %s371
          %s373 = sshll.u32 [#allocation10], 4
          %s374 = int_to_ptr.vmem [resolvable:$true] %s373
          %379 = dma.hbm_to_vmem [thread:$0]  %s5, 1024, %s374, [#allocation9], 64, 64, 4
        $region28: #{tpu_custom_call.1} parent=11 // pred_fallthru
          _
        // Predicated region
        $region29: #{tpu_custom_call.1} parent=11 // pred_check
          %p380 = pneg %p199
        $region30: #{tpu_custom_call.1} parent=11 // pred_check_branch
          %382 = sbr.rel (%p380) target = $region32
        $region31: #{tpu_custom_call.1} parent=11 // pred_region
          _
        $region32: #{tpu_custom_call.1} parent=11 // pred_fallthru
          _
        // Predicated region
        $region33: #{tpu_custom_call.1} parent=11 // pred_check
          %p383 = pneg %p220
        $region34: #{tpu_custom_call.1} parent=11 // pred_check_branch
          %385 = sbr.rel (%p383) target = $region36
        $region35: #{tpu_custom_call.1} parent=11 // pred_region
          _
        $region36: #{tpu_custom_call.1} parent=11 // pred_fallthru
          _
        // Predicated region
        $region37: #{tpu_custom_call.1} parent=11 // pred_check
          %p386 = pneg %p241
        $region38: #{tpu_custom_call.1} parent=11 // pred_check_branch
          %388 = sbr.rel (%p386) target = $region40
        $region39: #{tpu_custom_call.1} parent=11 // pred_region
          %s390 = ssub.s32 4096, 4096
          %391 = vsyncadd [#allocation12], %s390
          %s392 = sshll.u32 [#allocation11], 4
          %s393 = int_to_ptr.vmem [resolvable:$true] %s392
          %398 = dma.hbm_to_vmem [thread:$0]  %s8, 4096, %s393, [#allocation12], 64, 64, 4
        $region40: #{tpu_custom_call.1} parent=11 // pred_fallthru
          _
        // Predicated region
        $region41: #{tpu_custom_call.1} parent=11 // pred_check
          %p399 = pneg %p262
        $region42: #{tpu_custom_call.1} parent=11 // pred_check_branch
          %401 = sbr.rel (%p399) target = $region44
        $region43: #{tpu_custom_call.1} parent=11 // pred_region
          _
        $region44: #{tpu_custom_call.1} parent=11 // pred_fallthru
          _
        // Predicated region
        $region45: #{tpu_custom_call.1} parent=11 // pred_check
          %p402 = pneg %p283
        $region46: #{tpu_custom_call.1} parent=11 // pred_check_branch
          %404 = sbr.rel (%p402) target = $region48
        $region47: #{tpu_custom_call.1} parent=11 // pred_region
          _
        $region48: #{tpu_custom_call.1} parent=11 // pred_fallthru
          _
      $region12: #{tpu_custom_call.1} parent=5 // pred_fallthru
        _
      %p405 = scmp.lt.s32.totalorder %s26, 4
      // Predicated region
      $region49: #{tpu_custom_call.1} parent=5 // pred_check
        %p406 = pneg %p405
      $region50: #{tpu_custom_call.1} parent=5 // pred_check_branch
        %408 = sbr.rel (%p406) target = $region52
      $region51: #{tpu_custom_call.1} parent=5 // pred_region
        // Predicated region
        $region53: #{tpu_custom_call.1} parent=51 // pred_check
          %p409 = pneg %p62
        $region54: #{tpu_custom_call.1} parent=51 // pred_check_branch
          %411 = sbr.rel (%p409) target = $region56
        $region55: #{tpu_custom_call.1} parent=51 // pred_region
          %s412 = sand.u32 %s52, 1
          %s413 = scalar_lea.sflag [#allocation3], %s412
          %s414 = sand.u32 %s52, 1
          %s415 = smul.addr %s414, 192
          %s416 = scalar_lea.vmem [#allocation2], %s415
          %s417 = smul.u32 %s33, 2
          %s418 = sadd.s32 %s417, %s34
          %s420 = ssub.s32 3072, 3072
          %421 = vsyncadd %s413, %s420
          %s422 = smul.addr %s418, 48
          %s423 = smul.addr %s422, 64
          %s424 = scalar_lea.hbm %s0, %s423
          %s425 = sshll.u32 %s416, 4
          %s426 = int_to_ptr.vmem [resolvable:$true] %s425
          %431 = dma.hbm_to_vmem [thread:$0]  %s424, 3072, %s426, %s413, 64, 64, 4
        $region56: #{tpu_custom_call.1} parent=51 // pred_fallthru
          _
        // Predicated region
        $region57: #{tpu_custom_call.1} parent=51 // pred_check
          %p432 = pneg %p88
        $region58: #{tpu_custom_call.1} parent=51 // pred_check_branch
          %434 = sbr.rel (%p432) target = $region60
        $region59: #{tpu_custom_call.1} parent=51 // pred_region
          %p435 = scmp.lt.s32.totalorder %s33, 1
          %s436 = scalar_select %p435, %s33, 1
          %s437 = scalar_lea.vmem %s1, %s436
        $region60: #{tpu_custom_call.1} parent=51 // pred_fallthru
          _
      $region52: #{tpu_custom_call.1} parent=5 // pred_fallthru
        _
      %p438 = scmp.le.s32.totalorder 1, %s26
      %p439 = scmp.lt.s32.totalorder %s26, 5
      %p440 = pnand %p438, %p439
      %p441 = pneg %p440
      // Predicated region
      $region61: #{tpu_custom_call.1} parent=5 // pred_check
        _
      $region62: #{tpu_custom_call.1} parent=5 // pred_check_branch
        %443 = sbr.rel (%p440) target = $region64
      $region63: #{tpu_custom_call.1} parent=5 // pred_region
        %s444 = ssub.s32 %s26, 1
        %s445 = sand.u32 %s55, 1
        %s446 = scalar_lea.sflag [#allocation3], %s445
        %s447 = sand.u32 %s55, 1
        %s448 = smul.addr %s447, 192
        %s449 = scalar_lea.vmem [#allocation2], %s448
        // Predicated region
        $region65: #{tpu_custom_call.1} parent=63 // pred_check
          %p450 = pneg %p68
        $region66: #{tpu_custom_call.1} parent=63 // pred_check_branch
          %452 = sbr.rel (%p450) target = $region68
        $region67: #{tpu_custom_call.1} parent=63 // pred_region
          %453 = dma.done %s446, 3072
        $region68: #{tpu_custom_call.1} parent=63 // pred_fallthru
          _
        // Predicated region
        $region69: #{tpu_custom_call.1} parent=63 // pred_check
          %p454 = pneg %p115
        $region70: #{tpu_custom_call.1} parent=63 // pred_check_branch
          %456 = sbr.rel (%p454) target = $region72
        $region71: #{tpu_custom_call.1} parent=63 // pred_region
          %457 = dma.done [#allocation6], 1024
        $region72: #{tpu_custom_call.1} parent=63 // pred_fallthru
          _
        // Predicated region
        $region73: #{tpu_custom_call.1} parent=63 // pred_check
          %p458 = pneg %p136
        $region74: #{tpu_custom_call.1} parent=63 // pred_check_branch
          %460 = sbr.rel (%p458) target = $region76
        $region75: #{tpu_custom_call.1} parent=63 // pred_region
          %461 = dma.done [#allocation6], 9216
        $region76: #{tpu_custom_call.1} parent=63 // pred_fallthru
          _
        // Predicated region
        $region77: #{tpu_custom_call.1} parent=63 // pred_check
          %p462 = pneg %p157
        $region78: #{tpu_custom_call.1} parent=63 // pred_check_branch
          %464 = sbr.rel (%p462) target = $region80
        $region79: #{tpu_custom_call.1} parent=63 // pred_region
          %465 = dma.done [#allocation9], 9216
        $region80: #{tpu_custom_call.1} parent=63 // pred_fallthru
          _
        // Predicated region
        $region81: #{tpu_custom_call.1} parent=63 // pred_check
          %p466 = pneg %p178
        $region82: #{tpu_custom_call.1} parent=63 // pred_check_branch
          %468 = sbr.rel (%p466) target = $region84
        $region83: #{tpu_custom_call.1} parent=63 // pred_region
          %469 = dma.done [#allocation9], 1024
        $region84: #{tpu_custom_call.1} parent=63 // pred_fallthru
          _
        // Predicated region
        $region85: #{tpu_custom_call.1} parent=63 // pred_check
          %p470 = pneg %p241
        $region86: #{tpu_custom_call.1} parent=63 // pred_check_branch
          %472 = sbr.rel (%p470) target = $region88
        $region87: #{tpu_custom_call.1} parent=63 // pred_region
          %473 = dma.done [#allocation12], 4096
        $region88: #{tpu_custom_call.1} parent=63 // pred_fallthru
          _
        %s474 = sand.u32 %s55, 1
        %s475 = scalar_lea.sflag [#allocation3], %s474
        %s476 = sand.u32 %s55, 1
        %s477 = smul.addr %s476, 192
        %s478 = scalar_lea.vmem [#allocation2], %s477
        %p479 = pneg %p68
        %p480 = pneg %p65
        %p481 = scmp.lt.s32.totalorder %s35, 1
        %s482 = scalar_select %p481, %s35, 1
        %s483 = scalar_lea.vmem %s1, %s482
        %p484 = pneg %p94
        %p485 = pneg %p91
        %p486 = pneg %p115
        %p487 = pneg %p112
        %p488 = pneg %p136
        %p489 = pneg %p133
        %p490 = pneg %p157
        %p491 = pneg %p154
        %p492 = pneg %p178
        %p493 = pneg %p175
        %p494 = pneg %p199
        %p495 = pneg %p196
        %p496 = pneg %p220
        %p497 = pneg %p217
        %p498 = pneg %p241
        %p499 = pneg %p238
        %p500 = pneg %p262
        %p501 = pneg %p259
        %p502 = pneg %p283
        %p503 = pneg %p280
        %p504 = pneg %p313
        %p505 = pneg %p310
        %s506 = sand.u32 %s300, 1
        %s507 = scalar_lea.sflag [#allocation4], %s506
        %s508 = sand.u32 %s300, 1
        %s509 = smul.addr %s508, 128
        %s510 = scalar_lea.vmem [#allocation13], %s509
        %s511 = smul.u32 %s35, 2
        %s512 = sadd.s32 %s511, %s36
        %p513 = scmp.lt.s32.totalorder %s35, 1
        %s514 = scalar_select %p513, %s35, 1
        %s515 = scalar_lea.vmem %s1, %s514
        %s516 = smul.u32 %s35, 2
        %s517 = sadd.s32 %s516, %s36
        %v519 = vld [vmem:[%s449] sm:$0xf]
        %v520 = vld [vmem:[%s449 + $0x4] sm:$0xf]
        %v521 = vld [vmem:[%s449 + $0x8] sm:$0xf]
        %v522 = vld [vmem:[%s449 + $0xc] sm:$0xf]
        %v523 = vld [vmem:[%s449 + $0x10] sm:$0xf]
        %v524 = vld [vmem:[%s449 + $0x14] sm:$0xf]
        %v525 = vld [vmem:[%s449 + $0x18] sm:$0xf]
        %v526 = vld [vmem:[%s449 + $0x1c] sm:$0xf]
        %v527 = vld [vmem:[%s449 + $0x20] sm:$0xf]
        %v528 = vld [vmem:[%s449 + $0x24] sm:$0xf]
        %v529 = vld [vmem:[%s449 + $0x28] sm:$0xf]
        %v530 = vld [vmem:[%s449 + $0x2c] sm:$0xf]
        %v531 = vld [vmem:[%s449 + $0x30] sm:$0xf]
        %v532 = vld [vmem:[%s449 + $0x34] sm:$0xf]
        %v533 = vld [vmem:[%s449 + $0x38] sm:$0xf]
        %v534 = vld [vmem:[%s449 + $0x3c] sm:$0xf]
        %v535 = vld [vmem:[%s449 + $0x40] sm:$0xf]
        %v536 = vld [vmem:[%s449 + $0x44] sm:$0xf]
        %v537 = vld [vmem:[%s449 + $0x48] sm:$0xf]
        %v538 = vld [vmem:[%s449 + $0x4c] sm:$0xf]
        %v539 = vld [vmem:[%s449 + $0x50] sm:$0xf]
        %v540 = vld [vmem:[%s449 + $0x54] sm:$0xf]
        %v541 = vld [vmem:[%s449 + $0x58] sm:$0xf]
        %v542 = vld [vmem:[%s449 + $0x5c] sm:$0xf]
        %v543 = vld [vmem:[%s449 + $0x60] sm:$0xf]
        %v544 = vld [vmem:[%s449 + $0x64] sm:$0xf]
        %v545 = vld [vmem:[%s449 + $0x68] sm:$0xf]
        %v546 = vld [vmem:[%s449 + $0x6c] sm:$0xf]
        %v547 = vld [vmem:[%s449 + $0x70] sm:$0xf]
        %v548 = vld [vmem:[%s449 + $0x74] sm:$0xf]
        %v549 = vld [vmem:[%s449 + $0x78] sm:$0xf]
        %v550 = vld [vmem:[%s449 + $0x7c] sm:$0xf]
        %v551 = vld [vmem:[%s449 + $0x80] sm:$0xf]
        %v552 = vld [vmem:[%s449 + $0x84] sm:$0xf]
        %v553 = vld [vmem:[%s449 + $0x88] sm:$0xf]
        %v554 = vld [vmem:[%s449 + $0x8c] sm:$0xf]
        %v555 = vld [vmem:[%s449 + $0x90] sm:$0xf]
        %v556 = vld [vmem:[%s449 + $0x94] sm:$0xf]
        %v557 = vld [vmem:[%s449 + $0x98] sm:$0xf]
        %v558 = vld [vmem:[%s449 + $0x9c] sm:$0xf]
        %v559 = vld [vmem:[%s449 + $0xa0] sm:$0xf]
        %v560 = vld [vmem:[%s449 + $0xa4] sm:$0xf]
        %v561 = vld [vmem:[%s449 + $0xa8] sm:$0xf]
        %v562 = vld [vmem:[%s449 + $0xac] sm:$0xf]
        %v563 = vld [vmem:[%s449 + $0xb0] sm:$0xf]
        %v564 = vld [vmem:[%s449 + $0xb4] sm:$0xf]
        %v565 = vld [vmem:[%s449 + $0xb8] sm:$0xf]
        %v566 = vld [vmem:[%s449 + $0xbc] sm:$0xf]
        %v567 = vld [vmem:[%s6] sm:$0xf]
        %v568 = vld [vmem:[%s7] sm:$0xf]
        %vm593 = vcmask 1041408
        %vm594 = vcmask 1045508
        %vm595 = vmor %vm593, %vm594
        %v596 = vrot.slane %v531, 6
        %v597 = vrot.slane %v596, 4
        %v598 = vrot.slane %v532, 6
        %v599 = vsel %vm595, %v597, %v598
        %v600 = vrot.slane %v598, 4
        %v601 = vrot.slane %v533, 6
        %v602 = vsel %vm595, %v600, %v601
        %v603 = vrot.slane %v534, 6
        %v604 = vrot.slane %v603, 4
        %v605 = vrot.slane %v535, 6
        %v606 = vsel %vm595, %v604, %v605
        %v607 = vrot.slane %v605, 4
        %v608 = vrot.slane %v536, 6
        %v609 = vsel %vm595, %v607, %v608
        %v610 = vrot.slane %v537, 6
        %v611 = vrot.slane %v610, 4
        %v612 = vrot.slane %v538, 6
        %v613 = vsel %vm595, %v611, %v612
        %v614 = vrot.slane %v612, 4
        %v615 = vrot.slane %v539, 6
        %v616 = vsel %vm595, %v614, %v615
        %v617 = vrot.slane %v540, 6
        %v618 = vrot.slane %v617, 4
        %v619 = vrot.slane %v541, 6
        %v620 = vsel %vm595, %v618, %v619
        %v621 = vrot.slane %v619, 4
        %v622 = vrot.slane %v542, 6
        %v623 = vsel %vm595, %v621, %v622
        %v624 = vrot.slane %v543, 6
        %v625 = vrot.slane %v624, 4
        %v626 = vrot.slane %v544, 6
        %v627 = vsel %vm595, %v625, %v626
        %v628 = vrot.slane %v626, 4
        %v629 = vrot.slane %v545, 6
        %v630 = vsel %vm595, %v628, %v629
        %v631 = vrot.slane %v546, 6
        %v632 = vrot.slane %v631, 4
        %v633 = vrot.slane %v547, 6
        %v634 = vsel %vm595, %v632, %v633
        %v635 = vrot.slane %v633, 4
        %v636 = vrot.slane %v548, 6
        %v637 = vsel %vm595, %v635, %v636
        %v638 = vrot.slane %v549, 6
        %v639 = vrot.slane %v638, 4
        %v640 = vrot.slane %v550, 6
        %v641 = vsel %vm595, %v639, %v640
        %v642 = vrot.slane %v640, 4
        %v643 = vrot.slane %v551, 6
        %v644 = vsel %vm595, %v642, %v643
        %v645 = vrot.slane %v552, 6
        %v646 = vrot.slane %v645, 4
        %v647 = vrot.slane %v553, 6
        %v648 = vsel %vm595, %v646, %v647
        %v649 = vrot.slane %v647, 4
        %v650 = vrot.slane %v554, 6
        %v651 = vsel %vm595, %v649, %v650
        %v652 = vld [vmem:[#allocation5] sm:$0xf]
        %v653 = vld [vmem:[#allocation5 + $0x4] sm:$0xf]
        %v654 = vld [vmem:[#allocation5 + $0x8] sm:$0xf]
        %v655 = vld [vmem:[#allocation5 + $0xc] sm:$0xf]
        %v656 = vld [vmem:[#allocation5 + $0x10] sm:$0xf]
        %v657 = vld [vmem:[#allocation5 + $0x14] sm:$0xf]
        %v658 = vld [vmem:[#allocation5 + $0x18] sm:$0xf]
        %v659 = vld [vmem:[#allocation5 + $0x1c] sm:$0xf]
        %v660 = vld [vmem:[#allocation5 + $0x20] sm:$0xf]
        %v661 = vld [vmem:[#allocation5 + $0x24] sm:$0xf]
        %v662 = vld [vmem:[#allocation5 + $0x28] sm:$0xf]
        %v663 = vld [vmem:[#allocation5 + $0x2c] sm:$0xf]
        %v664 = vld [vmem:[#allocation5 + $0x30] sm:$0xf]
        %v665 = vld [vmem:[#allocation5 + $0x34] sm:$0xf]
        %v666 = vld [vmem:[#allocation5 + $0x38] sm:$0xf]
        %v667 = vld [vmem:[#allocation5 + $0x3c] sm:$0xf]
        %v668 = vunpack.c.l.b16 %v599
        %v669 = vunpack.c.l.b16 %v602
        %v670 = vunpack.c.l.b16 %v606
        %v671 = vunpack.c.l.b16 %v609
        %v672 = vunpack.c.l.b16 %v613
        %v673 = vunpack.c.l.b16 %v616
        %v674 = vunpack.c.l.b16 %v620
        %v675 = vunpack.c.l.b16 %v623
        %v676 = vunpack.c.l.b16 %v627
        %v677 = vunpack.c.l.b16 %v630
        %v678 = vunpack.c.l.b16 %v634
        %v679 = vunpack.c.l.b16 %v637
        %v680 = vunpack.c.l.b16 %v641
        %v681 = vunpack.c.l.b16 %v644
        %v682 = vunpack.c.l.b16 %v648
        %v683 = vunpack.c.l.b16 %v651
        %v684 = vpack.c.b16 %v669, %v668
        %v685 = vpack.c.b16 %v671, %v670
        %v686 = vpack.c.b16 %v673, %v672
        %v687 = vpack.c.b16 %v675, %v674
        %v688 = vpack.c.b16 %v677, %v676
        %v689 = vpack.c.b16 %v679, %v678
        %v690 = vpack.c.b16 %v681, %v680
        %v691 = vpack.c.b16 %v683, %v682
        %v716 = vunpack.c.l.b16 %v652
        %v717 = vunpack.c.l.b16 %v653
        %v718 = vunpack.c.l.b16 %v654
        %v719 = vunpack.c.l.b16 %v655
        %v720 = vunpack.c.l.b16 %v656
        %v721 = vunpack.c.l.b16 %v657
        %v722 = vunpack.c.l.b16 %v658
        %v723 = vunpack.c.l.b16 %v659
        %v724 = vunpack.c.l.b16 %v660
        %v725 = vunpack.c.l.b16 %v661
        %v726 = vunpack.c.l.b16 %v662
        %v727 = vunpack.c.l.b16 %v663
        %v728 = vunpack.c.l.b16 %v664
        %v729 = vunpack.c.l.b16 %v665
        %v730 = vunpack.c.l.b16 %v666
        %v731 = vunpack.c.l.b16 %v667
        %v732 = vpack.c.b16 %v717, %v716
        %v733 = vpack.c.b16 %v719, %v718
        %v734 = vpack.c.b16 %v721, %v720
        %v735 = vpack.c.b16 %v723, %v722
        %v736 = vpack.c.b16 %v725, %v724
        %v737 = vpack.c.b16 %v727, %v726
        %v738 = vpack.c.b16 %v729, %v728
        %v739 = vpack.c.b16 %v731, %v730
        %748 = vmatprep.subr.bf16.mxu0 0
        %749 = vmatpush1.bf16.msra.mxu0 %v739
        %750 = vmatprep.subr.bf16.mxu0 0
        %751 = vmatpush1.bf16.msra.mxu0 %v738
        %752 = vmatprep.subr.bf16.mxu0 0
        %753 = vmatpush1.bf16.msra.mxu0 %v737
        %754 = vmatprep.subr.bf16.mxu0 0
        %755 = vmatpush1.bf16.msra.mxu0 %v736
        %756 = vmatprep.subr.bf16.mxu0 0
        %757 = vmatpush1.bf16.msra.mxu0 %v735
        %758 = vmatprep.subr.bf16.mxu0 0
        %759 = vmatpush1.bf16.msra.mxu0 %v734
        %760 = vmatprep.subr.bf16.mxu0 0
        %761 = vmatpush1.bf16.msra.mxu0 %v733
        %762 = vmatprep.subr.bf16.mxu0 0
        %763 = vmatpush1.bf16.msra.mxu0 %v732
        %764 = vmatprep.subr.bf16.mxu0 0
        %765 = vmatpush2.bf16.msra.mxu0 0
        %766 = vmatprep.subr.bf16.mxu0 0
        %767 = vmatpush2.bf16.msra.mxu0 0
        %768 = vmatprep.subr.bf16.mxu0 0
        %769 = vmatpush2.bf16.msra.mxu0 0
        %770 = vmatprep.subr.bf16.mxu0 0
        %771 = vmatpush2.bf16.msra.mxu0 0
        %772 = vmatprep.subr.bf16.mxu0 0
        %773 = vmatpush2.bf16.msra.mxu0 0
        %774 = vmatprep.subr.bf16.mxu0 0
        %775 = vmatpush2.bf16.msra.mxu0 0
        %776 = vmatprep.subr.bf16.mxu0 0
        %777 = vmatpush2.bf16.msra.mxu0 0
        %778 = vmatprep.subr.bf16.mxu0 0
        %779 = vmatpush2.bf16.msra.mxu0 0
        %780 = vmatprep.mubr.bf16.mxu0 0
        %781 = vmatmul.mubr.bf16.gmra.mxu0 %v684
        %v782 = vpop.f32.mrf.mxu0
        %v783 = vadd.f32 0.0, %v782
        %v784 = vpop.f32.mrf.mxu0
        %v785 = vpop.f32.mrf.mxu0
        %v786 = vadd.f32 0.0, %v785
        %v787 = vpop.f32.mrf.mxu0
        %788 = vmatprep.mubr.bf16.mxu0 0
        %789 = vmatmul.mubr.bf16.gmra.mxu0 %v685
        %v790 = vpop.f32.mrf.mxu0
        %v791 = vadd.f32 0.0, %v790
        %v792 = vpop.f32.mrf.mxu0
        %v793 = vpop.f32.mrf.mxu0
        %v794 = vadd.f32 0.0, %v793
        %v795 = vpop.f32.mrf.mxu0
        %796 = vmatprep.mubr.bf16.mxu0 0
        %797 = vmatmul.mubr.bf16.gmra.mxu0 %v686
        %v798 = vpop.f32.mrf.mxu0
        %v799 = vadd.f32 0.0, %v798
        %v800 = vpop.f32.mrf.mxu0
        %v801 = vpop.f32.mrf.mxu0
        %v802 = vadd.f32 0.0, %v801
        %v803 = vpop.f32.mrf.mxu0
        %804 = vmatprep.mubr.bf16.mxu0 0
        %805 = vmatmul.mubr.bf16.gmra.mxu0 %v687
        %v806 = vpop.f32.mrf.mxu0
        %v807 = vadd.f32 0.0, %v806
        %v808 = vpop.f32.mrf.mxu0
        %v809 = vpop.f32.mrf.mxu0
        %v810 = vadd.f32 0.0, %v809
        %v811 = vpop.f32.mrf.mxu0
        %812 = vmatprep.mubr.bf16.mxu0 0
        %813 = vmatmul.mubr.bf16.gmra.mxu0 %v688
        %v814 = vpop.f32.mrf.mxu0
        %v815 = vadd.f32 0.0, %v814
        %v816 = vpop.f32.mrf.mxu0
        %v817 = vpop.f32.mrf.mxu0
        %v818 = vadd.f32 0.0, %v817
        %v819 = vpop.f32.mrf.mxu0
        %820 = vmatprep.mubr.bf16.mxu0 0
        %821 = vmatmul.mubr.bf16.gmra.mxu0 %v689
        %v822 = vpop.f32.mrf.mxu0
        %v823 = vadd.f32 0.0, %v822
        %v824 = vpop.f32.mrf.mxu0
        %v825 = vpop.f32.mrf.mxu0
        %v826 = vadd.f32 0.0, %v825
        %v827 = vpop.f32.mrf.mxu0
        %828 = vmatprep.mubr.bf16.mxu0 0
        %829 = vmatmul.mubr.bf16.gmra.mxu0 %v690
        %v830 = vpop.f32.mrf.mxu0
        %v831 = vadd.f32 0.0, %v830
        %v832 = vpop.f32.mrf.mxu0
        %v833 = vpop.f32.mrf.mxu0
        %v834 = vadd.f32 0.0, %v833
        %v835 = vpop.f32.mrf.mxu0
        %836 = vmatprep.mubr.bf16.mxu0 0
        %837 = vmatmul.mubr.bf16.gmra.mxu0 %v691
        %v838 = vpop.f32.mrf.mxu0
        %v839 = vadd.f32 0.0, %v838
        %v840 = vpop.f32.mrf.mxu0
        %v841 = vpop.f32.mrf.mxu0
        %v842 = vadd.f32 0.0, %v841
        %v843 = vpop.f32.mrf.mxu0
        %844 = vdwg.mxu0
        %v845 = vlaneseq
        %v846 = vshrl.u32 %v845, 7
        %v847 = vsub.s32 0, %v846
        %v848 = vrot.slane %v567, %v847
        %v849 = vmul.f32 %v783, %v848
        %v850 = vmul.f32 %v786, %v848
        %v851 = vmul.f32 %v791, %v848
        %v852 = vmul.f32 %v794, %v848
        %v853 = vmul.f32 %v799, %v848
        %v854 = vmul.f32 %v802, %v848
        %v855 = vmul.f32 %v807, %v848
        %v856 = vmul.f32 %v810, %v848
        %v857 = vmul.f32 %v815, %v848
        %v858 = vmul.f32 %v818, %v848
        %v859 = vmul.f32 %v823, %v848
        %v860 = vmul.f32 %v826, %v848
        %v861 = vmul.f32 %v831, %v848
        %v862 = vmul.f32 %v834, %v848
        %v863 = vmul.f32 %v839, %v848
        %v864 = vmul.f32 %v842, %v848
        %v865 = vlaneseq
        %v866 = vshrl.u32 %v865, 7
        %v867 = vsub.s32 0, %v866
        %v868 = vrot.slane %v568, %v867
        %v869 = vadd.f32 %v849, %v868
        %v870 = vadd.f32 %v850, %v868
        %v871 = vadd.f32 %v851, %v868
        %v872 = vadd.f32 %v852, %v868
        %v873 = vadd.f32 %v853, %v868
        %v874 = vadd.f32 %v854, %v868
        %v875 = vadd.f32 %v855, %v868
        %v876 = vadd.f32 %v856, %v868
        %v877 = vadd.f32 %v857, %v868
        %v878 = vadd.f32 %v858, %v868
        %v879 = vadd.f32 %v859, %v868
        %v880 = vadd.f32 %v860, %v868
        %v881 = vadd.f32 %v861, %v868
        %v882 = vadd.f32 %v862, %v868
        %v883 = vadd.f32 %v863, %v868
        %v884 = vadd.f32 %v864, %v868
        %v885 = vmax.f32 %v869, 0.0
        %v886 = vmax.f32 %v870, 0.0
        %v887 = vmax.f32 %v871, 0.0
        %v888 = vmax.f32 %v872, 0.0
        %v889 = vmax.f32 %v873, 0.0
        %v890 = vmax.f32 %v874, 0.0
        %v891 = vmax.f32 %v875, 0.0
        %v892 = vmax.f32 %v876, 0.0
        %v893 = vmax.f32 %v877, 0.0
        %v894 = vmax.f32 %v878, 0.0
        %v895 = vmax.f32 %v879, 0.0
        %v896 = vmax.f32 %v880, 0.0
        %v897 = vmax.f32 %v881, 0.0
        %v898 = vmax.f32 %v882, 0.0
        %v899 = vmax.f32 %v883, 0.0
        %v900 = vmax.f32 %v884, 0.0
        %v901 = vpack.c.bf16 %v886, %v885
        %v902 = vpack.c.bf16 %v888, %v887
        %v903 = vpack.c.bf16 %v890, %v889
        %v904 = vpack.c.bf16 %v892, %v891
        %v905 = vpack.c.bf16 %v894, %v893
        %v906 = vpack.c.bf16 %v896, %v895
        %v907 = vpack.c.bf16 %v898, %v897
        %v908 = vpack.c.bf16 %v900, %v899
        %v909 = vld [vmem:[#allocation11] sm:$0xf]
        %v910 = vld [vmem:[#allocation11 + $0x4] sm:$0xf]
        %v911 = vld [vmem:[#allocation11 + $0x8] sm:$0xf]
        %v912 = vld [vmem:[#allocation11 + $0xc] sm:$0xf]
        %v913 = vld [vmem:[#allocation11 + $0x10] sm:$0xf]
        %v914 = vld [vmem:[#allocation11 + $0x14] sm:$0xf]
        %v915 = vld [vmem:[#allocation11 + $0x18] sm:$0xf]
        %v916 = vld [vmem:[#allocation11 + $0x1c] sm:$0xf]
        %v917 = vld [vmem:[#allocation11 + $0x20] sm:$0xf]
        %v918 = vld [vmem:[#allocation11 + $0x24] sm:$0xf]
        %v919 = vld [vmem:[#allocation11 + $0x28] sm:$0xf]
        %v920 = vld [vmem:[#allocation11 + $0x2c] sm:$0xf]
        %v921 = vld [vmem:[#allocation11 + $0x30] sm:$0xf]
        %v922 = vld [vmem:[#allocation11 + $0x34] sm:$0xf]
        %v923 = vld [vmem:[#allocation11 + $0x38] sm:$0xf]
        %v924 = vld [vmem:[#allocation11 + $0x3c] sm:$0xf]
        %vm931 = vcmask 1042432
        %vm932 = vcmask 1046532
        %vm933 = vmor %vm931, %vm932
        %v934 = vrot.slane %v525, 5
        %v935 = vrot.slane %v934, 4
        %v936 = vrot.slane %v526, 5
        %v937 = vsel %vm933, %v935, %v936
        %v938 = vrot.slane %v936, 4
        %v939 = vrot.slane %v527, 5
        %v940 = vsel %vm933, %v938, %v939
        %v941 = vrot.slane %v528, 5
        %v942 = vrot.slane %v941, 4
        %v943 = vrot.slane %v529, 5
        %v944 = vsel %vm933, %v942, %v943
        %v945 = vrot.slane %v943, 4
        %v946 = vrot.slane %v530, 5
        %v947 = vsel %vm933, %v945, %v946
        %v948 = vrot.slane %v531, 5
        %v949 = vrot.slane %v948, 4
        %v950 = vrot.slane %v532, 5
        %v951 = vsel %vm933, %v949, %v950
        %v952 = vrot.slane %v950, 4
        %v953 = vrot.slane %v533, 5
        %v954 = vsel %vm933, %v952, %v953
        %v955 = vrot.slane %v534, 5
        %v956 = vrot.slane %v955, 4
        %v957 = vrot.slane %v535, 5
        %v958 = vsel %vm933, %v956, %v957
        %v959 = vrot.slane %v957, 4
        %v960 = vrot.slane %v536, 5
        %v961 = vsel %vm933, %v959, %v960
        %v962 = vrot.slane %v537, 5
        %v963 = vrot.slane %v962, 4
        %v964 = vrot.slane %v538, 5
        %v965 = vsel %vm933, %v963, %v964
        %v966 = vrot.slane %v964, 4
        %v967 = vrot.slane %v539, 5
        %v968 = vsel %vm933, %v966, %v967
        %v969 = vrot.slane %v540, 5
        %v970 = vrot.slane %v969, 4
        %v971 = vrot.slane %v541, 5
        %v972 = vsel %vm933, %v970, %v971
        %v973 = vrot.slane %v971, 4
        %v974 = vrot.slane %v542, 5
        %v975 = vsel %vm933, %v973, %v974
        %v976 = vrot.slane %v543, 5
        %v977 = vrot.slane %v976, 4
        %v978 = vrot.slane %v544, 5
        %v979 = vsel %vm933, %v977, %v978
        %v980 = vrot.slane %v978, 4
        %v981 = vrot.slane %v545, 5
        %v982 = vsel %vm933, %v980, %v981
        %v983 = vrot.slane %v546, 5
        %v984 = vrot.slane %v983, 4
        %v985 = vrot.slane %v547, 5
        %v986 = vsel %vm933, %v984, %v985
        %v987 = vrot.slane %v985, 4
        %v988 = vrot.slane %v548, 5
        %v989 = vsel %vm933, %v987, %v988
        %v990 = vld [vmem:[#allocation7] sm:$0xf]
        %v991 = vld [vmem:[#allocation7 + $0x4] sm:$0xf]
        %v992 = vld [vmem:[#allocation7 + $0x8] sm:$0xf]
        %v993 = vld [vmem:[#allocation7 + $0xc] sm:$0xf]
        %v994 = vld [vmem:[#allocation7 + $0x10] sm:$0xf]
        %v995 = vld [vmem:[#allocation7 + $0x14] sm:$0xf]
        %v996 = vld [vmem:[#allocation7 + $0x18] sm:$0xf]
        %v997 = vld [vmem:[#allocation7 + $0x1c] sm:$0xf]
        %v998 = vld [vmem:[#allocation7 + $0x20] sm:$0xf]
        %v999 = vld [vmem:[#allocation7 + $0x24] sm:$0xf]
        %v1000 = vld [vmem:[#allocation7 + $0x28] sm:$0xf]
        %v1001 = vld [vmem:[#allocation7 + $0x2c] sm:$0xf]
        %v1002 = vld [vmem:[#allocation7 + $0x30] sm:$0xf]
        %v1003 = vld [vmem:[#allocation7 + $0x34] sm:$0xf]
        %v1004 = vld [vmem:[#allocation7 + $0x38] sm:$0xf]
        %v1005 = vld [vmem:[#allocation7 + $0x3c] sm:$0xf]
        %v1006 = vrot.slane %v525, 6
        %v1007 = vrot.slane %v1006, 4
        %v1008 = vrot.slane %v526, 6
        %v1009 = vsel %vm595, %v1007, %v1008
        %v1010 = vrot.slane %v1008, 4
        %v1011 = vrot.slane %v527, 6
        %v1012 = vsel %vm595, %v1010, %v1011
        %v1013 = vrot.slane %v528, 6
        %v1014 = vrot.slane %v1013, 4
        %v1015 = vrot.slane %v529, 6
        %v1016 = vsel %vm595, %v1014, %v1015
        %v1017 = vrot.slane %v1015, 4
        %v1018 = vrot.slane %v530, 6
        %v1019 = vsel %vm595, %v1017, %v1018
        %s1020 = scalar_lea.vmem [#allocation7], 64
        %v1021 = vld [vmem:[%s1020] sm:$0xf]
        %v1022 = vld [vmem:[%s1020 + $0x4] sm:$0xf]
        %v1023 = vld [vmem:[%s1020 + $0x8] sm:$0xf]
        %v1024 = vld [vmem:[%s1020 + $0xc] sm:$0xf]
        %v1025 = vld [vmem:[%s1020 + $0x10] sm:$0xf]
        %v1026 = vld [vmem:[%s1020 + $0x14] sm:$0xf]
        %v1027 = vld [vmem:[%s1020 + $0x18] sm:$0xf]
        %v1028 = vld [vmem:[%s1020 + $0x1c] sm:$0xf]
        %v1029 = vld [vmem:[%s1020 + $0x20] sm:$0xf]
        %v1030 = vld [vmem:[%s1020 + $0x24] sm:$0xf]
        %v1031 = vld [vmem:[%s1020 + $0x28] sm:$0xf]
        %v1032 = vld [vmem:[%s1020 + $0x2c] sm:$0xf]
        %v1033 = vld [vmem:[%s1020 + $0x30] sm:$0xf]
        %v1034 = vld [vmem:[%s1020 + $0x34] sm:$0xf]
        %v1035 = vld [vmem:[%s1020 + $0x38] sm:$0xf]
        %v1036 = vld [vmem:[%s1020 + $0x3c] sm:$0xf]
        %v1037 = vunpack.c.l.b16 %v1009
        %v1038 = vunpack.c.l.b16 %v1012
        %v1039 = vunpack.c.l.b16 %v1016
        %v1040 = vunpack.c.l.b16 %v1019
        %v1041 = vpack.c.b16 %v1038, %v1037
        %v1042 = vpack.c.b16 %v1040, %v1039
        %v1061 = vunpack.c.l.b16 %v1021
        %v1062 = vunpack.c.l.b16 %v1022
        %v1063 = vunpack.c.l.b16 %v1023
        %v1064 = vunpack.c.l.b16 %v1024
        %v1065 = vunpack.c.l.b16 %v1025
        %v1066 = vunpack.c.l.b16 %v1026
        %v1067 = vunpack.c.l.b16 %v1027
        %v1068 = vunpack.c.l.b16 %v1028
        %v1069 = vunpack.c.l.b16 %v1029
        %v1070 = vunpack.c.l.b16 %v1030
        %v1071 = vunpack.c.l.b16 %v1031
        %v1072 = vunpack.c.l.b16 %v1032
        %v1073 = vunpack.c.l.b16 %v1033
        %v1074 = vunpack.c.l.b16 %v1034
        %v1075 = vunpack.c.l.b16 %v1035
        %v1076 = vunpack.c.l.b16 %v1036
        %v1077 = vpack.c.b16 %v1062, %v1061
        %v1078 = vpack.c.b16 %v1064, %v1063
        %v1079 = vpack.c.b16 %v1066, %v1065
        %v1080 = vpack.c.b16 %v1068, %v1067
        %v1081 = vpack.c.b16 %v1070, %v1069
        %v1082 = vpack.c.b16 %v1072, %v1071
        %v1083 = vpack.c.b16 %v1074, %v1073
        %v1084 = vpack.c.b16 %v1076, %v1075
        %1093 = vmatprep.subr.bf16.mxu0 0
        %1094 = vmatpush1.bf16.msra.mxu0 %v1084
        %1095 = vmatprep.subr.bf16.mxu0 0
        %1096 = vmatpush1.bf16.msra.mxu0 %v1083
        %1097 = vmatprep.subr.bf16.mxu0 0
        %1098 = vmatpush1.bf16.msra.mxu0 %v1082
        %1099 = vmatprep.subr.bf16.mxu0 0
        %1100 = vmatpush1.bf16.msra.mxu0 %v1081
        %1101 = vmatprep.subr.bf16.mxu0 0
        %1102 = vmatpush1.bf16.msra.mxu0 %v1080
        %1103 = vmatprep.subr.bf16.mxu0 0
        %1104 = vmatpush1.bf16.msra.mxu0 %v1079
        %1105 = vmatprep.subr.bf16.mxu0 0
        %1106 = vmatpush1.bf16.msra.mxu0 %v1078
        %1107 = vmatprep.subr.bf16.mxu0 0
        %1108 = vmatpush1.bf16.msra.mxu0 %v1077
        %1109 = vmatprep.subr.bf16.mxu0 0
        %1110 = vmatpush2.bf16.msra.mxu0 0
        %1111 = vmatprep.subr.bf16.mxu0 0
        %1112 = vmatpush2.bf16.msra.mxu0 0
        %1113 = vmatprep.subr.bf16.mxu0 0
        %1114 = vmatpush2.bf16.msra.mxu0 0
        %1115 = vmatprep.subr.bf16.mxu0 0
        %1116 = vmatpush2.bf16.msra.mxu0 0
        %1117 = vmatprep.subr.bf16.mxu0 0
        %1118 = vmatpush2.bf16.msra.mxu0 0
        %1119 = vmatprep.subr.bf16.mxu0 0
        %1120 = vmatpush2.bf16.msra.mxu0 0
        %1121 = vmatprep.subr.bf16.mxu0 0
        %1122 = vmatpush2.bf16.msra.mxu0 0
        %1123 = vmatprep.subr.bf16.mxu0 0
        %1124 = vmatpush2.bf16.msra.mxu0 0
        %1125 = vmatprep.mubr.bf16.mxu0 0
        %1126 = vmatmul.mubr.bf16.gmra.mxu0 %v1041
        %v1127 = vpop.f32.mrf.mxu0
        %v1128 = vadd.f32 0.0, %v1127
        %v1129 = vpop.f32.mrf.mxu0
        %v1130 = vpop.f32.mrf.mxu0
        %v1131 = vadd.f32 0.0, %v1130
        %v1132 = vpop.f32.mrf.mxu0
        %1133 = vmatprep.mubr.bf16.mxu0 0
        %1134 = vmatmul.mubr.bf16.gmra.mxu0 %v1042
        %v1135 = vpop.f32.mrf.mxu0
        %v1136 = vadd.f32 0.0, %v1135
        %v1137 = vpop.f32.mrf.mxu0
        %v1138 = vpop.f32.mrf.mxu0
        %v1139 = vadd.f32 0.0, %v1138
        %v1140 = vpop.f32.mrf.mxu0
        %1141 = vmatprep.mubr.bf16.mxu0 0
        %1142 = vmatmul.mubr.bf16.gmra.mxu0 %v684
        %v1143 = vpop.f32.mrf.mxu0
        %v1144 = vadd.f32 0.0, %v1143
        %v1145 = vpop.f32.mrf.mxu0
        %v1146 = vpop.f32.mrf.mxu0
        %v1147 = vadd.f32 0.0, %v1146
        %v1148 = vpop.f32.mrf.mxu0
        %1149 = vmatprep.mubr.bf16.mxu0 0
        %1150 = vmatmul.mubr.bf16.gmra.mxu0 %v685
        %v1151 = vpop.f32.mrf.mxu0
        %v1152 = vadd.f32 0.0, %v1151
        %v1153 = vpop.f32.mrf.mxu0
        %v1154 = vpop.f32.mrf.mxu0
        %v1155 = vadd.f32 0.0, %v1154
        %v1156 = vpop.f32.mrf.mxu0
        %1157 = vmatprep.mubr.bf16.mxu0 0
        %1158 = vmatmul.mubr.bf16.gmra.mxu0 %v686
        %v1159 = vpop.f32.mrf.mxu0
        %v1160 = vadd.f32 0.0, %v1159
        %v1161 = vpop.f32.mrf.mxu0
        %v1162 = vpop.f32.mrf.mxu0
        %v1163 = vadd.f32 0.0, %v1162
        %v1164 = vpop.f32.mrf.mxu0
        %1165 = vmatprep.mubr.bf16.mxu0 0
        %1166 = vmatmul.mubr.bf16.gmra.mxu0 %v687
        %v1167 = vpop.f32.mrf.mxu0
        %v1168 = vadd.f32 0.0, %v1167
        %v1169 = vpop.f32.mrf.mxu0
        %v1170 = vpop.f32.mrf.mxu0
        %v1171 = vadd.f32 0.0, %v1170
        %v1172 = vpop.f32.mrf.mxu0
        %1173 = vmatprep.mubr.bf16.mxu0 0
        %1174 = vmatmul.mubr.bf16.gmra.mxu0 %v688
        %v1175 = vpop.f32.mrf.mxu0
        %v1176 = vadd.f32 0.0, %v1175
        %v1177 = vpop.f32.mrf.mxu0
        %v1178 = vpop.f32.mrf.mxu0
        %v1179 = vadd.f32 0.0, %v1178
        %v1180 = vpop.f32.mrf.mxu0
        %1181 = vmatprep.mubr.bf16.mxu0 0
        %1182 = vmatmul.mubr.bf16.gmra.mxu0 %v689
        %v1183 = vpop.f32.mrf.mxu0
        %v1184 = vadd.f32 0.0, %v1183
        %v1185 = vpop.f32.mrf.mxu0
        %v1186 = vpop.f32.mrf.mxu0
        %v1187 = vadd.f32 0.0, %v1186
        %v1188 = vpop.f32.mrf.mxu0
        %1189 = vdwg.mxu0
        %v1190 = vunpack.c.l.b16 %v937
        %v1191 = vunpack.c.l.b16 %v940
        %v1192 = vunpack.c.l.b16 %v944
        %v1193 = vunpack.c.l.b16 %v947
        %v1194 = vunpack.c.l.b16 %v951
        %v1195 = vunpack.c.l.b16 %v954
        %v1196 = vunpack.c.l.b16 %v958
        %v1197 = vunpack.c.l.b16 %v961
        %v1198 = vunpack.c.l.b16 %v965
        %v1199 = vunpack.c.l.b16 %v968
        %v1200 = vunpack.c.l.b16 %v972
        %v1201 = vunpack.c.l.b16 %v975
        %v1202 = vunpack.c.l.b16 %v979
        %v1203 = vunpack.c.l.b16 %v982
        %v1204 = vunpack.c.l.b16 %v986
        %v1205 = vunpack.c.l.b16 %v989
        %v1206 = vpack.c.b16 %v1191, %v1190
        %v1207 = vpack.c.b16 %v1193, %v1192
        %v1208 = vpack.c.b16 %v1195, %v1194
        %v1209 = vpack.c.b16 %v1197, %v1196
        %v1210 = vpack.c.b16 %v1199, %v1198
        %v1211 = vpack.c.b16 %v1201, %v1200
        %v1212 = vpack.c.b16 %v1203, %v1202
        %v1213 = vpack.c.b16 %v1205, %v1204
        %v1238 = vunpack.c.l.b16 %v990
        %v1239 = vunpack.c.l.b16 %v991
        %v1240 = vunpack.c.l.b16 %v992
        %v1241 = vunpack.c.l.b16 %v993
        %v1242 = vunpack.c.l.b16 %v994
        %v1243 = vunpack.c.l.b16 %v995
        %v1244 = vunpack.c.l.b16 %v996
        %v1245 = vunpack.c.l.b16 %v997
        %v1246 = vunpack.c.l.b16 %v998
        %v1247 = vunpack.c.l.b16 %v999
        %v1248 = vunpack.c.l.b16 %v1000
        %v1249 = vunpack.c.l.b16 %v1001
        %v1250 = vunpack.c.l.b16 %v1002
        %v1251 = vunpack.c.l.b16 %v1003
        %v1252 = vunpack.c.l.b16 %v1004
        %v1253 = vunpack.c.l.b16 %v1005
        %v1254 = vpack.c.b16 %v1239, %v1238
        %v1255 = vpack.c.b16 %v1241, %v1240
        %v1256 = vpack.c.b16 %v1243, %v1242
        %v1257 = vpack.c.b16 %v1245, %v1244
        %v1258 = vpack.c.b16 %v1247, %v1246
        %v1259 = vpack.c.b16 %v1249, %v1248
        %v1260 = vpack.c.b16 %v1251, %v1250
        %v1261 = vpack.c.b16 %v1253, %v1252
        %1270 = vmatprep.subr.bf16.mxu0 0
        %1271 = vmatpush1.bf16.msra.mxu0 %v1261
        %1272 = vmatprep.subr.bf16.mxu0 0
        %1273 = vmatpush1.bf16.msra.mxu0 %v1260
        %1274 = vmatprep.subr.bf16.mxu0 0
        %1275 = vmatpush1.bf16.msra.mxu0 %v1259
        %1276 = vmatprep.subr.bf16.mxu0 0
        %1277 = vmatpush1.bf16.msra.mxu0 %v1258
        %1278 = vmatprep.subr.bf16.mxu0 0
        %1279 = vmatpush1.bf16.msra.mxu0 %v1257
        %1280 = vmatprep.subr.bf16.mxu0 0
        %1281 = vmatpush1.bf16.msra.mxu0 %v1256
        %1282 = vmatprep.subr.bf16.mxu0 0
        %1283 = vmatpush1.bf16.msra.mxu0 %v1255
        %1284 = vmatprep.subr.bf16.mxu0 0
        %1285 = vmatpush1.bf16.msra.mxu0 %v1254
        %1286 = vmatprep.subr.bf16.mxu0 0
        %1287 = vmatpush2.bf16.msra.mxu0 0
        %1288 = vmatprep.subr.bf16.mxu0 0
        %1289 = vmatpush2.bf16.msra.mxu0 0
        %1290 = vmatprep.subr.bf16.mxu0 0
        %1291 = vmatpush2.bf16.msra.mxu0 0
        %1292 = vmatprep.subr.bf16.mxu0 0
        %1293 = vmatpush2.bf16.msra.mxu0 0
        %1294 = vmatprep.subr.bf16.mxu0 0
        %1295 = vmatpush2.bf16.msra.mxu0 0
        %1296 = vmatprep.subr.bf16.mxu0 0
        %1297 = vmatpush2.bf16.msra.mxu0 0
        %1298 = vmatprep.subr.bf16.mxu0 0
        %1299 = vmatpush2.bf16.msra.mxu0 0
        %1300 = vmatprep.subr.bf16.mxu0 0
        %1301 = vmatpush2.bf16.msra.mxu0 0
        %1302 = vmatprep.mubr.bf16.mxu0 0
        %1303 = vmatmul.mubr.bf16.gmra.mxu0 %v1206
        %v1304 = vpop.f32.mrf.mxu0
        %v1305 = vadd.f32 %v1128, %v1304
        %v1306 = vpop.f32.mrf.mxu0
        %v1307 = vpop.f32.mrf.mxu0
        %v1308 = vadd.f32 %v1131, %v1307
        %v1309 = vpop.f32.mrf.mxu0
        %1310 = vmatprep.mubr.bf16.mxu0 0
        %1311 = vmatmul.mubr.bf16.gmra.mxu0 %v1207
        %v1312 = vpop.f32.mrf.mxu0
        %v1313 = vadd.f32 %v1136, %v1312
        %v1314 = vpop.f32.mrf.mxu0
        %v1315 = vpop.f32.mrf.mxu0
        %v1316 = vadd.f32 %v1139, %v1315
        %v1317 = vpop.f32.mrf.mxu0
        %1318 = vmatprep.mubr.bf16.mxu0 0
        %1319 = vmatmul.mubr.bf16.gmra.mxu0 %v1208
        %v1320 = vpop.f32.mrf.mxu0
        %v1321 = vadd.f32 %v1144, %v1320
        %v1322 = vpop.f32.mrf.mxu0
        %v1323 = vpop.f32.mrf.mxu0
        %v1324 = vadd.f32 %v1147, %v1323
        %v1325 = vpop.f32.mrf.mxu0
        %1326 = vmatprep.mubr.bf16.mxu0 0
        %1327 = vmatmul.mubr.bf16.gmra.mxu0 %v1209
        %v1328 = vpop.f32.mrf.mxu0
        %v1329 = vadd.f32 %v1152, %v1328
        %v1330 = vpop.f32.mrf.mxu0
        %v1331 = vpop.f32.mrf.mxu0
        %v1332 = vadd.f32 %v1155, %v1331
        %v1333 = vpop.f32.mrf.mxu0
        %1334 = vmatprep.mubr.bf16.mxu0 0
        %1335 = vmatmul.mubr.bf16.gmra.mxu0 %v1210
        %v1336 = vpop.f32.mrf.mxu0
        %v1337 = vadd.f32 %v1160, %v1336
        %v1338 = vpop.f32.mrf.mxu0
        %v1339 = vpop.f32.mrf.mxu0
        %v1340 = vadd.f32 %v1163, %v1339
        %v1341 = vpop.f32.mrf.mxu0
        %1342 = vmatprep.mubr.bf16.mxu0 0
        %1343 = vmatmul.mubr.bf16.gmra.mxu0 %v1211
        %v1344 = vpop.f32.mrf.mxu0
        %v1345 = vadd.f32 %v1168, %v1344
        %v1346 = vpop.f32.mrf.mxu0
        %v1347 = vpop.f32.mrf.mxu0
        %v1348 = vadd.f32 %v1171, %v1347
        %v1349 = vpop.f32.mrf.mxu0
        %1350 = vmatprep.mubr.bf16.mxu0 0
        %1351 = vmatmul.mubr.bf16.gmra.mxu0 %v1212
        %v1352 = vpop.f32.mrf.mxu0
        %v1353 = vadd.f32 %v1176, %v1352
        %v1354 = vpop.f32.mrf.mxu0
        %v1355 = vpop.f32.mrf.mxu0
        %v1356 = vadd.f32 %v1179, %v1355
        %v1357 = vpop.f32.mrf.mxu0
        %1358 = vmatprep.mubr.bf16.mxu0 0
        %1359 = vmatmul.mubr.bf16.gmra.mxu0 %v1213
        %v1360 = vpop.f32.mrf.mxu0
        %v1361 = vadd.f32 %v1184, %v1360
        %v1362 = vpop.f32.mrf.mxu0
        %v1363 = vpop.f32.mrf.mxu0
        %v1364 = vadd.f32 %v1187, %v1363
        %v1365 = vpop.f32.mrf.mxu0
        %1366 = vdwg.mxu0
        %vm1367 = vcmask 1040384
        %vm1368 = vcmask 1044484
        %vm1369 = vmor %vm1367, %vm1368
        %v1370 = vrot.slane %v525, 7
        %v1371 = vrot.slane %v1370, 4
        %v1372 = vrot.slane %v526, 7
        %v1373 = vsel %vm1369, %v1371, %v1372
        %v1374 = vrot.slane %v1372, 4
        %v1375 = vrot.slane %v527, 7
        %v1376 = vsel %vm1369, %v1374, %v1375
        %v1377 = vrot.slane %v528, 7
        %v1378 = vrot.slane %v1377, 4
        %v1379 = vrot.slane %v529, 7
        %v1380 = vsel %vm1369, %v1378, %v1379
        %v1381 = vrot.slane %v1379, 4
        %v1382 = vrot.slane %v530, 7
        %v1383 = vsel %vm1369, %v1381, %v1382
        %v1384 = vrot.slane %v531, 7
        %v1385 = vrot.slane %v1384, 4
        %v1386 = vrot.slane %v532, 7
        %v1387 = vsel %vm1369, %v1385, %v1386
        %v1388 = vrot.slane %v1386, 4
        %v1389 = vrot.slane %v533, 7
        %v1390 = vsel %vm1369, %v1388, %v1389
        %v1391 = vrot.slane %v534, 7
        %v1392 = vrot.slane %v1391, 4
        %v1393 = vrot.slane %v535, 7
        %v1394 = vsel %vm1369, %v1392, %v1393
        %v1395 = vrot.slane %v1393, 4
        %v1396 = vrot.slane %v536, 7
        %v1397 = vsel %vm1369, %v1395, %v1396
        %v1398 = vrot.slane %v537, 7
        %v1399 = vrot.slane %v1398, 4
        %v1400 = vrot.slane %v538, 7
        %v1401 = vsel %vm1369, %v1399, %v1400
        %v1402 = vrot.slane %v1400, 4
        %v1403 = vrot.slane %v539, 7
        %v1404 = vsel %vm1369, %v1402, %v1403
        %v1405 = vrot.slane %v540, 7
        %v1406 = vrot.slane %v1405, 4
        %v1407 = vrot.slane %v541, 7
        %v1408 = vsel %vm1369, %v1406, %v1407
        %v1409 = vrot.slane %v1407, 4
        %v1410 = vrot.slane %v542, 7
        %v1411 = vsel %vm1369, %v1409, %v1410
        %v1412 = vrot.slane %v543, 7
        %v1413 = vrot.slane %v1412, 4
        %v1414 = vrot.slane %v544, 7
        %v1415 = vsel %vm1369, %v1413, %v1414
        %v1416 = vrot.slane %v1414, 4
        %v1417 = vrot.slane %v545, 7
        %v1418 = vsel %vm1369, %v1416, %v1417
        %v1419 = vrot.slane %v546, 7
        %v1420 = vrot.slane %v1419, 4
        %v1421 = vrot.slane %v547, 7
        %v1422 = vsel %vm1369, %v1420, %v1421
        %v1423 = vrot.slane %v1421, 4
        %v1424 = vrot.slane %v548, 7
        %v1425 = vsel %vm1369, %v1423, %v1424
        %s1426 = scalar_lea.vmem [#allocation7], 128
        %v1427 = vld [vmem:[%s1426] sm:$0xf]
        %v1428 = vld [vmem:[%s1426 + $0x4] sm:$0xf]
        %v1429 = vld [vmem:[%s1426 + $0x8] sm:$0xf]
        %v1430 = vld [vmem:[%s1426 + $0xc] sm:$0xf]
        %v1431 = vld [vmem:[%s1426 + $0x10] sm:$0xf]
        %v1432 = vld [vmem:[%s1426 + $0x14] sm:$0xf]
        %v1433 = vld [vmem:[%s1426 + $0x18] sm:$0xf]
        %v1434 = vld [vmem:[%s1426 + $0x1c] sm:$0xf]
        %v1435 = vld [vmem:[%s1426 + $0x20] sm:$0xf]
        %v1436 = vld [vmem:[%s1426 + $0x24] sm:$0xf]
        %v1437 = vld [vmem:[%s1426 + $0x28] sm:$0xf]
        %v1438 = vld [vmem:[%s1426 + $0x2c] sm:$0xf]
        %v1439 = vld [vmem:[%s1426 + $0x30] sm:$0xf]
        %v1440 = vld [vmem:[%s1426 + $0x34] sm:$0xf]
        %v1441 = vld [vmem:[%s1426 + $0x38] sm:$0xf]
        %v1442 = vld [vmem:[%s1426 + $0x3c] sm:$0xf]
        %v1443 = vunpack.c.l.b16 %v1373
        %v1444 = vunpack.c.l.b16 %v1376
        %v1445 = vunpack.c.l.b16 %v1380
        %v1446 = vunpack.c.l.b16 %v1383
        %v1447 = vunpack.c.l.b16 %v1387
        %v1448 = vunpack.c.l.b16 %v1390
        %v1449 = vunpack.c.l.b16 %v1394
        %v1450 = vunpack.c.l.b16 %v1397
        %v1451 = vunpack.c.l.b16 %v1401
        %v1452 = vunpack.c.l.b16 %v1404
        %v1453 = vunpack.c.l.b16 %v1408
        %v1454 = vunpack.c.l.b16 %v1411
        %v1455 = vunpack.c.l.b16 %v1415
        %v1456 = vunpack.c.l.b16 %v1418
        %v1457 = vunpack.c.l.b16 %v1422
        %v1458 = vunpack.c.l.b16 %v1425
        %v1459 = vpack.c.b16 %v1444, %v1443
        %v1460 = vpack.c.b16 %v1446, %v1445
        %v1461 = vpack.c.b16 %v1448, %v1447
        %v1462 = vpack.c.b16 %v1450, %v1449
        %v1463 = vpack.c.b16 %v1452, %v1451
        %v1464 = vpack.c.b16 %v1454, %v1453
        %v1465 = vpack.c.b16 %v1456, %v1455
        %v1466 = vpack.c.b16 %v1458, %v1457
        %v1491 = vunpack.c.l.b16 %v1427
        %v1492 = vunpack.c.l.b16 %v1428
        %v1493 = vunpack.c.l.b16 %v1429
        %v1494 = vunpack.c.l.b16 %v1430
        %v1495 = vunpack.c.l.b16 %v1431
        %v1496 = vunpack.c.l.b16 %v1432
        %v1497 = vunpack.c.l.b16 %v1433
        %v1498 = vunpack.c.l.b16 %v1434
        %v1499 = vunpack.c.l.b16 %v1435
        %v1500 = vunpack.c.l.b16 %v1436
        %v1501 = vunpack.c.l.b16 %v1437
        %v1502 = vunpack.c.l.b16 %v1438
        %v1503 = vunpack.c.l.b16 %v1439
        %v1504 = vunpack.c.l.b16 %v1440
        %v1505 = vunpack.c.l.b16 %v1441
        %v1506 = vunpack.c.l.b16 %v1442
        %v1507 = vpack.c.b16 %v1492, %v1491
        %v1508 = vpack.c.b16 %v1494, %v1493
        %v1509 = vpack.c.b16 %v1496, %v1495
        %v1510 = vpack.c.b16 %v1498, %v1497
        %v1511 = vpack.c.b16 %v1500, %v1499
        %v1512 = vpack.c.b16 %v1502, %v1501
        %v1513 = vpack.c.b16 %v1504, %v1503
        %v1514 = vpack.c.b16 %v1506, %v1505
        %1523 = vmatprep.subr.bf16.mxu0 0
        %1524 = vmatpush1.bf16.msra.mxu0 %v1514
        %1525 = vmatprep.subr.bf16.mxu0 0
        %1526 = vmatpush1.bf16.msra.mxu0 %v1513
        %1527 = vmatprep.subr.bf16.mxu0 0
        %1528 = vmatpush1.bf16.msra.mxu0 %v1512
        %1529 = vmatprep.subr.bf16.mxu0 0
        %1530 = vmatpush1.bf16.msra.mxu0 %v1511
        %1531 = vmatprep.subr.bf16.mxu0 0
        %1532 = vmatpush1.bf16.msra.mxu0 %v1510
        %1533 = vmatprep.subr.bf16.mxu0 0
        %1534 = vmatpush1.bf16.msra.mxu0 %v1509
        %1535 = vmatprep.subr.bf16.mxu0 0
        %1536 = vmatpush1.bf16.msra.mxu0 %v1508
        %1537 = vmatprep.subr.bf16.mxu0 0
        %1538 = vmatpush1.bf16.msra.mxu0 %v1507
        %1539 = vmatprep.subr.bf16.mxu0 0
        %1540 = vmatpush2.bf16.msra.mxu0 0
        %1541 = vmatprep.subr.bf16.mxu0 0
        %1542 = vmatpush2.bf16.msra.mxu0 0
        %1543 = vmatprep.subr.bf16.mxu0 0
        %1544 = vmatpush2.bf16.msra.mxu0 0
        %1545 = vmatprep.subr.bf16.mxu0 0
        %1546 = vmatpush2.bf16.msra.mxu0 0
        %1547 = vmatprep.subr.bf16.mxu0 0
        %1548 = vmatpush2.bf16.msra.mxu0 0
        %1549 = vmatprep.subr.bf16.mxu0 0
        %1550 = vmatpush2.bf16.msra.mxu0 0
        %1551 = vmatprep.subr.bf16.mxu0 0
        %1552 = vmatpush2.bf16.msra.mxu0 0
        %1553 = vmatprep.subr.bf16.mxu0 0
        %1554 = vmatpush2.bf16.msra.mxu0 0
        %1555 = vmatprep.mubr.bf16.mxu0 0
        %1556 = vmatmul.mubr.bf16.gmra.mxu0 %v1459
        %v1557 = vpop.f32.mrf.mxu0
        %v1558 = vadd.f32 0.0, %v1557
        %v1559 = vpop.f32.mrf.mxu0
        %v1560 = vpop.f32.mrf.mxu0
        %v1561 = vadd.f32 0.0, %v1560
        %v1562 = vpop.f32.mrf.mxu0
        %1563 = vmatprep.mubr.bf16.mxu0 0
        %1564 = vmatmul.mubr.bf16.gmra.mxu0 %v1460
        %v1565 = vpop.f32.mrf.mxu0
        %v1566 = vadd.f32 0.0, %v1565
        %v1567 = vpop.f32.mrf.mxu0
        %v1568 = vpop.f32.mrf.mxu0
        %v1569 = vadd.f32 0.0, %v1568
        %v1570 = vpop.f32.mrf.mxu0
        %1571 = vmatprep.mubr.bf16.mxu0 0
        %1572 = vmatmul.mubr.bf16.gmra.mxu0 %v1461
        %v1573 = vpop.f32.mrf.mxu0
        %v1574 = vadd.f32 0.0, %v1573
        %v1575 = vpop.f32.mrf.mxu0
        %v1576 = vpop.f32.mrf.mxu0
        %v1577 = vadd.f32 0.0, %v1576
        %v1578 = vpop.f32.mrf.mxu0
        %1579 = vmatprep.mubr.bf16.mxu0 0
        %1580 = vmatmul.mubr.bf16.gmra.mxu0 %v1462
        %v1581 = vpop.f32.mrf.mxu0
        %v1582 = vadd.f32 0.0, %v1581
        %v1583 = vpop.f32.mrf.mxu0
        %v1584 = vpop.f32.mrf.mxu0
        %v1585 = vadd.f32 0.0, %v1584
        %v1586 = vpop.f32.mrf.mxu0
        %1587 = vmatprep.mubr.bf16.mxu0 0
        %1588 = vmatmul.mubr.bf16.gmra.mxu0 %v1463
        %v1589 = vpop.f32.mrf.mxu0
        %v1590 = vadd.f32 0.0, %v1589
        %v1591 = vpop.f32.mrf.mxu0
        %v1592 = vpop.f32.mrf.mxu0
        %v1593 = vadd.f32 0.0, %v1592
        %v1594 = vpop.f32.mrf.mxu0
        %1595 = vmatprep.mubr.bf16.mxu0 0
        %1596 = vmatmul.mubr.bf16.gmra.mxu0 %v1464
        %v1597 = vpop.f32.mrf.mxu0
        %v1598 = vadd.f32 0.0, %v1597
        %v1599 = vpop.f32.mrf.mxu0
        %v1600 = vpop.f32.mrf.mxu0
        %v1601 = vadd.f32 0.0, %v1600
        %v1602 = vpop.f32.mrf.mxu0
        %1603 = vmatprep.mubr.bf16.mxu0 0
        %1604 = vmatmul.mubr.bf16.gmra.mxu0 %v1465
        %v1605 = vpop.f32.mrf.mxu0
        %v1606 = vadd.f32 0.0, %v1605
        %v1607 = vpop.f32.mrf.mxu0
        %v1608 = vpop.f32.mrf.mxu0
        %v1609 = vadd.f32 0.0, %v1608
        %v1610 = vpop.f32.mrf.mxu0
        %1611 = vmatprep.mubr.bf16.mxu0 0
        %1612 = vmatmul.mubr.bf16.gmra.mxu0 %v1466
        %v1613 = vpop.f32.mrf.mxu0
        %v1614 = vadd.f32 0.0, %v1613
        %v1615 = vpop.f32.mrf.mxu0
        %v1616 = vpop.f32.mrf.mxu0
        %v1617 = vadd.f32 0.0, %v1616
        %v1618 = vpop.f32.mrf.mxu0
        %1619 = vdwg.mxu0
        %v1620 = vadd.f32 %v1305, %v1558
        %v1621 = vadd.f32 %v1308, %v1561
        %v1622 = vadd.f32 %v1313, %v1566
        %v1623 = vadd.f32 %v1316, %v1569
        %v1624 = vadd.f32 %v1321, %v1574
        %v1625 = vadd.f32 %v1324, %v1577
        %v1626 = vadd.f32 %v1329, %v1582
        %v1627 = vadd.f32 %v1332, %v1585
        %v1628 = vadd.f32 %v1337, %v1590
        %v1629 = vadd.f32 %v1340, %v1593
        %v1630 = vadd.f32 %v1345, %v1598
        %v1631 = vadd.f32 %v1348, %v1601
        %v1632 = vadd.f32 %v1353, %v1606
        %v1633 = vadd.f32 %v1356, %v1609
        %v1634 = vadd.f32 %v1361, %v1614
        %v1635 = vadd.f32 %v1364, %v1617
        %v1636 = vrot.slane %v549, 5
        %v1637 = vrot.slane %v1636, 4
        %v1638 = vrot.slane %v550, 5
        %v1639 = vsel %vm933, %v1637, %v1638
        %v1640 = vrot.slane %v1638, 4
        %v1641 = vrot.slane %v551, 5
        %v1642 = vsel %vm933, %v1640, %v1641
        %v1643 = vrot.slane %v552, 5
        %v1644 = vrot.slane %v1643, 4
        %v1645 = vrot.slane %v553, 5
        %v1646 = vsel %vm933, %v1644, %v1645
        %v1647 = vrot.slane %v1645, 4
        %v1648 = vrot.slane %v554, 5
        %v1649 = vsel %vm933, %v1647, %v1648
        %s1650 = scalar_lea.vmem [#allocation7], 192
        %v1651 = vld [vmem:[%s1650] sm:$0xf]
        %v1652 = vld [vmem:[%s1650 + $0x4] sm:$0xf]
        %v1653 = vld [vmem:[%s1650 + $0x8] sm:$0xf]
        %v1654 = vld [vmem:[%s1650 + $0xc] sm:$0xf]
        %v1655 = vld [vmem:[%s1650 + $0x10] sm:$0xf]
        %v1656 = vld [vmem:[%s1650 + $0x14] sm:$0xf]
        %v1657 = vld [vmem:[%s1650 + $0x18] sm:$0xf]
        %v1658 = vld [vmem:[%s1650 + $0x1c] sm:$0xf]
        %v1659 = vld [vmem:[%s1650 + $0x20] sm:$0xf]
        %v1660 = vld [vmem:[%s1650 + $0x24] sm:$0xf]
        %v1661 = vld [vmem:[%s1650 + $0x28] sm:$0xf]
        %v1662 = vld [vmem:[%s1650 + $0x2c] sm:$0xf]
        %v1663 = vld [vmem:[%s1650 + $0x30] sm:$0xf]
        %v1664 = vld [vmem:[%s1650 + $0x34] sm:$0xf]
        %v1665 = vld [vmem:[%s1650 + $0x38] sm:$0xf]
        %v1666 = vld [vmem:[%s1650 + $0x3c] sm:$0xf]
        %v1667 = vunpack.c.l.b16 %v1639
        %v1668 = vunpack.c.l.b16 %v1642
        %v1669 = vunpack.c.l.b16 %v1646
        %v1670 = vunpack.c.l.b16 %v1649
        %v1671 = vpack.c.b16 %v1668, %v1667
        %v1672 = vpack.c.b16 %v1670, %v1669
        %v1691 = vunpack.c.l.b16 %v1651
        %v1692 = vunpack.c.l.b16 %v1652
        %v1693 = vunpack.c.l.b16 %v1653
        %v1694 = vunpack.c.l.b16 %v1654
        %v1695 = vunpack.c.l.b16 %v1655
        %v1696 = vunpack.c.l.b16 %v1656
        %v1697 = vunpack.c.l.b16 %v1657
        %v1698 = vunpack.c.l.b16 %v1658
        %v1699 = vunpack.c.l.b16 %v1659
        %v1700 = vunpack.c.l.b16 %v1660
        %v1701 = vunpack.c.l.b16 %v1661
        %v1702 = vunpack.c.l.b16 %v1662
        %v1703 = vunpack.c.l.b16 %v1663
        %v1704 = vunpack.c.l.b16 %v1664
        %v1705 = vunpack.c.l.b16 %v1665
        %v1706 = vunpack.c.l.b16 %v1666
        %v1707 = vpack.c.b16 %v1692, %v1691
        %v1708 = vpack.c.b16 %v1694, %v1693
        %v1709 = vpack.c.b16 %v1696, %v1695
        %v1710 = vpack.c.b16 %v1698, %v1697
        %v1711 = vpack.c.b16 %v1700, %v1699
        %v1712 = vpack.c.b16 %v1702, %v1701
        %v1713 = vpack.c.b16 %v1704, %v1703
        %v1714 = vpack.c.b16 %v1706, %v1705
        %1723 = vmatprep.subr.bf16.mxu0 0
        %1724 = vmatpush1.bf16.msra.mxu0 %v1714
        %1725 = vmatprep.subr.bf16.mxu0 0
        %1726 = vmatpush1.bf16.msra.mxu0 %v1713
        %1727 = vmatprep.subr.bf16.mxu0 0
        %1728 = vmatpush1.bf16.msra.mxu0 %v1712
        %1729 = vmatprep.subr.bf16.mxu0 0
        %1730 = vmatpush1.bf16.msra.mxu0 %v1711
        %1731 = vmatprep.subr.bf16.mxu0 0
        %1732 = vmatpush1.bf16.msra.mxu0 %v1710
        %1733 = vmatprep.subr.bf16.mxu0 0
        %1734 = vmatpush1.bf16.msra.mxu0 %v1709
        %1735 = vmatprep.subr.bf16.mxu0 0
        %1736 = vmatpush1.bf16.msra.mxu0 %v1708
        %1737 = vmatprep.subr.bf16.mxu0 0
        %1738 = vmatpush1.bf16.msra.mxu0 %v1707
        %1739 = vmatprep.subr.bf16.mxu0 0
        %1740 = vmatpush2.bf16.msra.mxu0 0
        %1741 = vmatprep.subr.bf16.mxu0 0
        %1742 = vmatpush2.bf16.msra.mxu0 0
        %1743 = vmatprep.subr.bf16.mxu0 0
        %1744 = vmatpush2.bf16.msra.mxu0 0
        %1745 = vmatprep.subr.bf16.mxu0 0
        %1746 = vmatpush2.bf16.msra.mxu0 0
        %1747 = vmatprep.subr.bf16.mxu0 0
        %1748 = vmatpush2.bf16.msra.mxu0 0
        %1749 = vmatprep.subr.bf16.mxu0 0
        %1750 = vmatpush2.bf16.msra.mxu0 0
        %1751 = vmatprep.subr.bf16.mxu0 0
        %1752 = vmatpush2.bf16.msra.mxu0 0
        %1753 = vmatprep.subr.bf16.mxu0 0
        %1754 = vmatpush2.bf16.msra.mxu0 0
        %1755 = vmatprep.mubr.bf16.mxu0 0
        %1756 = vmatmul.mubr.bf16.gmra.mxu0 %v1208
        %v1757 = vpop.f32.mrf.mxu0
        %v1758 = vadd.f32 0.0, %v1757
        %v1759 = vpop.f32.mrf.mxu0
        %v1760 = vpop.f32.mrf.mxu0
        %v1761 = vadd.f32 0.0, %v1760
        %v1762 = vpop.f32.mrf.mxu0
        %1763 = vmatprep.mubr.bf16.mxu0 0
        %1764 = vmatmul.mubr.bf16.gmra.mxu0 %v1209
        %v1765 = vpop.f32.mrf.mxu0
        %v1766 = vadd.f32 0.0, %v1765
        %v1767 = vpop.f32.mrf.mxu0
        %v1768 = vpop.f32.mrf.mxu0
        %v1769 = vadd.f32 0.0, %v1768
        %v1770 = vpop.f32.mrf.mxu0
        %1771 = vmatprep.mubr.bf16.mxu0 0
        %1772 = vmatmul.mubr.bf16.gmra.mxu0 %v1210
        %v1773 = vpop.f32.mrf.mxu0
        %v1774 = vadd.f32 0.0, %v1773
        %v1775 = vpop.f32.mrf.mxu0
        %v1776 = vpop.f32.mrf.mxu0
        %v1777 = vadd.f32 0.0, %v1776
        %v1778 = vpop.f32.mrf.mxu0
        %1779 = vmatprep.mubr.bf16.mxu0 0
        %1780 = vmatmul.mubr.bf16.gmra.mxu0 %v1211
        %v1781 = vpop.f32.mrf.mxu0
        %v1782 = vadd.f32 0.0, %v1781
        %v1783 = vpop.f32.mrf.mxu0
        %v1784 = vpop.f32.mrf.mxu0
        %v1785 = vadd.f32 0.0, %v1784
        %v1786 = vpop.f32.mrf.mxu0
        %1787 = vmatprep.mubr.bf16.mxu0 0
        %1788 = vmatmul.mubr.bf16.gmra.mxu0 %v1212
        %v1789 = vpop.f32.mrf.mxu0
        %v1790 = vadd.f32 0.0, %v1789
        %v1791 = vpop.f32.mrf.mxu0
        %v1792 = vpop.f32.mrf.mxu0
        %v1793 = vadd.f32 0.0, %v1792
        %v1794 = vpop.f32.mrf.mxu0
        %1795 = vmatprep.mubr.bf16.mxu0 0
        %1796 = vmatmul.mubr.bf16.gmra.mxu0 %v1213
        %v1797 = vpop.f32.mrf.mxu0
        %v1798 = vadd.f32 0.0, %v1797
        %v1799 = vpop.f32.mrf.mxu0
        %v1800 = vpop.f32.mrf.mxu0
        %v1801 = vadd.f32 0.0, %v1800
        %v1802 = vpop.f32.mrf.mxu0
        %1803 = vmatprep.mubr.bf16.mxu0 0
        %1804 = vmatmul.mubr.bf16.gmra.mxu0 %v1671
        %v1805 = vpop.f32.mrf.mxu0
        %v1806 = vadd.f32 0.0, %v1805
        %v1807 = vpop.f32.mrf.mxu0
        %v1808 = vpop.f32.mrf.mxu0
        %v1809 = vadd.f32 0.0, %v1808
        %v1810 = vpop.f32.mrf.mxu0
        %1811 = vmatprep.mubr.bf16.mxu0 0
        %1812 = vmatmul.mubr.bf16.gmra.mxu0 %v1672
        %v1813 = vpop.f32.mrf.mxu0
        %v1814 = vadd.f32 0.0, %v1813
        %v1815 = vpop.f32.mrf.mxu0
        %v1816 = vpop.f32.mrf.mxu0
        %v1817 = vadd.f32 0.0, %v1816
        %v1818 = vpop.f32.mrf.mxu0
        %1819 = vdwg.mxu0
        %v1820 = vadd.f32 %v1620, %v1758
        %v1821 = vadd.f32 %v1621, %v1761
        %v1822 = vadd.f32 %v1622, %v1766
        %v1823 = vadd.f32 %v1623, %v1769
        %v1824 = vadd.f32 %v1624, %v1774
        %v1825 = vadd.f32 %v1625, %v1777
        %v1826 = vadd.f32 %v1626, %v1782
        %v1827 = vadd.f32 %v1627, %v1785
        %v1828 = vadd.f32 %v1628, %v1790
        %v1829 = vadd.f32 %v1629, %v1793
        %v1830 = vadd.f32 %v1630, %v1798
        %v1831 = vadd.f32 %v1631, %v1801
        %v1832 = vadd.f32 %v1632, %v1806
        %v1833 = vadd.f32 %v1633, %v1809
        %v1834 = vadd.f32 %v1634, %v1814
        %v1835 = vadd.f32 %v1635, %v1817
        %s1836 = scalar_lea.vmem [#allocation7], 256
        %v1837 = vld [vmem:[%s1836] sm:$0xf]
        %v1838 = vld [vmem:[%s1836 + $0x4] sm:$0xf]
        %v1839 = vld [vmem:[%s1836 + $0x8] sm:$0xf]
        %v1840 = vld [vmem:[%s1836 + $0xc] sm:$0xf]
        %v1841 = vld [vmem:[%s1836 + $0x10] sm:$0xf]
        %v1842 = vld [vmem:[%s1836 + $0x14] sm:$0xf]
        %v1843 = vld [vmem:[%s1836 + $0x18] sm:$0xf]
        %v1844 = vld [vmem:[%s1836 + $0x1c] sm:$0xf]
        %v1845 = vld [vmem:[%s1836 + $0x20] sm:$0xf]
        %v1846 = vld [vmem:[%s1836 + $0x24] sm:$0xf]
        %v1847 = vld [vmem:[%s1836 + $0x28] sm:$0xf]
        %v1848 = vld [vmem:[%s1836 + $0x2c] sm:$0xf]
        %v1849 = vld [vmem:[%s1836 + $0x30] sm:$0xf]
        %v1850 = vld [vmem:[%s1836 + $0x34] sm:$0xf]
        %v1851 = vld [vmem:[%s1836 + $0x38] sm:$0xf]
        %v1852 = vld [vmem:[%s1836 + $0x3c] sm:$0xf]
        %v1869 = vunpack.c.l.b16 %v1837
        %v1870 = vunpack.c.l.b16 %v1838
        %v1871 = vunpack.c.l.b16 %v1839
        %v1872 = vunpack.c.l.b16 %v1840
        %v1873 = vunpack.c.l.b16 %v1841
        %v1874 = vunpack.c.l.b16 %v1842
        %v1875 = vunpack.c.l.b16 %v1843
        %v1876 = vunpack.c.l.b16 %v1844
        %v1877 = vunpack.c.l.b16 %v1845
        %v1878 = vunpack.c.l.b16 %v1846
        %v1879 = vunpack.c.l.b16 %v1847
        %v1880 = vunpack.c.l.b16 %v1848
        %v1881 = vunpack.c.l.b16 %v1849
        %v1882 = vunpack.c.l.b16 %v1850
        %v1883 = vunpack.c.l.b16 %v1851
        %v1884 = vunpack.c.l.b16 %v1852
        %v1885 = vpack.c.b16 %v1870, %v1869
        %v1886 = vpack.c.b16 %v1872, %v1871
        %v1887 = vpack.c.b16 %v1874, %v1873
        %v1888 = vpack.c.b16 %v1876, %v1875
        %v1889 = vpack.c.b16 %v1878, %v1877
        %v1890 = vpack.c.b16 %v1880, %v1879
        %v1891 = vpack.c.b16 %v1882, %v1881
        %v1892 = vpack.c.b16 %v1884, %v1883
        %1901 = vmatprep.subr.bf16.mxu0 0
        %1902 = vmatpush1.bf16.msra.mxu0 %v1892
        %1903 = vmatprep.subr.bf16.mxu0 0
        %1904 = vmatpush1.bf16.msra.mxu0 %v1891
        %1905 = vmatprep.subr.bf16.mxu0 0
        %1906 = vmatpush1.bf16.msra.mxu0 %v1890
        %1907 = vmatprep.subr.bf16.mxu0 0
        %1908 = vmatpush1.bf16.msra.mxu0 %v1889
        %1909 = vmatprep.subr.bf16.mxu0 0
        %1910 = vmatpush1.bf16.msra.mxu0 %v1888
        %1911 = vmatprep.subr.bf16.mxu0 0
        %1912 = vmatpush1.bf16.msra.mxu0 %v1887
        %1913 = vmatprep.subr.bf16.mxu0 0
        %1914 = vmatpush1.bf16.msra.mxu0 %v1886
        %1915 = vmatprep.subr.bf16.mxu0 0
        %1916 = vmatpush1.bf16.msra.mxu0 %v1885
        %1917 = vmatprep.subr.bf16.mxu0 0
        %1918 = vmatpush2.bf16.msra.mxu0 0
        %1919 = vmatprep.subr.bf16.mxu0 0
        %1920 = vmatpush2.bf16.msra.mxu0 0
        %1921 = vmatprep.subr.bf16.mxu0 0
        %1922 = vmatpush2.bf16.msra.mxu0 0
        %1923 = vmatprep.subr.bf16.mxu0 0
        %1924 = vmatpush2.bf16.msra.mxu0 0
        %1925 = vmatprep.subr.bf16.mxu0 0
        %1926 = vmatpush2.bf16.msra.mxu0 0
        %1927 = vmatprep.subr.bf16.mxu0 0
        %1928 = vmatpush2.bf16.msra.mxu0 0
        %1929 = vmatprep.subr.bf16.mxu0 0
        %1930 = vmatpush2.bf16.msra.mxu0 0
        %1931 = vmatprep.subr.bf16.mxu0 0
        %1932 = vmatpush2.bf16.msra.mxu0 0
        %1933 = vmatprep.mubr.bf16.mxu0 0
        %1934 = vmatmul.mubr.bf16.gmra.mxu0 %v684
        %v1935 = vpop.f32.mrf.mxu0
        %v1936 = vadd.f32 0.0, %v1935
        %v1937 = vpop.f32.mrf.mxu0
        %v1938 = vpop.f32.mrf.mxu0
        %v1939 = vadd.f32 0.0, %v1938
        %v1940 = vpop.f32.mrf.mxu0
        %1941 = vmatprep.mubr.bf16.mxu0 0
        %1942 = vmatmul.mubr.bf16.gmra.mxu0 %v685
        %v1943 = vpop.f32.mrf.mxu0
        %v1944 = vadd.f32 0.0, %v1943
        %v1945 = vpop.f32.mrf.mxu0
        %v1946 = vpop.f32.mrf.mxu0
        %v1947 = vadd.f32 0.0, %v1946
        %v1948 = vpop.f32.mrf.mxu0
        %1949 = vmatprep.mubr.bf16.mxu0 0
        %1950 = vmatmul.mubr.bf16.gmra.mxu0 %v686
        %v1951 = vpop.f32.mrf.mxu0
        %v1952 = vadd.f32 0.0, %v1951
        %v1953 = vpop.f32.mrf.mxu0
        %v1954 = vpop.f32.mrf.mxu0
        %v1955 = vadd.f32 0.0, %v1954
        %v1956 = vpop.f32.mrf.mxu0
        %1957 = vmatprep.mubr.bf16.mxu0 0
        %1958 = vmatmul.mubr.bf16.gmra.mxu0 %v687
        %v1959 = vpop.f32.mrf.mxu0
        %v1960 = vadd.f32 0.0, %v1959
        %v1961 = vpop.f32.mrf.mxu0
        %v1962 = vpop.f32.mrf.mxu0
        %v1963 = vadd.f32 0.0, %v1962
        %v1964 = vpop.f32.mrf.mxu0
        %1965 = vmatprep.mubr.bf16.mxu0 0
        %1966 = vmatmul.mubr.bf16.gmra.mxu0 %v688
        %v1967 = vpop.f32.mrf.mxu0
        %v1968 = vadd.f32 0.0, %v1967
        %v1969 = vpop.f32.mrf.mxu0
        %v1970 = vpop.f32.mrf.mxu0
        %v1971 = vadd.f32 0.0, %v1970
        %v1972 = vpop.f32.mrf.mxu0
        %1973 = vmatprep.mubr.bf16.mxu0 0
        %1974 = vmatmul.mubr.bf16.gmra.mxu0 %v689
        %v1975 = vpop.f32.mrf.mxu0
        %v1976 = vadd.f32 0.0, %v1975
        %v1977 = vpop.f32.mrf.mxu0
        %v1978 = vpop.f32.mrf.mxu0
        %v1979 = vadd.f32 0.0, %v1978
        %v1980 = vpop.f32.mrf.mxu0
        %1981 = vmatprep.mubr.bf16.mxu0 0
        %1982 = vmatmul.mubr.bf16.gmra.mxu0 %v690
        %v1983 = vpop.f32.mrf.mxu0
        %v1984 = vadd.f32 0.0, %v1983
        %v1985 = vpop.f32.mrf.mxu0
        %v1986 = vpop.f32.mrf.mxu0
        %v1987 = vadd.f32 0.0, %v1986
        %v1988 = vpop.f32.mrf.mxu0
        %1989 = vmatprep.mubr.bf16.mxu0 0
        %1990 = vmatmul.mubr.bf16.gmra.mxu0 %v691
        %v1991 = vpop.f32.mrf.mxu0
        %v1992 = vadd.f32 0.0, %v1991
        %v1993 = vpop.f32.mrf.mxu0
        %v1994 = vpop.f32.mrf.mxu0
        %v1995 = vadd.f32 0.0, %v1994
        %v1996 = vpop.f32.mrf.mxu0
        %1997 = vdwg.mxu0
        %v1998 = vadd.f32 %v1820, %v1936
        %v1999 = vadd.f32 %v1821, %v1939
        %v2000 = vadd.f32 %v1822, %v1944
        %v2001 = vadd.f32 %v1823, %v1947
        %v2002 = vadd.f32 %v1824, %v1952
        %v2003 = vadd.f32 %v1825, %v1955
        %v2004 = vadd.f32 %v1826, %v1960
        %v2005 = vadd.f32 %v1827, %v1963
        %v2006 = vadd.f32 %v1828, %v1968
        %v2007 = vadd.f32 %v1829, %v1971
        %v2008 = vadd.f32 %v1830, %v1976
        %v2009 = vadd.f32 %v1831, %v1979
        %v2010 = vadd.f32 %v1832, %v1984
        %v2011 = vadd.f32 %v1833, %v1987
        %v2012 = vadd.f32 %v1834, %v1992
        %v2013 = vadd.f32 %v1835, %v1995
        %v2014 = vrot.slane %v549, 7
        %v2015 = vrot.slane %v2014, 4
        %v2016 = vrot.slane %v550, 7
        %v2017 = vsel %vm1369, %v2015, %v2016
        %v2018 = vrot.slane %v2016, 4
        %v2019 = vrot.slane %v551, 7
        %v2020 = vsel %vm1369, %v2018, %v2019
        %v2021 = vrot.slane %v552, 7
        %v2022 = vrot.slane %v2021, 4
        %v2023 = vrot.slane %v553, 7
        %v2024 = vsel %vm1369, %v2022, %v2023
        %v2025 = vrot.slane %v2023, 4
        %v2026 = vrot.slane %v554, 7
        %v2027 = vsel %vm1369, %v2025, %v2026
        %s2028 = scalar_lea.vmem [#allocation7], 320
        %v2029 = vld [vmem:[%s2028] sm:$0xf]
        %v2030 = vld [vmem:[%s2028 + $0x4] sm:$0xf]
        %v2031 = vld [vmem:[%s2028 + $0x8] sm:$0xf]
        %v2032 = vld [vmem:[%s2028 + $0xc] sm:$0xf]
        %v2033 = vld [vmem:[%s2028 + $0x10] sm:$0xf]
        %v2034 = vld [vmem:[%s2028 + $0x14] sm:$0xf]
        %v2035 = vld [vmem:[%s2028 + $0x18] sm:$0xf]
        %v2036 = vld [vmem:[%s2028 + $0x1c] sm:$0xf]
        %v2037 = vld [vmem:[%s2028 + $0x20] sm:$0xf]
        %v2038 = vld [vmem:[%s2028 + $0x24] sm:$0xf]
        %v2039 = vld [vmem:[%s2028 + $0x28] sm:$0xf]
        %v2040 = vld [vmem:[%s2028 + $0x2c] sm:$0xf]
        %v2041 = vld [vmem:[%s2028 + $0x30] sm:$0xf]
        %v2042 = vld [vmem:[%s2028 + $0x34] sm:$0xf]
        %v2043 = vld [vmem:[%s2028 + $0x38] sm:$0xf]
        %v2044 = vld [vmem:[%s2028 + $0x3c] sm:$0xf]
        %v2045 = vunpack.c.l.b16 %v2017
        %v2046 = vunpack.c.l.b16 %v2020
        %v2047 = vunpack.c.l.b16 %v2024
        %v2048 = vunpack.c.l.b16 %v2027
        %v2049 = vpack.c.b16 %v2046, %v2045
        %v2050 = vpack.c.b16 %v2048, %v2047
        %v2069 = vunpack.c.l.b16 %v2029
        %v2070 = vunpack.c.l.b16 %v2030
        %v2071 = vunpack.c.l.b16 %v2031
        %v2072 = vunpack.c.l.b16 %v2032
        %v2073 = vunpack.c.l.b16 %v2033
        %v2074 = vunpack.c.l.b16 %v2034
        %v2075 = vunpack.c.l.b16 %v2035
        %v2076 = vunpack.c.l.b16 %v2036
        %v2077 = vunpack.c.l.b16 %v2037
        %v2078 = vunpack.c.l.b16 %v2038
        %v2079 = vunpack.c.l.b16 %v2039
        %v2080 = vunpack.c.l.b16 %v2040
        %v2081 = vunpack.c.l.b16 %v2041
        %v2082 = vunpack.c.l.b16 %v2042
        %v2083 = vunpack.c.l.b16 %v2043
        %v2084 = vunpack.c.l.b16 %v2044
        %v2085 = vpack.c.b16 %v2070, %v2069
        %v2086 = vpack.c.b16 %v2072, %v2071
        %v2087 = vpack.c.b16 %v2074, %v2073
        %v2088 = vpack.c.b16 %v2076, %v2075
        %v2089 = vpack.c.b16 %v2078, %v2077
        %v2090 = vpack.c.b16 %v2080, %v2079
        %v2091 = vpack.c.b16 %v2082, %v2081
        %v2092 = vpack.c.b16 %v2084, %v2083
        %2101 = vmatprep.subr.bf16.mxu0 0
        %2102 = vmatpush1.bf16.msra.mxu0 %v2092
        %2103 = vmatprep.subr.bf16.mxu0 0
        %2104 = vmatpush1.bf16.msra.mxu0 %v2091
        %2105 = vmatprep.subr.bf16.mxu0 0
        %2106 = vmatpush1.bf16.msra.mxu0 %v2090
        %2107 = vmatprep.subr.bf16.mxu0 0
        %2108 = vmatpush1.bf16.msra.mxu0 %v2089
        %2109 = vmatprep.subr.bf16.mxu0 0
        %2110 = vmatpush1.bf16.msra.mxu0 %v2088
        %2111 = vmatprep.subr.bf16.mxu0 0
        %2112 = vmatpush1.bf16.msra.mxu0 %v2087
        %2113 = vmatprep.subr.bf16.mxu0 0
        %2114 = vmatpush1.bf16.msra.mxu0 %v2086
        %2115 = vmatprep.subr.bf16.mxu0 0
        %2116 = vmatpush1.bf16.msra.mxu0 %v2085
        %2117 = vmatprep.subr.bf16.mxu0 0
        %2118 = vmatpush2.bf16.msra.mxu0 0
        %2119 = vmatprep.subr.bf16.mxu0 0
        %2120 = vmatpush2.bf16.msra.mxu0 0
        %2121 = vmatprep.subr.bf16.mxu0 0
        %2122 = vmatpush2.bf16.msra.mxu0 0
        %2123 = vmatprep.subr.bf16.mxu0 0
        %2124 = vmatpush2.bf16.msra.mxu0 0
        %2125 = vmatprep.subr.bf16.mxu0 0
        %2126 = vmatpush2.bf16.msra.mxu0 0
        %2127 = vmatprep.subr.bf16.mxu0 0
        %2128 = vmatpush2.bf16.msra.mxu0 0
        %2129 = vmatprep.subr.bf16.mxu0 0
        %2130 = vmatpush2.bf16.msra.mxu0 0
        %2131 = vmatprep.subr.bf16.mxu0 0
        %2132 = vmatpush2.bf16.msra.mxu0 0
        %2133 = vmatprep.mubr.bf16.mxu0 0
        %2134 = vmatmul.mubr.bf16.gmra.mxu0 %v1461
        %v2135 = vpop.f32.mrf.mxu0
        %v2136 = vadd.f32 0.0, %v2135
        %v2137 = vpop.f32.mrf.mxu0
        %v2138 = vpop.f32.mrf.mxu0
        %v2139 = vadd.f32 0.0, %v2138
        %v2140 = vpop.f32.mrf.mxu0
        %2141 = vmatprep.mubr.bf16.mxu0 0
        %2142 = vmatmul.mubr.bf16.gmra.mxu0 %v1462
        %v2143 = vpop.f32.mrf.mxu0
        %v2144 = vadd.f32 0.0, %v2143
        %v2145 = vpop.f32.mrf.mxu0
        %v2146 = vpop.f32.mrf.mxu0
        %v2147 = vadd.f32 0.0, %v2146
        %v2148 = vpop.f32.mrf.mxu0
        %2149 = vmatprep.mubr.bf16.mxu0 0
        %2150 = vmatmul.mubr.bf16.gmra.mxu0 %v1463
        %v2151 = vpop.f32.mrf.mxu0
        %v2152 = vadd.f32 0.0, %v2151
        %v2153 = vpop.f32.mrf.mxu0
        %v2154 = vpop.f32.mrf.mxu0
        %v2155 = vadd.f32 0.0, %v2154
        %v2156 = vpop.f32.mrf.mxu0
        %2157 = vmatprep.mubr.bf16.mxu0 0
        %2158 = vmatmul.mubr.bf16.gmra.mxu0 %v1464
        %v2159 = vpop.f32.mrf.mxu0
        %v2160 = vadd.f32 0.0, %v2159
        %v2161 = vpop.f32.mrf.mxu0
        %v2162 = vpop.f32.mrf.mxu0
        %v2163 = vadd.f32 0.0, %v2162
        %v2164 = vpop.f32.mrf.mxu0
        %2165 = vmatprep.mubr.bf16.mxu0 0
        %2166 = vmatmul.mubr.bf16.gmra.mxu0 %v1465
        %v2167 = vpop.f32.mrf.mxu0
        %v2168 = vadd.f32 0.0, %v2167
        %v2169 = vpop.f32.mrf.mxu0
        %v2170 = vpop.f32.mrf.mxu0
        %v2171 = vadd.f32 0.0, %v2170
        %v2172 = vpop.f32.mrf.mxu0
        %2173 = vmatprep.mubr.bf16.mxu0 0
        %2174 = vmatmul.mubr.bf16.gmra.mxu0 %v1466
        %v2175 = vpop.f32.mrf.mxu0
        %v2176 = vadd.f32 0.0, %v2175
        %v2177 = vpop.f32.mrf.mxu0
        %v2178 = vpop.f32.mrf.mxu0
        %v2179 = vadd.f32 0.0, %v2178
        %v2180 = vpop.f32.mrf.mxu0
        %2181 = vmatprep.mubr.bf16.mxu0 0
        %2182 = vmatmul.mubr.bf16.gmra.mxu0 %v2049
        %v2183 = vpop.f32.mrf.mxu0
        %v2184 = vadd.f32 0.0, %v2183
        %v2185 = vpop.f32.mrf.mxu0
        %v2186 = vpop.f32.mrf.mxu0
        %v2187 = vadd.f32 0.0, %v2186
        %v2188 = vpop.f32.mrf.mxu0
        %2189 = vmatprep.mubr.bf16.mxu0 0
        %2190 = vmatmul.mubr.bf16.gmra.mxu0 %v2050
        %v2191 = vpop.f32.mrf.mxu0
        %v2192 = vadd.f32 0.0, %v2191
        %v2193 = vpop.f32.mrf.mxu0
        %v2194 = vpop.f32.mrf.mxu0
        %v2195 = vadd.f32 0.0, %v2194
        %v2196 = vpop.f32.mrf.mxu0
        %2197 = vdwg.mxu0
        %v2198 = vadd.f32 %v1998, %v2136
        %v2199 = vadd.f32 %v1999, %v2139
        %v2200 = vadd.f32 %v2000, %v2144
        %v2201 = vadd.f32 %v2001, %v2147
        %v2202 = vadd.f32 %v2002, %v2152
        %v2203 = vadd.f32 %v2003, %v2155
        %v2204 = vadd.f32 %v2004, %v2160
        %v2205 = vadd.f32 %v2005, %v2163
        %v2206 = vadd.f32 %v2006, %v2168
        %v2207 = vadd.f32 %v2007, %v2171
        %v2208 = vadd.f32 %v2008, %v2176
        %v2209 = vadd.f32 %v2009, %v2179
        %v2210 = vadd.f32 %v2010, %v2184
        %v2211 = vadd.f32 %v2011, %v2187
        %v2212 = vadd.f32 %v2012, %v2192
        %v2213 = vadd.f32 %v2013, %v2195
        %v2220 = vrot.slane %v555, 5
        %v2221 = vrot.slane %v2220, 4
        %v2222 = vrot.slane %v556, 5
        %v2223 = vsel %vm933, %v2221, %v2222
        %v2224 = vrot.slane %v2222, 4
        %v2225 = vrot.slane %v557, 5
        %v2226 = vsel %vm933, %v2224, %v2225
        %v2227 = vrot.slane %v558, 5
        %v2228 = vrot.slane %v2227, 4
        %v2229 = vrot.slane %v559, 5
        %v2230 = vsel %vm933, %v2228, %v2229
        %v2231 = vrot.slane %v2229, 4
        %v2232 = vrot.slane %v560, 5
        %v2233 = vsel %vm933, %v2231, %v2232
        %s2234 = scalar_lea.vmem [#allocation7], 384
        %v2235 = vld [vmem:[%s2234] sm:$0xf]
        %v2236 = vld [vmem:[%s2234 + $0x4] sm:$0xf]
        %v2237 = vld [vmem:[%s2234 + $0x8] sm:$0xf]
        %v2238 = vld [vmem:[%s2234 + $0xc] sm:$0xf]
        %v2239 = vld [vmem:[%s2234 + $0x10] sm:$0xf]
        %v2240 = vld [vmem:[%s2234 + $0x14] sm:$0xf]
        %v2241 = vld [vmem:[%s2234 + $0x18] sm:$0xf]
        %v2242 = vld [vmem:[%s2234 + $0x1c] sm:$0xf]
        %v2243 = vld [vmem:[%s2234 + $0x20] sm:$0xf]
        %v2244 = vld [vmem:[%s2234 + $0x24] sm:$0xf]
        %v2245 = vld [vmem:[%s2234 + $0x28] sm:$0xf]
        %v2246 = vld [vmem:[%s2234 + $0x2c] sm:$0xf]
        %v2247 = vld [vmem:[%s2234 + $0x30] sm:$0xf]
        %v2248 = vld [vmem:[%s2234 + $0x34] sm:$0xf]
        %v2249 = vld [vmem:[%s2234 + $0x38] sm:$0xf]
        %v2250 = vld [vmem:[%s2234 + $0x3c] sm:$0xf]
        %v2251 = vunpack.c.l.b16 %v2223
        %v2252 = vunpack.c.l.b16 %v2226
        %v2253 = vunpack.c.l.b16 %v2230
        %v2254 = vunpack.c.l.b16 %v2233
        %v2255 = vpack.c.b16 %v2252, %v2251
        %v2256 = vpack.c.b16 %v2254, %v2253
        %v2275 = vunpack.c.l.b16 %v2235
        %v2276 = vunpack.c.l.b16 %v2236
        %v2277 = vunpack.c.l.b16 %v2237
        %v2278 = vunpack.c.l.b16 %v2238
        %v2279 = vunpack.c.l.b16 %v2239
        %v2280 = vunpack.c.l.b16 %v2240
        %v2281 = vunpack.c.l.b16 %v2241
        %v2282 = vunpack.c.l.b16 %v2242
        %v2283 = vunpack.c.l.b16 %v2243
        %v2284 = vunpack.c.l.b16 %v2244
        %v2285 = vunpack.c.l.b16 %v2245
        %v2286 = vunpack.c.l.b16 %v2246
        %v2287 = vunpack.c.l.b16 %v2247
        %v2288 = vunpack.c.l.b16 %v2248
        %v2289 = vunpack.c.l.b16 %v2249
        %v2290 = vunpack.c.l.b16 %v2250
        %v2291 = vpack.c.b16 %v2276, %v2275
        %v2292 = vpack.c.b16 %v2278, %v2277
        %v2293 = vpack.c.b16 %v2280, %v2279
        %v2294 = vpack.c.b16 %v2282, %v2281
        %v2295 = vpack.c.b16 %v2284, %v2283
        %v2296 = vpack.c.b16 %v2286, %v2285
        %v2297 = vpack.c.b16 %v2288, %v2287
        %v2298 = vpack.c.b16 %v2290, %v2289
        %2307 = vmatprep.subr.bf16.mxu0 0
        %2308 = vmatpush1.bf16.msra.mxu0 %v2298
        %2309 = vmatprep.subr.bf16.mxu0 0
        %2310 = vmatpush1.bf16.msra.mxu0 %v2297
        %2311 = vmatprep.subr.bf16.mxu0 0
        %2312 = vmatpush1.bf16.msra.mxu0 %v2296
        %2313 = vmatprep.subr.bf16.mxu0 0
        %2314 = vmatpush1.bf16.msra.mxu0 %v2295
        %2315 = vmatprep.subr.bf16.mxu0 0
        %2316 = vmatpush1.bf16.msra.mxu0 %v2294
        %2317 = vmatprep.subr.bf16.mxu0 0
        %2318 = vmatpush1.bf16.msra.mxu0 %v2293
        %2319 = vmatprep.subr.bf16.mxu0 0
        %2320 = vmatpush1.bf16.msra.mxu0 %v2292
        %2321 = vmatprep.subr.bf16.mxu0 0
        %2322 = vmatpush1.bf16.msra.mxu0 %v2291
        %2323 = vmatprep.subr.bf16.mxu0 0
        %2324 = vmatpush2.bf16.msra.mxu0 0
        %2325 = vmatprep.subr.bf16.mxu0 0
        %2326 = vmatpush2.bf16.msra.mxu0 0
        %2327 = vmatprep.subr.bf16.mxu0 0
        %2328 = vmatpush2.bf16.msra.mxu0 0
        %2329 = vmatprep.subr.bf16.mxu0 0
        %2330 = vmatpush2.bf16.msra.mxu0 0
        %2331 = vmatprep.subr.bf16.mxu0 0
        %2332 = vmatpush2.bf16.msra.mxu0 0
        %2333 = vmatprep.subr.bf16.mxu0 0
        %2334 = vmatpush2.bf16.msra.mxu0 0
        %2335 = vmatprep.subr.bf16.mxu0 0
        %2336 = vmatpush2.bf16.msra.mxu0 0
        %2337 = vmatprep.subr.bf16.mxu0 0
        %2338 = vmatpush2.bf16.msra.mxu0 0
        %2339 = vmatprep.mubr.bf16.mxu0 0
        %2340 = vmatmul.mubr.bf16.gmra.mxu0 %v1210
        %v2341 = vpop.f32.mrf.mxu0
        %v2342 = vadd.f32 0.0, %v2341
        %v2343 = vpop.f32.mrf.mxu0
        %v2344 = vpop.f32.mrf.mxu0
        %v2345 = vadd.f32 0.0, %v2344
        %v2346 = vpop.f32.mrf.mxu0
        %2347 = vmatprep.mubr.bf16.mxu0 0
        %2348 = vmatmul.mubr.bf16.gmra.mxu0 %v1211
        %v2349 = vpop.f32.mrf.mxu0
        %v2350 = vadd.f32 0.0, %v2349
        %v2351 = vpop.f32.mrf.mxu0
        %v2352 = vpop.f32.mrf.mxu0
        %v2353 = vadd.f32 0.0, %v2352
        %v2354 = vpop.f32.mrf.mxu0
        %2355 = vmatprep.mubr.bf16.mxu0 0
        %2356 = vmatmul.mubr.bf16.gmra.mxu0 %v1212
        %v2357 = vpop.f32.mrf.mxu0
        %v2358 = vadd.f32 0.0, %v2357
        %v2359 = vpop.f32.mrf.mxu0
        %v2360 = vpop.f32.mrf.mxu0
        %v2361 = vadd.f32 0.0, %v2360
        %v2362 = vpop.f32.mrf.mxu0
        %2363 = vmatprep.mubr.bf16.mxu0 0
        %2364 = vmatmul.mubr.bf16.gmra.mxu0 %v1213
        %v2365 = vpop.f32.mrf.mxu0
        %v2366 = vadd.f32 0.0, %v2365
        %v2367 = vpop.f32.mrf.mxu0
        %v2368 = vpop.f32.mrf.mxu0
        %v2369 = vadd.f32 0.0, %v2368
        %v2370 = vpop.f32.mrf.mxu0
        %2371 = vmatprep.mubr.bf16.mxu0 0
        %2372 = vmatmul.mubr.bf16.gmra.mxu0 %v1671
        %v2373 = vpop.f32.mrf.mxu0
        %v2374 = vadd.f32 0.0, %v2373
        %v2375 = vpop.f32.mrf.mxu0
        %v2376 = vpop.f32.mrf.mxu0
        %v2377 = vadd.f32 0.0, %v2376
        %v2378 = vpop.f32.mrf.mxu0
        %2379 = vmatprep.mubr.bf16.mxu0 0
        %2380 = vmatmul.mubr.bf16.gmra.mxu0 %v1672
        %v2381 = vpop.f32.mrf.mxu0
        %v2382 = vadd.f32 0.0, %v2381
        %v2383 = vpop.f32.mrf.mxu0
        %v2384 = vpop.f32.mrf.mxu0
        %v2385 = vadd.f32 0.0, %v2384
        %v2386 = vpop.f32.mrf.mxu0
        %2387 = vmatprep.mubr.bf16.mxu0 0
        %2388 = vmatmul.mubr.bf16.gmra.mxu0 %v2255
        %v2389 = vpop.f32.mrf.mxu0
        %v2390 = vadd.f32 0.0, %v2389
        %v2391 = vpop.f32.mrf.mxu0
        %v2392 = vpop.f32.mrf.mxu0
        %v2393 = vadd.f32 0.0, %v2392
        %v2394 = vpop.f32.mrf.mxu0
        %2395 = vmatprep.mubr.bf16.mxu0 0
        %2396 = vmatmul.mubr.bf16.gmra.mxu0 %v2256
        %v2397 = vpop.f32.mrf.mxu0
        %v2398 = vadd.f32 0.0, %v2397
        %v2399 = vpop.f32.mrf.mxu0
        %v2400 = vpop.f32.mrf.mxu0
        %v2401 = vadd.f32 0.0, %v2400
        %v2402 = vpop.f32.mrf.mxu0
        %2403 = vdwg.mxu0
        %v2404 = vadd.f32 %v2198, %v2342
        %v2405 = vadd.f32 %v2199, %v2345
        %v2406 = vadd.f32 %v2200, %v2350
        %v2407 = vadd.f32 %v2201, %v2353
        %v2408 = vadd.f32 %v2202, %v2358
        %v2409 = vadd.f32 %v2203, %v2361
        %v2410 = vadd.f32 %v2204, %v2366
        %v2411 = vadd.f32 %v2205, %v2369
        %v2412 = vadd.f32 %v2206, %v2374
        %v2413 = vadd.f32 %v2207, %v2377
        %v2414 = vadd.f32 %v2208, %v2382
        %v2415 = vadd.f32 %v2209, %v2385
        %v2416 = vadd.f32 %v2210, %v2390
        %v2417 = vadd.f32 %v2211, %v2393
        %v2418 = vadd.f32 %v2212, %v2398
        %v2419 = vadd.f32 %v2213, %v2401
        %v2420 = vrot.slane %v555, 6
        %v2421 = vrot.slane %v2420, 4
        %v2422 = vrot.slane %v556, 6
        %v2423 = vsel %vm595, %v2421, %v2422
        %v2424 = vrot.slane %v2422, 4
        %v2425 = vrot.slane %v557, 6
        %v2426 = vsel %vm595, %v2424, %v2425
        %v2427 = vrot.slane %v558, 6
        %v2428 = vrot.slane %v2427, 4
        %v2429 = vrot.slane %v559, 6
        %v2430 = vsel %vm595, %v2428, %v2429
        %v2431 = vrot.slane %v2429, 4
        %v2432 = vrot.slane %v560, 6
        %v2433 = vsel %vm595, %v2431, %v2432
        %s2434 = scalar_lea.vmem [#allocation7], 448
        %v2435 = vld [vmem:[%s2434] sm:$0xf]
        %v2436 = vld [vmem:[%s2434 + $0x4] sm:$0xf]
        %v2437 = vld [vmem:[%s2434 + $0x8] sm:$0xf]
        %v2438 = vld [vmem:[%s2434 + $0xc] sm:$0xf]
        %v2439 = vld [vmem:[%s2434 + $0x10] sm:$0xf]
        %v2440 = vld [vmem:[%s2434 + $0x14] sm:$0xf]
        %v2441 = vld [vmem:[%s2434 + $0x18] sm:$0xf]
        %v2442 = vld [vmem:[%s2434 + $0x1c] sm:$0xf]
        %v2443 = vld [vmem:[%s2434 + $0x20] sm:$0xf]
        %v2444 = vld [vmem:[%s2434 + $0x24] sm:$0xf]
        %v2445 = vld [vmem:[%s2434 + $0x28] sm:$0xf]
        %v2446 = vld [vmem:[%s2434 + $0x2c] sm:$0xf]
        %v2447 = vld [vmem:[%s2434 + $0x30] sm:$0xf]
        %v2448 = vld [vmem:[%s2434 + $0x34] sm:$0xf]
        %v2449 = vld [vmem:[%s2434 + $0x38] sm:$0xf]
        %v2450 = vld [vmem:[%s2434 + $0x3c] sm:$0xf]
        %v2451 = vunpack.c.l.b16 %v2423
        %v2452 = vunpack.c.l.b16 %v2426
        %v2453 = vunpack.c.l.b16 %v2430
        %v2454 = vunpack.c.l.b16 %v2433
        %v2455 = vpack.c.b16 %v2452, %v2451
        %v2456 = vpack.c.b16 %v2454, %v2453
        %v2475 = vunpack.c.l.b16 %v2435
        %v2476 = vunpack.c.l.b16 %v2436
        %v2477 = vunpack.c.l.b16 %v2437
        %v2478 = vunpack.c.l.b16 %v2438
        %v2479 = vunpack.c.l.b16 %v2439
        %v2480 = vunpack.c.l.b16 %v2440
        %v2481 = vunpack.c.l.b16 %v2441
        %v2482 = vunpack.c.l.b16 %v2442
        %v2483 = vunpack.c.l.b16 %v2443
        %v2484 = vunpack.c.l.b16 %v2444
        %v2485 = vunpack.c.l.b16 %v2445
        %v2486 = vunpack.c.l.b16 %v2446
        %v2487 = vunpack.c.l.b16 %v2447
        %v2488 = vunpack.c.l.b16 %v2448
        %v2489 = vunpack.c.l.b16 %v2449
        %v2490 = vunpack.c.l.b16 %v2450
        %v2491 = vpack.c.b16 %v2476, %v2475
        %v2492 = vpack.c.b16 %v2478, %v2477
        %v2493 = vpack.c.b16 %v2480, %v2479
        %v2494 = vpack.c.b16 %v2482, %v2481
        %v2495 = vpack.c.b16 %v2484, %v2483
        %v2496 = vpack.c.b16 %v2486, %v2485
        %v2497 = vpack.c.b16 %v2488, %v2487
        %v2498 = vpack.c.b16 %v2490, %v2489
        %2507 = vmatprep.subr.bf16.mxu0 0
        %2508 = vmatpush1.bf16.msra.mxu0 %v2498
        %2509 = vmatprep.subr.bf16.mxu0 0
        %2510 = vmatpush1.bf16.msra.mxu0 %v2497
        %2511 = vmatprep.subr.bf16.mxu0 0
        %2512 = vmatpush1.bf16.msra.mxu0 %v2496
        %2513 = vmatprep.subr.bf16.mxu0 0
        %2514 = vmatpush1.bf16.msra.mxu0 %v2495
        %2515 = vmatprep.subr.bf16.mxu0 0
        %2516 = vmatpush1.bf16.msra.mxu0 %v2494
        %2517 = vmatprep.subr.bf16.mxu0 0
        %2518 = vmatpush1.bf16.msra.mxu0 %v2493
        %2519 = vmatprep.subr.bf16.mxu0 0
        %2520 = vmatpush1.bf16.msra.mxu0 %v2492
        %2521 = vmatprep.subr.bf16.mxu0 0
        %2522 = vmatpush1.bf16.msra.mxu0 %v2491
        %2523 = vmatprep.subr.bf16.mxu0 0
        %2524 = vmatpush2.bf16.msra.mxu0 0
        %2525 = vmatprep.subr.bf16.mxu0 0
        %2526 = vmatpush2.bf16.msra.mxu0 0
        %2527 = vmatprep.subr.bf16.mxu0 0
        %2528 = vmatpush2.bf16.msra.mxu0 0
        %2529 = vmatprep.subr.bf16.mxu0 0
        %2530 = vmatpush2.bf16.msra.mxu0 0
        %2531 = vmatprep.subr.bf16.mxu0 0
        %2532 = vmatpush2.bf16.msra.mxu0 0
        %2533 = vmatprep.subr.bf16.mxu0 0
        %2534 = vmatpush2.bf16.msra.mxu0 0
        %2535 = vmatprep.subr.bf16.mxu0 0
        %2536 = vmatpush2.bf16.msra.mxu0 0
        %2537 = vmatprep.subr.bf16.mxu0 0
        %2538 = vmatpush2.bf16.msra.mxu0 0
        %2539 = vmatprep.mubr.bf16.mxu0 0
        %2540 = vmatmul.mubr.bf16.gmra.mxu0 %v686
        %v2541 = vpop.f32.mrf.mxu0
        %v2542 = vadd.f32 0.0, %v2541
        %v2543 = vpop.f32.mrf.mxu0
        %v2544 = vpop.f32.mrf.mxu0
        %v2545 = vadd.f32 0.0, %v2544
        %v2546 = vpop.f32.mrf.mxu0
        %2547 = vmatprep.mubr.bf16.mxu0 0
        %2548 = vmatmul.mubr.bf16.gmra.mxu0 %v687
        %v2549 = vpop.f32.mrf.mxu0
        %v2550 = vadd.f32 0.0, %v2549
        %v2551 = vpop.f32.mrf.mxu0
        %v2552 = vpop.f32.mrf.mxu0
        %v2553 = vadd.f32 0.0, %v2552
        %v2554 = vpop.f32.mrf.mxu0
        %2555 = vmatprep.mubr.bf16.mxu0 0
        %2556 = vmatmul.mubr.bf16.gmra.mxu0 %v688
        %v2557 = vpop.f32.mrf.mxu0
        %v2558 = vadd.f32 0.0, %v2557
        %v2559 = vpop.f32.mrf.mxu0
        %v2560 = vpop.f32.mrf.mxu0
        %v2561 = vadd.f32 0.0, %v2560
        %v2562 = vpop.f32.mrf.mxu0
        %2563 = vmatprep.mubr.bf16.mxu0 0
        %2564 = vmatmul.mubr.bf16.gmra.mxu0 %v689
        %v2565 = vpop.f32.mrf.mxu0
        %v2566 = vadd.f32 0.0, %v2565
        %v2567 = vpop.f32.mrf.mxu0
        %v2568 = vpop.f32.mrf.mxu0
        %v2569 = vadd.f32 0.0, %v2568
        %v2570 = vpop.f32.mrf.mxu0
        %2571 = vmatprep.mubr.bf16.mxu0 0
        %2572 = vmatmul.mubr.bf16.gmra.mxu0 %v690
        %v2573 = vpop.f32.mrf.mxu0
        %v2574 = vadd.f32 0.0, %v2573
        %v2575 = vpop.f32.mrf.mxu0
        %v2576 = vpop.f32.mrf.mxu0
        %v2577 = vadd.f32 0.0, %v2576
        %v2578 = vpop.f32.mrf.mxu0
        %2579 = vmatprep.mubr.bf16.mxu0 0
        %2580 = vmatmul.mubr.bf16.gmra.mxu0 %v691
        %v2581 = vpop.f32.mrf.mxu0
        %v2582 = vadd.f32 0.0, %v2581
        %v2583 = vpop.f32.mrf.mxu0
        %v2584 = vpop.f32.mrf.mxu0
        %v2585 = vadd.f32 0.0, %v2584
        %v2586 = vpop.f32.mrf.mxu0
        %2587 = vmatprep.mubr.bf16.mxu0 0
        %2588 = vmatmul.mubr.bf16.gmra.mxu0 %v2455
        %v2589 = vpop.f32.mrf.mxu0
        %v2590 = vadd.f32 0.0, %v2589
        %v2591 = vpop.f32.mrf.mxu0
        %v2592 = vpop.f32.mrf.mxu0
        %v2593 = vadd.f32 0.0, %v2592
        %v2594 = vpop.f32.mrf.mxu0
        %2595 = vmatprep.mubr.bf16.mxu0 0
        %2596 = vmatmul.mubr.bf16.gmra.mxu0 %v2456
        %v2597 = vpop.f32.mrf.mxu0
        %v2598 = vadd.f32 0.0, %v2597
        %v2599 = vpop.f32.mrf.mxu0
        %v2600 = vpop.f32.mrf.mxu0
        %v2601 = vadd.f32 0.0, %v2600
        %v2602 = vpop.f32.mrf.mxu0
        %2603 = vdwg.mxu0
        %v2604 = vadd.f32 %v2404, %v2542
        %v2605 = vadd.f32 %v2405, %v2545
        %v2606 = vadd.f32 %v2406, %v2550
        %v2607 = vadd.f32 %v2407, %v2553
        %v2608 = vadd.f32 %v2408, %v2558
        %v2609 = vadd.f32 %v2409, %v2561
        %v2610 = vadd.f32 %v2410, %v2566
        %v2611 = vadd.f32 %v2411, %v2569
        %v2612 = vadd.f32 %v2412, %v2574
        %v2613 = vadd.f32 %v2413, %v2577
        %v2614 = vadd.f32 %v2414, %v2582
        %v2615 = vadd.f32 %v2415, %v2585
        %v2616 = vadd.f32 %v2416, %v2590
        %v2617 = vadd.f32 %v2417, %v2593
        %v2618 = vadd.f32 %v2418, %v2598
        %v2619 = vadd.f32 %v2419, %v2601
        %v2620 = vrot.slane %v555, 7
        %v2621 = vrot.slane %v2620, 4
        %v2622 = vrot.slane %v556, 7
        %v2623 = vsel %vm1369, %v2621, %v2622
        %v2624 = vrot.slane %v2622, 4
        %v2625 = vrot.slane %v557, 7
        %v2626 = vsel %vm1369, %v2624, %v2625
        %v2627 = vrot.slane %v558, 7
        %v2628 = vrot.slane %v2627, 4
        %v2629 = vrot.slane %v559, 7
        %v2630 = vsel %vm1369, %v2628, %v2629
        %v2631 = vrot.slane %v2629, 4
        %v2632 = vrot.slane %v560, 7
        %v2633 = vsel %vm1369, %v2631, %v2632
        %s2634 = scalar_lea.vmem [#allocation7], 512
        %v2635 = vld [vmem:[%s2634] sm:$0xf]
        %v2636 = vld [vmem:[%s2634 + $0x4] sm:$0xf]
        %v2637 = vld [vmem:[%s2634 + $0x8] sm:$0xf]
        %v2638 = vld [vmem:[%s2634 + $0xc] sm:$0xf]
        %v2639 = vld [vmem:[%s2634 + $0x10] sm:$0xf]
        %v2640 = vld [vmem:[%s2634 + $0x14] sm:$0xf]
        %v2641 = vld [vmem:[%s2634 + $0x18] sm:$0xf]
        %v2642 = vld [vmem:[%s2634 + $0x1c] sm:$0xf]
        %v2643 = vld [vmem:[%s2634 + $0x20] sm:$0xf]
        %v2644 = vld [vmem:[%s2634 + $0x24] sm:$0xf]
        %v2645 = vld [vmem:[%s2634 + $0x28] sm:$0xf]
        %v2646 = vld [vmem:[%s2634 + $0x2c] sm:$0xf]
        %v2647 = vld [vmem:[%s2634 + $0x30] sm:$0xf]
        %v2648 = vld [vmem:[%s2634 + $0x34] sm:$0xf]
        %v2649 = vld [vmem:[%s2634 + $0x38] sm:$0xf]
        %v2650 = vld [vmem:[%s2634 + $0x3c] sm:$0xf]
        %v2651 = vunpack.c.l.b16 %v2623
        %v2652 = vunpack.c.l.b16 %v2626
        %v2653 = vunpack.c.l.b16 %v2630
        %v2654 = vunpack.c.l.b16 %v2633
        %v2655 = vpack.c.b16 %v2652, %v2651
        %v2656 = vpack.c.b16 %v2654, %v2653
        %v2675 = vunpack.c.l.b16 %v2635
        %v2676 = vunpack.c.l.b16 %v2636
        %v2677 = vunpack.c.l.b16 %v2637
        %v2678 = vunpack.c.l.b16 %v2638
        %v2679 = vunpack.c.l.b16 %v2639
        %v2680 = vunpack.c.l.b16 %v2640
        %v2681 = vunpack.c.l.b16 %v2641
        %v2682 = vunpack.c.l.b16 %v2642
        %v2683 = vunpack.c.l.b16 %v2643
        %v2684 = vunpack.c.l.b16 %v2644
        %v2685 = vunpack.c.l.b16 %v2645
        %v2686 = vunpack.c.l.b16 %v2646
        %v2687 = vunpack.c.l.b16 %v2647
        %v2688 = vunpack.c.l.b16 %v2648
        %v2689 = vunpack.c.l.b16 %v2649
        %v2690 = vunpack.c.l.b16 %v2650
        %v2691 = vpack.c.b16 %v2676, %v2675
        %v2692 = vpack.c.b16 %v2678, %v2677
        %v2693 = vpack.c.b16 %v2680, %v2679
        %v2694 = vpack.c.b16 %v2682, %v2681
        %v2695 = vpack.c.b16 %v2684, %v2683
        %v2696 = vpack.c.b16 %v2686, %v2685
        %v2697 = vpack.c.b16 %v2688, %v2687
        %v2698 = vpack.c.b16 %v2690, %v2689
        %2707 = vmatprep.subr.bf16.mxu0 0
        %2708 = vmatpush1.bf16.msra.mxu0 %v2698
        %2709 = vmatprep.subr.bf16.mxu0 0
        %2710 = vmatpush1.bf16.msra.mxu0 %v2697
        %2711 = vmatprep.subr.bf16.mxu0 0
        %2712 = vmatpush1.bf16.msra.mxu0 %v2696
        %2713 = vmatprep.subr.bf16.mxu0 0
        %2714 = vmatpush1.bf16.msra.mxu0 %v2695
        %2715 = vmatprep.subr.bf16.mxu0 0
        %2716 = vmatpush1.bf16.msra.mxu0 %v2694
        %2717 = vmatprep.subr.bf16.mxu0 0
        %2718 = vmatpush1.bf16.msra.mxu0 %v2693
        %2719 = vmatprep.subr.bf16.mxu0 0
        %2720 = vmatpush1.bf16.msra.mxu0 %v2692
        %2721 = vmatprep.subr.bf16.mxu0 0
        %2722 = vmatpush1.bf16.msra.mxu0 %v2691
        %2723 = vmatprep.subr.bf16.mxu0 0
        %2724 = vmatpush2.bf16.msra.mxu0 0
        %2725 = vmatprep.subr.bf16.mxu0 0
        %2726 = vmatpush2.bf16.msra.mxu0 0
        %2727 = vmatprep.subr.bf16.mxu0 0
        %2728 = vmatpush2.bf16.msra.mxu0 0
        %2729 = vmatprep.subr.bf16.mxu0 0
        %2730 = vmatpush2.bf16.msra.mxu0 0
        %2731 = vmatprep.subr.bf16.mxu0 0
        %2732 = vmatpush2.bf16.msra.mxu0 0
        %2733 = vmatprep.subr.bf16.mxu0 0
        %2734 = vmatpush2.bf16.msra.mxu0 0
        %2735 = vmatprep.subr.bf16.mxu0 0
        %2736 = vmatpush2.bf16.msra.mxu0 0
        %2737 = vmatprep.subr.bf16.mxu0 0
        %2738 = vmatpush2.bf16.msra.mxu0 0
        %2739 = vmatprep.mubr.bf16.mxu0 0
        %2740 = vmatmul.mubr.bf16.gmra.mxu0 %v1463
        %v2741 = vpop.f32.mrf.mxu0
        %v2742 = vadd.f32 0.0, %v2741
        %v2743 = vpop.f32.mrf.mxu0
        %v2744 = vpop.f32.mrf.mxu0
        %v2745 = vadd.f32 0.0, %v2744
        %v2746 = vpop.f32.mrf.mxu0
        %2747 = vmatprep.mubr.bf16.mxu0 0
        %2748 = vmatmul.mubr.bf16.gmra.mxu0 %v1464
        %v2749 = vpop.f32.mrf.mxu0
        %v2750 = vadd.f32 0.0, %v2749
        %v2751 = vpop.f32.mrf.mxu0
        %v2752 = vpop.f32.mrf.mxu0
        %v2753 = vadd.f32 0.0, %v2752
        %v2754 = vpop.f32.mrf.mxu0
        %2755 = vmatprep.mubr.bf16.mxu0 0
        %2756 = vmatmul.mubr.bf16.gmra.mxu0 %v1465
        %v2757 = vpop.f32.mrf.mxu0
        %v2758 = vadd.f32 0.0, %v2757
        %v2759 = vpop.f32.mrf.mxu0
        %v2760 = vpop.f32.mrf.mxu0
        %v2761 = vadd.f32 0.0, %v2760
        %v2762 = vpop.f32.mrf.mxu0
        %2763 = vmatprep.mubr.bf16.mxu0 0
        %2764 = vmatmul.mubr.bf16.gmra.mxu0 %v1466
        %v2765 = vpop.f32.mrf.mxu0
        %v2766 = vadd.f32 0.0, %v2765
        %v2767 = vpop.f32.mrf.mxu0
        %v2768 = vpop.f32.mrf.mxu0
        %v2769 = vadd.f32 0.0, %v2768
        %v2770 = vpop.f32.mrf.mxu0
        %2771 = vmatprep.mubr.bf16.mxu0 0
        %2772 = vmatmul.mubr.bf16.gmra.mxu0 %v2049
        %v2773 = vpop.f32.mrf.mxu0
        %v2774 = vadd.f32 0.0, %v2773
        %v2775 = vpop.f32.mrf.mxu0
        %v2776 = vpop.f32.mrf.mxu0
        %v2777 = vadd.f32 0.0, %v2776
        %v2778 = vpop.f32.mrf.mxu0
        %2779 = vmatprep.mubr.bf16.mxu0 0
        %2780 = vmatmul.mubr.bf16.gmra.mxu0 %v2050
        %v2781 = vpop.f32.mrf.mxu0
        %v2782 = vadd.f32 0.0, %v2781
        %v2783 = vpop.f32.mrf.mxu0
        %v2784 = vpop.f32.mrf.mxu0
        %v2785 = vadd.f32 0.0, %v2784
        %v2786 = vpop.f32.mrf.mxu0
        %2787 = vmatprep.mubr.bf16.mxu0 0
        %2788 = vmatmul.mubr.bf16.gmra.mxu0 %v2655
        %v2789 = vpop.f32.mrf.mxu0
        %v2790 = vadd.f32 0.0, %v2789
        %v2791 = vpop.f32.mrf.mxu0
        %v2792 = vpop.f32.mrf.mxu0
        %v2793 = vadd.f32 0.0, %v2792
        %v2794 = vpop.f32.mrf.mxu0
        %2795 = vmatprep.mubr.bf16.mxu0 0
        %2796 = vmatmul.mubr.bf16.gmra.mxu0 %v2656
        %v2797 = vpop.f32.mrf.mxu0
        %v2798 = vadd.f32 0.0, %v2797
        %v2799 = vpop.f32.mrf.mxu0
        %v2800 = vpop.f32.mrf.mxu0
        %v2801 = vadd.f32 0.0, %v2800
        %v2802 = vpop.f32.mrf.mxu0
        %2803 = vdwg.mxu0
        %v2804 = vadd.f32 %v2604, %v2742
        %v2805 = vadd.f32 %v2605, %v2745
        %v2806 = vadd.f32 %v2606, %v2750
        %v2807 = vadd.f32 %v2607, %v2753
        %v2808 = vadd.f32 %v2608, %v2758
        %v2809 = vadd.f32 %v2609, %v2761
        %v2810 = vadd.f32 %v2610, %v2766
        %v2811 = vadd.f32 %v2611, %v2769
        %v2812 = vadd.f32 %v2612, %v2774
        %v2813 = vadd.f32 %v2613, %v2777
        %v2814 = vadd.f32 %v2614, %v2782
        %v2815 = vadd.f32 %v2615, %v2785
        %v2816 = vadd.f32 %v2616, %v2790
        %v2817 = vadd.f32 %v2617, %v2793
        %v2818 = vadd.f32 %v2618, %v2798
        %v2819 = vadd.f32 %v2619, %v2801
        %v2820 = vlaneseq
        %v2821 = vshrl.u32 %v2820, 7
        %v2822 = vsub.s32 1, %v2821
        %v2823 = vrot.slane %v567, %v2822
        %v2824 = vmul.f32 %v2804, %v2823
        %v2825 = vmul.f32 %v2805, %v2823
        %v2826 = vmul.f32 %v2806, %v2823
        %v2827 = vmul.f32 %v2807, %v2823
        %v2828 = vmul.f32 %v2808, %v2823
        %v2829 = vmul.f32 %v2809, %v2823
        %v2830 = vmul.f32 %v2810, %v2823
        %v2831 = vmul.f32 %v2811, %v2823
        %v2832 = vmul.f32 %v2812, %v2823
        %v2833 = vmul.f32 %v2813, %v2823
        %v2834 = vmul.f32 %v2814, %v2823
        %v2835 = vmul.f32 %v2815, %v2823
        %v2836 = vmul.f32 %v2816, %v2823
        %v2837 = vmul.f32 %v2817, %v2823
        %v2838 = vmul.f32 %v2818, %v2823
        %v2839 = vmul.f32 %v2819, %v2823
        %v2840 = vlaneseq
        %v2841 = vshrl.u32 %v2840, 7
        %v2842 = vsub.s32 1, %v2841
        %v2843 = vrot.slane %v568, %v2842
        %v2844 = vadd.f32 %v2824, %v2843
        %v2845 = vadd.f32 %v2825, %v2843
        %v2846 = vadd.f32 %v2826, %v2843
        %v2847 = vadd.f32 %v2827, %v2843
        %v2848 = vadd.f32 %v2828, %v2843
        %v2849 = vadd.f32 %v2829, %v2843
        %v2850 = vadd.f32 %v2830, %v2843
        %v2851 = vadd.f32 %v2831, %v2843
        %v2852 = vadd.f32 %v2832, %v2843
        %v2853 = vadd.f32 %v2833, %v2843
        %v2854 = vadd.f32 %v2834, %v2843
        %v2855 = vadd.f32 %v2835, %v2843
        %v2856 = vadd.f32 %v2836, %v2843
        %v2857 = vadd.f32 %v2837, %v2843
        %v2858 = vadd.f32 %v2838, %v2843
        %v2859 = vadd.f32 %v2839, %v2843
        %v2860 = vmax.f32 %v2844, 0.0
        %v2861 = vmax.f32 %v2845, 0.0
        %v2862 = vmax.f32 %v2846, 0.0
        %v2863 = vmax.f32 %v2847, 0.0
        %v2864 = vmax.f32 %v2848, 0.0
        %v2865 = vmax.f32 %v2849, 0.0
        %v2866 = vmax.f32 %v2850, 0.0
        %v2867 = vmax.f32 %v2851, 0.0
        %v2868 = vmax.f32 %v2852, 0.0
        %v2869 = vmax.f32 %v2853, 0.0
        %v2870 = vmax.f32 %v2854, 0.0
        %v2871 = vmax.f32 %v2855, 0.0
        %v2872 = vmax.f32 %v2856, 0.0
        %v2873 = vmax.f32 %v2857, 0.0
        %v2874 = vmax.f32 %v2858, 0.0
        %v2875 = vmax.f32 %v2859, 0.0
        %v2876 = vpack.c.bf16 %v2861, %v2860
        %v2877 = vpack.c.bf16 %v2863, %v2862
        %v2878 = vpack.c.bf16 %v2865, %v2864
        %v2879 = vpack.c.bf16 %v2867, %v2866
        %v2880 = vpack.c.bf16 %v2869, %v2868
        %v2881 = vpack.c.bf16 %v2871, %v2870
        %v2882 = vpack.c.bf16 %v2873, %v2872
        %v2883 = vpack.c.bf16 %v2875, %v2874
        %s2884 = scalar_lea.vmem [#allocation11], 64
        %v2885 = vld [vmem:[%s2884] sm:$0xf]
        %v2886 = vld [vmem:[%s2884 + $0x4] sm:$0xf]
        %v2887 = vld [vmem:[%s2884 + $0x8] sm:$0xf]
        %v2888 = vld [vmem:[%s2884 + $0xc] sm:$0xf]
        %v2889 = vld [vmem:[%s2884 + $0x10] sm:$0xf]
        %v2890 = vld [vmem:[%s2884 + $0x14] sm:$0xf]
        %v2891 = vld [vmem:[%s2884 + $0x18] sm:$0xf]
        %v2892 = vld [vmem:[%s2884 + $0x1c] sm:$0xf]
        %v2893 = vld [vmem:[%s2884 + $0x20] sm:$0xf]
        %v2894 = vld [vmem:[%s2884 + $0x24] sm:$0xf]
        %v2895 = vld [vmem:[%s2884 + $0x28] sm:$0xf]
        %v2896 = vld [vmem:[%s2884 + $0x2c] sm:$0xf]
        %v2897 = vld [vmem:[%s2884 + $0x30] sm:$0xf]
        %v2898 = vld [vmem:[%s2884 + $0x34] sm:$0xf]
        %v2899 = vld [vmem:[%s2884 + $0x38] sm:$0xf]
        %v2900 = vld [vmem:[%s2884 + $0x3c] sm:$0xf]
        %v2917 = vunpack.c.l.b16 %v2885
        %v2918 = vunpack.c.l.b16 %v2886
        %v2919 = vunpack.c.l.b16 %v2887
        %v2920 = vunpack.c.l.b16 %v2888
        %v2921 = vunpack.c.l.b16 %v2889
        %v2922 = vunpack.c.l.b16 %v2890
        %v2923 = vunpack.c.l.b16 %v2891
        %v2924 = vunpack.c.l.b16 %v2892
        %v2925 = vunpack.c.l.b16 %v2893
        %v2926 = vunpack.c.l.b16 %v2894
        %v2927 = vunpack.c.l.b16 %v2895
        %v2928 = vunpack.c.l.b16 %v2896
        %v2929 = vunpack.c.l.b16 %v2897
        %v2930 = vunpack.c.l.b16 %v2898
        %v2931 = vunpack.c.l.b16 %v2899
        %v2932 = vunpack.c.l.b16 %v2900
        %v2933 = vpack.c.b16 %v2918, %v2917
        %v2934 = vpack.c.b16 %v2920, %v2919
        %v2935 = vpack.c.b16 %v2922, %v2921
        %v2936 = vpack.c.b16 %v2924, %v2923
        %v2937 = vpack.c.b16 %v2926, %v2925
        %v2938 = vpack.c.b16 %v2928, %v2927
        %v2939 = vpack.c.b16 %v2930, %v2929
        %v2940 = vpack.c.b16 %v2932, %v2931
        %2949 = vmatprep.subr.bf16.mxu0 0
        %2950 = vmatpush1.bf16.msra.mxu0 %v2940
        %2951 = vmatprep.subr.bf16.mxu0 0
        %2952 = vmatpush1.bf16.msra.mxu0 %v2939
        %2953 = vmatprep.subr.bf16.mxu0 0
        %2954 = vmatpush1.bf16.msra.mxu0 %v2938
        %2955 = vmatprep.subr.bf16.mxu0 0
        %2956 = vmatpush1.bf16.msra.mxu0 %v2937
        %2957 = vmatprep.subr.bf16.mxu0 0
        %2958 = vmatpush1.bf16.msra.mxu0 %v2936
        %2959 = vmatprep.subr.bf16.mxu0 0
        %2960 = vmatpush1.bf16.msra.mxu0 %v2935
        %2961 = vmatprep.subr.bf16.mxu0 0
        %2962 = vmatpush1.bf16.msra.mxu0 %v2934
        %2963 = vmatprep.subr.bf16.mxu0 0
        %2964 = vmatpush1.bf16.msra.mxu0 %v2933
        %2965 = vmatprep.subr.bf16.mxu0 0
        %2966 = vmatpush2.bf16.msra.mxu0 0
        %2967 = vmatprep.subr.bf16.mxu0 0
        %2968 = vmatpush2.bf16.msra.mxu0 0
        %2969 = vmatprep.subr.bf16.mxu0 0
        %2970 = vmatpush2.bf16.msra.mxu0 0
        %2971 = vmatprep.subr.bf16.mxu0 0
        %2972 = vmatpush2.bf16.msra.mxu0 0
        %2973 = vmatprep.subr.bf16.mxu0 0
        %2974 = vmatpush2.bf16.msra.mxu0 0
        %2975 = vmatprep.subr.bf16.mxu0 0
        %2976 = vmatpush2.bf16.msra.mxu0 0
        %2977 = vmatprep.subr.bf16.mxu0 0
        %2978 = vmatpush2.bf16.msra.mxu0 0
        %2979 = vmatprep.subr.bf16.mxu0 0
        %2980 = vmatpush2.bf16.msra.mxu0 0
        %2981 = vmatprep.mubr.bf16.mxu0 0
        %2982 = vmatmul.mubr.bf16.gmra.mxu0 %v2876
        %v2983 = vpop.f32.mrf.mxu0
        %v2984 = vadd.f32 0.0, %v2983
        %v2985 = vpop.f32.mrf.mxu0
        %v2986 = vpop.f32.mrf.mxu0
        %v2987 = vadd.f32 0.0, %v2986
        %v2988 = vpop.f32.mrf.mxu0
        %2989 = vmatprep.mubr.bf16.mxu0 0
        %2990 = vmatmul.mubr.bf16.gmra.mxu0 %v2877
        %v2991 = vpop.f32.mrf.mxu0
        %v2992 = vadd.f32 0.0, %v2991
        %v2993 = vpop.f32.mrf.mxu0
        %v2994 = vpop.f32.mrf.mxu0
        %v2995 = vadd.f32 0.0, %v2994
        %v2996 = vpop.f32.mrf.mxu0
        %2997 = vmatprep.mubr.bf16.mxu0 0
        %2998 = vmatmul.mubr.bf16.gmra.mxu0 %v2878
        %v2999 = vpop.f32.mrf.mxu0
        %v3000 = vadd.f32 0.0, %v2999
        %v3001 = vpop.f32.mrf.mxu0
        %v3002 = vpop.f32.mrf.mxu0
        %v3003 = vadd.f32 0.0, %v3002
        %v3004 = vpop.f32.mrf.mxu0
        %3005 = vmatprep.mubr.bf16.mxu0 0
        %3006 = vmatmul.mubr.bf16.gmra.mxu0 %v2879
        %v3007 = vpop.f32.mrf.mxu0
        %v3008 = vadd.f32 0.0, %v3007
        %v3009 = vpop.f32.mrf.mxu0
        %v3010 = vpop.f32.mrf.mxu0
        %v3011 = vadd.f32 0.0, %v3010
        %v3012 = vpop.f32.mrf.mxu0
        %3013 = vmatprep.mubr.bf16.mxu0 0
        %3014 = vmatmul.mubr.bf16.gmra.mxu0 %v2880
        %v3015 = vpop.f32.mrf.mxu0
        %v3016 = vadd.f32 0.0, %v3015
        %v3017 = vpop.f32.mrf.mxu0
        %v3018 = vpop.f32.mrf.mxu0
        %v3019 = vadd.f32 0.0, %v3018
        %v3020 = vpop.f32.mrf.mxu0
        %3021 = vmatprep.mubr.bf16.mxu0 0
        %3022 = vmatmul.mubr.bf16.gmra.mxu0 %v2881
        %v3023 = vpop.f32.mrf.mxu0
        %v3024 = vadd.f32 0.0, %v3023
        %v3025 = vpop.f32.mrf.mxu0
        %v3026 = vpop.f32.mrf.mxu0
        %v3027 = vadd.f32 0.0, %v3026
        %v3028 = vpop.f32.mrf.mxu0
        %3029 = vmatprep.mubr.bf16.mxu0 0
        %3030 = vmatmul.mubr.bf16.gmra.mxu0 %v2882
        %v3031 = vpop.f32.mrf.mxu0
        %v3032 = vadd.f32 0.0, %v3031
        %v3033 = vpop.f32.mrf.mxu0
        %v3034 = vpop.f32.mrf.mxu0
        %v3035 = vadd.f32 0.0, %v3034
        %v3036 = vpop.f32.mrf.mxu0
        %3037 = vmatprep.mubr.bf16.mxu0 0
        %3038 = vmatmul.mubr.bf16.gmra.mxu0 %v2883
        %v3039 = vpop.f32.mrf.mxu0
        %v3040 = vadd.f32 0.0, %v3039
        %v3041 = vpop.f32.mrf.mxu0
        %v3042 = vpop.f32.mrf.mxu0
        %v3043 = vadd.f32 0.0, %v3042
        %v3044 = vpop.f32.mrf.mxu0
        %3045 = vdwg.mxu0
        %v3062 = vunpack.c.l.b16 %v909
        %v3063 = vunpack.c.l.b16 %v910
        %v3064 = vunpack.c.l.b16 %v911
        %v3065 = vunpack.c.l.b16 %v912
        %v3066 = vunpack.c.l.b16 %v913
        %v3067 = vunpack.c.l.b16 %v914
        %v3068 = vunpack.c.l.b16 %v915
        %v3069 = vunpack.c.l.b16 %v916
        %v3070 = vunpack.c.l.b16 %v917
        %v3071 = vunpack.c.l.b16 %v918
        %v3072 = vunpack.c.l.b16 %v919
        %v3073 = vunpack.c.l.b16 %v920
        %v3074 = vunpack.c.l.b16 %v921
        %v3075 = vunpack.c.l.b16 %v922
        %v3076 = vunpack.c.l.b16 %v923
        %v3077 = vunpack.c.l.b16 %v924
        %v3078 = vpack.c.b16 %v3063, %v3062
        %v3079 = vpack.c.b16 %v3065, %v3064
        %v3080 = vpack.c.b16 %v3067, %v3066
        %v3081 = vpack.c.b16 %v3069, %v3068
        %v3082 = vpack.c.b16 %v3071, %v3070
        %v3083 = vpack.c.b16 %v3073, %v3072
        %v3084 = vpack.c.b16 %v3075, %v3074
        %v3085 = vpack.c.b16 %v3077, %v3076
        %3094 = vmatprep.subr.bf16.mxu0 0
        %3095 = vmatpush1.bf16.msra.mxu0 %v3085
        %3096 = vmatprep.subr.bf16.mxu0 0
        %3097 = vmatpush1.bf16.msra.mxu0 %v3084
        %3098 = vmatprep.subr.bf16.mxu0 0
        %3099 = vmatpush1.bf16.msra.mxu0 %v3083
        %3100 = vmatprep.subr.bf16.mxu0 0
        %3101 = vmatpush1.bf16.msra.mxu0 %v3082
        %3102 = vmatprep.subr.bf16.mxu0 0
        %3103 = vmatpush1.bf16.msra.mxu0 %v3081
        %3104 = vmatprep.subr.bf16.mxu0 0
        %3105 = vmatpush1.bf16.msra.mxu0 %v3080
        %3106 = vmatprep.subr.bf16.mxu0 0
        %3107 = vmatpush1.bf16.msra.mxu0 %v3079
        %3108 = vmatprep.subr.bf16.mxu0 0
        %3109 = vmatpush1.bf16.msra.mxu0 %v3078
        %3110 = vmatprep.subr.bf16.mxu0 0
        %3111 = vmatpush2.bf16.msra.mxu0 0
        %3112 = vmatprep.subr.bf16.mxu0 0
        %3113 = vmatpush2.bf16.msra.mxu0 0
        %3114 = vmatprep.subr.bf16.mxu0 0
        %3115 = vmatpush2.bf16.msra.mxu0 0
        %3116 = vmatprep.subr.bf16.mxu0 0
        %3117 = vmatpush2.bf16.msra.mxu0 0
        %3118 = vmatprep.subr.bf16.mxu0 0
        %3119 = vmatpush2.bf16.msra.mxu0 0
        %3120 = vmatprep.subr.bf16.mxu0 0
        %3121 = vmatpush2.bf16.msra.mxu0 0
        %3122 = vmatprep.subr.bf16.mxu0 0
        %3123 = vmatpush2.bf16.msra.mxu0 0
        %3124 = vmatprep.subr.bf16.mxu0 0
        %3125 = vmatpush2.bf16.msra.mxu0 0
        %3126 = vmatprep.mubr.bf16.mxu0 0
        %3127 = vmatmul.mubr.bf16.gmra.mxu0 %v901
        %v3128 = vpop.f32.mrf.mxu0
        %v3129 = vadd.f32 %v2984, %v3128
        %v3130 = vpop.f32.mrf.mxu0
        %v3131 = vpop.f32.mrf.mxu0
        %v3132 = vadd.f32 %v2987, %v3131
        %v3133 = vpop.f32.mrf.mxu0
        %3134 = vmatprep.mubr.bf16.mxu0 0
        %3135 = vmatmul.mubr.bf16.gmra.mxu0 %v902
        %v3136 = vpop.f32.mrf.mxu0
        %v3137 = vadd.f32 %v2992, %v3136
        %v3138 = vpop.f32.mrf.mxu0
        %v3139 = vpop.f32.mrf.mxu0
        %v3140 = vadd.f32 %v2995, %v3139
        %v3141 = vpop.f32.mrf.mxu0
        %3142 = vmatprep.mubr.bf16.mxu0 0
        %3143 = vmatmul.mubr.bf16.gmra.mxu0 %v903
        %v3144 = vpop.f32.mrf.mxu0
        %v3145 = vadd.f32 %v3000, %v3144
        %v3146 = vpop.f32.mrf.mxu0
        %v3147 = vpop.f32.mrf.mxu0
        %v3148 = vadd.f32 %v3003, %v3147
        %v3149 = vpop.f32.mrf.mxu0
        %3150 = vmatprep.mubr.bf16.mxu0 0
        %3151 = vmatmul.mubr.bf16.gmra.mxu0 %v904
        %v3152 = vpop.f32.mrf.mxu0
        %v3153 = vadd.f32 %v3008, %v3152
        %v3154 = vpop.f32.mrf.mxu0
        %v3155 = vpop.f32.mrf.mxu0
        %v3156 = vadd.f32 %v3011, %v3155
        %v3157 = vpop.f32.mrf.mxu0
        %3158 = vmatprep.mubr.bf16.mxu0 0
        %3159 = vmatmul.mubr.bf16.gmra.mxu0 %v905
        %v3160 = vpop.f32.mrf.mxu0
        %v3161 = vadd.f32 %v3016, %v3160
        %v3162 = vpop.f32.mrf.mxu0
        %v3163 = vpop.f32.mrf.mxu0
        %v3164 = vadd.f32 %v3019, %v3163
        %v3165 = vpop.f32.mrf.mxu0
        %3166 = vmatprep.mubr.bf16.mxu0 0
        %3167 = vmatmul.mubr.bf16.gmra.mxu0 %v906
        %v3168 = vpop.f32.mrf.mxu0
        %v3169 = vadd.f32 %v3024, %v3168
        %v3170 = vpop.f32.mrf.mxu0
        %v3171 = vpop.f32.mrf.mxu0
        %v3172 = vadd.f32 %v3027, %v3171
        %v3173 = vpop.f32.mrf.mxu0
        %3174 = vmatprep.mubr.bf16.mxu0 0
        %3175 = vmatmul.mubr.bf16.gmra.mxu0 %v907
        %v3176 = vpop.f32.mrf.mxu0
        %v3177 = vadd.f32 %v3032, %v3176
        %v3178 = vpop.f32.mrf.mxu0
        %v3179 = vpop.f32.mrf.mxu0
        %v3180 = vadd.f32 %v3035, %v3179
        %v3181 = vpop.f32.mrf.mxu0
        %3182 = vmatprep.mubr.bf16.mxu0 0
        %3183 = vmatmul.mubr.bf16.gmra.mxu0 %v908
        %v3184 = vpop.f32.mrf.mxu0
        %v3185 = vadd.f32 %v3040, %v3184
        %v3186 = vpop.f32.mrf.mxu0
        %v3187 = vpop.f32.mrf.mxu0
        %v3188 = vadd.f32 %v3043, %v3187
        %v3189 = vpop.f32.mrf.mxu0
        %3190 = vdwg.mxu0
        %v3191 = vld [vmem:[#allocation8] sm:$0xf]
        %v3192 = vld [vmem:[#allocation8 + $0x4] sm:$0xf]
        %v3193 = vld [vmem:[#allocation8 + $0x8] sm:$0xf]
        %v3194 = vld [vmem:[#allocation8 + $0xc] sm:$0xf]
        %v3195 = vld [vmem:[#allocation8 + $0x10] sm:$0xf]
        %v3196 = vld [vmem:[#allocation8 + $0x14] sm:$0xf]
        %v3197 = vld [vmem:[#allocation8 + $0x18] sm:$0xf]
        %v3198 = vld [vmem:[#allocation8 + $0x1c] sm:$0xf]
        %v3199 = vld [vmem:[#allocation8 + $0x20] sm:$0xf]
        %v3200 = vld [vmem:[#allocation8 + $0x24] sm:$0xf]
        %v3201 = vld [vmem:[#allocation8 + $0x28] sm:$0xf]
        %v3202 = vld [vmem:[#allocation8 + $0x2c] sm:$0xf]
        %v3203 = vld [vmem:[#allocation8 + $0x30] sm:$0xf]
        %v3204 = vld [vmem:[#allocation8 + $0x34] sm:$0xf]
        %v3205 = vld [vmem:[#allocation8 + $0x38] sm:$0xf]
        %v3206 = vld [vmem:[#allocation8 + $0x3c] sm:$0xf]
        %v3213 = vrot.slane %v519, 6
        %v3214 = vrot.slane %v3213, 4
        %v3215 = vrot.slane %v520, 6
        %v3216 = vsel %vm595, %v3214, %v3215
        %v3217 = vrot.slane %v3215, 4
        %v3218 = vrot.slane %v521, 6
        %v3219 = vsel %vm595, %v3217, %v3218
        %v3220 = vrot.slane %v522, 6
        %v3221 = vrot.slane %v3220, 4
        %v3222 = vrot.slane %v523, 6
        %v3223 = vsel %vm595, %v3221, %v3222
        %v3224 = vrot.slane %v3222, 4
        %v3225 = vrot.slane %v524, 6
        %v3226 = vsel %vm595, %v3224, %v3225
        %s3227 = scalar_lea.vmem [#allocation8], 64
        %v3228 = vld [vmem:[%s3227] sm:$0xf]
        %v3229 = vld [vmem:[%s3227 + $0x4] sm:$0xf]
        %v3230 = vld [vmem:[%s3227 + $0x8] sm:$0xf]
        %v3231 = vld [vmem:[%s3227 + $0xc] sm:$0xf]
        %v3232 = vld [vmem:[%s3227 + $0x10] sm:$0xf]
        %v3233 = vld [vmem:[%s3227 + $0x14] sm:$0xf]
        %v3234 = vld [vmem:[%s3227 + $0x18] sm:$0xf]
        %v3235 = vld [vmem:[%s3227 + $0x1c] sm:$0xf]
        %v3236 = vld [vmem:[%s3227 + $0x20] sm:$0xf]
        %v3237 = vld [vmem:[%s3227 + $0x24] sm:$0xf]
        %v3238 = vld [vmem:[%s3227 + $0x28] sm:$0xf]
        %v3239 = vld [vmem:[%s3227 + $0x2c] sm:$0xf]
        %v3240 = vld [vmem:[%s3227 + $0x30] sm:$0xf]
        %v3241 = vld [vmem:[%s3227 + $0x34] sm:$0xf]
        %v3242 = vld [vmem:[%s3227 + $0x38] sm:$0xf]
        %v3243 = vld [vmem:[%s3227 + $0x3c] sm:$0xf]
        %v3244 = vunpack.c.l.b16 %v3216
        %v3245 = vunpack.c.l.b16 %v3219
        %v3246 = vunpack.c.l.b16 %v3223
        %v3247 = vunpack.c.l.b16 %v3226
        %v3248 = vpack.c.b16 %v3245, %v3244
        %v3249 = vpack.c.b16 %v3247, %v3246
        %v3268 = vunpack.c.l.b16 %v3228
        %v3269 = vunpack.c.l.b16 %v3229
        %v3270 = vunpack.c.l.b16 %v3230
        %v3271 = vunpack.c.l.b16 %v3231
        %v3272 = vunpack.c.l.b16 %v3232
        %v3273 = vunpack.c.l.b16 %v3233
        %v3274 = vunpack.c.l.b16 %v3234
        %v3275 = vunpack.c.l.b16 %v3235
        %v3276 = vunpack.c.l.b16 %v3236
        %v3277 = vunpack.c.l.b16 %v3237
        %v3278 = vunpack.c.l.b16 %v3238
        %v3279 = vunpack.c.l.b16 %v3239
        %v3280 = vunpack.c.l.b16 %v3240
        %v3281 = vunpack.c.l.b16 %v3241
        %v3282 = vunpack.c.l.b16 %v3242
        %v3283 = vunpack.c.l.b16 %v3243
        %v3284 = vpack.c.b16 %v3269, %v3268
        %v3285 = vpack.c.b16 %v3271, %v3270
        %v3286 = vpack.c.b16 %v3273, %v3272
        %v3287 = vpack.c.b16 %v3275, %v3274
        %v3288 = vpack.c.b16 %v3277, %v3276
        %v3289 = vpack.c.b16 %v3279, %v3278
        %v3290 = vpack.c.b16 %v3281, %v3280
        %v3291 = vpack.c.b16 %v3283, %v3282
        %3300 = vmatprep.subr.bf16.mxu0 0
        %3301 = vmatpush1.bf16.msra.mxu0 %v3291
        %3302 = vmatprep.subr.bf16.mxu0 0
        %3303 = vmatpush1.bf16.msra.mxu0 %v3290
        %3304 = vmatprep.subr.bf16.mxu0 0
        %3305 = vmatpush1.bf16.msra.mxu0 %v3289
        %3306 = vmatprep.subr.bf16.mxu0 0
        %3307 = vmatpush1.bf16.msra.mxu0 %v3288
        %3308 = vmatprep.subr.bf16.mxu0 0
        %3309 = vmatpush1.bf16.msra.mxu0 %v3287
        %3310 = vmatprep.subr.bf16.mxu0 0
        %3311 = vmatpush1.bf16.msra.mxu0 %v3286
        %3312 = vmatprep.subr.bf16.mxu0 0
        %3313 = vmatpush1.bf16.msra.mxu0 %v3285
        %3314 = vmatprep.subr.bf16.mxu0 0
        %3315 = vmatpush1.bf16.msra.mxu0 %v3284
        %3316 = vmatprep.subr.bf16.mxu0 0
        %3317 = vmatpush2.bf16.msra.mxu0 0
        %3318 = vmatprep.subr.bf16.mxu0 0
        %3319 = vmatpush2.bf16.msra.mxu0 0
        %3320 = vmatprep.subr.bf16.mxu0 0
        %3321 = vmatpush2.bf16.msra.mxu0 0
        %3322 = vmatprep.subr.bf16.mxu0 0
        %3323 = vmatpush2.bf16.msra.mxu0 0
        %3324 = vmatprep.subr.bf16.mxu0 0
        %3325 = vmatpush2.bf16.msra.mxu0 0
        %3326 = vmatprep.subr.bf16.mxu0 0
        %3327 = vmatpush2.bf16.msra.mxu0 0
        %3328 = vmatprep.subr.bf16.mxu0 0
        %3329 = vmatpush2.bf16.msra.mxu0 0
        %3330 = vmatprep.subr.bf16.mxu0 0
        %3331 = vmatpush2.bf16.msra.mxu0 0
        %3332 = vmatprep.mubr.bf16.mxu0 0
        %3333 = vmatmul.mubr.bf16.gmra.mxu0 %v3248
        %v3334 = vpop.f32.mrf.mxu0
        %v3335 = vadd.f32 0.0, %v3334
        %v3336 = vpop.f32.mrf.mxu0
        %v3337 = vpop.f32.mrf.mxu0
        %v3338 = vadd.f32 0.0, %v3337
        %v3339 = vpop.f32.mrf.mxu0
        %3340 = vmatprep.mubr.bf16.mxu0 0
        %3341 = vmatmul.mubr.bf16.gmra.mxu0 %v3249
        %v3342 = vpop.f32.mrf.mxu0
        %v3343 = vadd.f32 0.0, %v3342
        %v3344 = vpop.f32.mrf.mxu0
        %v3345 = vpop.f32.mrf.mxu0
        %v3346 = vadd.f32 0.0, %v3345
        %v3347 = vpop.f32.mrf.mxu0
        %3348 = vmatprep.mubr.bf16.mxu0 0
        %3349 = vmatmul.mubr.bf16.gmra.mxu0 %v1041
        %v3350 = vpop.f32.mrf.mxu0
        %v3351 = vadd.f32 0.0, %v3350
        %v3352 = vpop.f32.mrf.mxu0
        %v3353 = vpop.f32.mrf.mxu0
        %v3354 = vadd.f32 0.0, %v3353
        %v3355 = vpop.f32.mrf.mxu0
        %3356 = vmatprep.mubr.bf16.mxu0 0
        %3357 = vmatmul.mubr.bf16.gmra.mxu0 %v1042
        %v3358 = vpop.f32.mrf.mxu0
        %v3359 = vadd.f32 0.0, %v3358
        %v3360 = vpop.f32.mrf.mxu0
        %v3361 = vpop.f32.mrf.mxu0
        %v3362 = vadd.f32 0.0, %v3361
        %v3363 = vpop.f32.mrf.mxu0
        %3364 = vmatprep.mubr.bf16.mxu0 0
        %3365 = vmatmul.mubr.bf16.gmra.mxu0 %v684
        %v3366 = vpop.f32.mrf.mxu0
        %v3367 = vadd.f32 0.0, %v3366
        %v3368 = vpop.f32.mrf.mxu0
        %v3369 = vpop.f32.mrf.mxu0
        %v3370 = vadd.f32 0.0, %v3369
        %v3371 = vpop.f32.mrf.mxu0
        %3372 = vmatprep.mubr.bf16.mxu0 0
        %3373 = vmatmul.mubr.bf16.gmra.mxu0 %v685
        %v3374 = vpop.f32.mrf.mxu0
        %v3375 = vadd.f32 0.0, %v3374
        %v3376 = vpop.f32.mrf.mxu0
        %v3377 = vpop.f32.mrf.mxu0
        %v3378 = vadd.f32 0.0, %v3377
        %v3379 = vpop.f32.mrf.mxu0
        %3380 = vmatprep.mubr.bf16.mxu0 0
        %3381 = vmatmul.mubr.bf16.gmra.mxu0 %v686
        %v3382 = vpop.f32.mrf.mxu0
        %v3383 = vadd.f32 0.0, %v3382
        %v3384 = vpop.f32.mrf.mxu0
        %v3385 = vpop.f32.mrf.mxu0
        %v3386 = vadd.f32 0.0, %v3385
        %v3387 = vpop.f32.mrf.mxu0
        %3388 = vmatprep.mubr.bf16.mxu0 0
        %3389 = vmatmul.mubr.bf16.gmra.mxu0 %v687
        %v3390 = vpop.f32.mrf.mxu0
        %v3391 = vadd.f32 0.0, %v3390
        %v3392 = vpop.f32.mrf.mxu0
        %v3393 = vpop.f32.mrf.mxu0
        %v3394 = vadd.f32 0.0, %v3393
        %v3395 = vpop.f32.mrf.mxu0
        %3396 = vdwg.mxu0
        %v3397 = vunpack.c.l.b16 %v519
        %v3398 = vunpack.c.l.b16 %v520
        %v3399 = vunpack.c.l.b16 %v522
        %v3400 = vunpack.c.l.b16 %v523
        %v3401 = vunpack.c.l.b16 %v525
        %v3402 = vunpack.c.l.b16 %v526
        %v3403 = vunpack.c.l.b16 %v528
        %v3404 = vunpack.c.l.b16 %v529
        %v3405 = vunpack.c.l.b16 %v531
        %v3406 = vunpack.c.l.b16 %v532
        %v3407 = vunpack.c.l.b16 %v534
        %v3408 = vunpack.c.l.b16 %v535
        %v3409 = vunpack.c.l.b16 %v537
        %v3410 = vunpack.c.l.b16 %v538
        %v3411 = vunpack.c.l.b16 %v540
        %v3412 = vunpack.c.l.b16 %v541
        %v3413 = vpack.c.b16 %v3398, %v3397
        %v3414 = vpack.c.b16 %v3400, %v3399
        %v3415 = vpack.c.b16 %v3402, %v3401
        %v3416 = vpack.c.b16 %v3404, %v3403
        %v3417 = vpack.c.b16 %v3406, %v3405
        %v3418 = vpack.c.b16 %v3408, %v3407
        %v3419 = vpack.c.b16 %v3410, %v3409
        %v3420 = vpack.c.b16 %v3412, %v3411
        %v3445 = vunpack.c.l.b16 %v3191
        %v3446 = vunpack.c.l.b16 %v3192
        %v3447 = vunpack.c.l.b16 %v3193
        %v3448 = vunpack.c.l.b16 %v3194
        %v3449 = vunpack.c.l.b16 %v3195
        %v3450 = vunpack.c.l.b16 %v3196
        %v3451 = vunpack.c.l.b16 %v3197
        %v3452 = vunpack.c.l.b16 %v3198
        %v3453 = vunpack.c.l.b16 %v3199
        %v3454 = vunpack.c.l.b16 %v3200
        %v3455 = vunpack.c.l.b16 %v3201
        %v3456 = vunpack.c.l.b16 %v3202
        %v3457 = vunpack.c.l.b16 %v3203
        %v3458 = vunpack.c.l.b16 %v3204
        %v3459 = vunpack.c.l.b16 %v3205
        %v3460 = vunpack.c.l.b16 %v3206
        %v3461 = vpack.c.b16 %v3446, %v3445
        %v3462 = vpack.c.b16 %v3448, %v3447
        %v3463 = vpack.c.b16 %v3450, %v3449
        %v3464 = vpack.c.b16 %v3452, %v3451
        %v3465 = vpack.c.b16 %v3454, %v3453
        %v3466 = vpack.c.b16 %v3456, %v3455
        %v3467 = vpack.c.b16 %v3458, %v3457
        %v3468 = vpack.c.b16 %v3460, %v3459
        %3477 = vmatprep.subr.bf16.mxu0 0
        %3478 = vmatpush1.bf16.msra.mxu0 %v3468
        %3479 = vmatprep.subr.bf16.mxu0 0
        %3480 = vmatpush1.bf16.msra.mxu0 %v3467
        %3481 = vmatprep.subr.bf16.mxu0 0
        %3482 = vmatpush1.bf16.msra.mxu0 %v3466
        %3483 = vmatprep.subr.bf16.mxu0 0
        %3484 = vmatpush1.bf16.msra.mxu0 %v3465
        %3485 = vmatprep.subr.bf16.mxu0 0
        %3486 = vmatpush1.bf16.msra.mxu0 %v3464
        %3487 = vmatprep.subr.bf16.mxu0 0
        %3488 = vmatpush1.bf16.msra.mxu0 %v3463
        %3489 = vmatprep.subr.bf16.mxu0 0
        %3490 = vmatpush1.bf16.msra.mxu0 %v3462
        %3491 = vmatprep.subr.bf16.mxu0 0
        %3492 = vmatpush1.bf16.msra.mxu0 %v3461
        %3493 = vmatprep.subr.bf16.mxu0 0
        %3494 = vmatpush2.bf16.msra.mxu0 0
        %3495 = vmatprep.subr.bf16.mxu0 0
        %3496 = vmatpush2.bf16.msra.mxu0 0
        %3497 = vmatprep.subr.bf16.mxu0 0
        %3498 = vmatpush2.bf16.msra.mxu0 0
        %3499 = vmatprep.subr.bf16.mxu0 0
        %3500 = vmatpush2.bf16.msra.mxu0 0
        %3501 = vmatprep.subr.bf16.mxu0 0
        %3502 = vmatpush2.bf16.msra.mxu0 0
        %3503 = vmatprep.subr.bf16.mxu0 0
        %3504 = vmatpush2.bf16.msra.mxu0 0
        %3505 = vmatprep.subr.bf16.mxu0 0
        %3506 = vmatpush2.bf16.msra.mxu0 0
        %3507 = vmatprep.subr.bf16.mxu0 0
        %3508 = vmatpush2.bf16.msra.mxu0 0
        %3509 = vmatprep.mubr.bf16.mxu0 0
        %3510 = vmatmul.mubr.bf16.gmra.mxu0 %v3413
        %v3511 = vpop.f32.mrf.mxu0
        %v3512 = vadd.f32 %v3335, %v3511
        %v3513 = vpop.f32.mrf.mxu0
        %v3514 = vpop.f32.mrf.mxu0
        %v3515 = vadd.f32 %v3338, %v3514
        %v3516 = vpop.f32.mrf.mxu0
        %3517 = vmatprep.mubr.bf16.mxu0 0
        %3518 = vmatmul.mubr.bf16.gmra.mxu0 %v3414
        %v3519 = vpop.f32.mrf.mxu0
        %v3520 = vadd.f32 %v3343, %v3519
        %v3521 = vpop.f32.mrf.mxu0
        %v3522 = vpop.f32.mrf.mxu0
        %v3523 = vadd.f32 %v3346, %v3522
        %v3524 = vpop.f32.mrf.mxu0
        %3525 = vmatprep.mubr.bf16.mxu0 0
        %3526 = vmatmul.mubr.bf16.gmra.mxu0 %v3415
        %v3527 = vpop.f32.mrf.mxu0
        %v3528 = vadd.f32 %v3351, %v3527
        %v3529 = vpop.f32.mrf.mxu0
        %v3530 = vpop.f32.mrf.mxu0
        %v3531 = vadd.f32 %v3354, %v3530
        %v3532 = vpop.f32.mrf.mxu0
        %3533 = vmatprep.mubr.bf16.mxu0 0
        %3534 = vmatmul.mubr.bf16.gmra.mxu0 %v3416
        %v3535 = vpop.f32.mrf.mxu0
        %v3536 = vadd.f32 %v3359, %v3535
        %v3537 = vpop.f32.mrf.mxu0
        %v3538 = vpop.f32.mrf.mxu0
        %v3539 = vadd.f32 %v3362, %v3538
        %v3540 = vpop.f32.mrf.mxu0
        %3541 = vmatprep.mubr.bf16.mxu0 0
        %3542 = vmatmul.mubr.bf16.gmra.mxu0 %v3417
        %v3543 = vpop.f32.mrf.mxu0
        %v3544 = vadd.f32 %v3367, %v3543
        %v3545 = vpop.f32.mrf.mxu0
        %v3546 = vpop.f32.mrf.mxu0
        %v3547 = vadd.f32 %v3370, %v3546
        %v3548 = vpop.f32.mrf.mxu0
        %3549 = vmatprep.mubr.bf16.mxu0 0
        %3550 = vmatmul.mubr.bf16.gmra.mxu0 %v3418
        %v3551 = vpop.f32.mrf.mxu0
        %v3552 = vadd.f32 %v3375, %v3551
        %v3553 = vpop.f32.mrf.mxu0
        %v3554 = vpop.f32.mrf.mxu0
        %v3555 = vadd.f32 %v3378, %v3554
        %v3556 = vpop.f32.mrf.mxu0
        %3557 = vmatprep.mubr.bf16.mxu0 0
        %3558 = vmatmul.mubr.bf16.gmra.mxu0 %v3419
        %v3559 = vpop.f32.mrf.mxu0
        %v3560 = vadd.f32 %v3383, %v3559
        %v3561 = vpop.f32.mrf.mxu0
        %v3562 = vpop.f32.mrf.mxu0
        %v3563 = vadd.f32 %v3386, %v3562
        %v3564 = vpop.f32.mrf.mxu0
        %3565 = vmatprep.mubr.bf16.mxu0 0
        %3566 = vmatmul.mubr.bf16.gmra.mxu0 %v3420
        %v3567 = vpop.f32.mrf.mxu0
        %v3568 = vadd.f32 %v3391, %v3567
        %v3569 = vpop.f32.mrf.mxu0
        %v3570 = vpop.f32.mrf.mxu0
        %v3571 = vadd.f32 %v3394, %v3570
        %v3572 = vpop.f32.mrf.mxu0
        %3573 = vdwg.mxu0
        %s3574 = scalar_lea.vmem [#allocation8], 128
        %v3575 = vld [vmem:[%s3574] sm:$0xf]
        %v3576 = vld [vmem:[%s3574 + $0x4] sm:$0xf]
        %v3577 = vld [vmem:[%s3574 + $0x8] sm:$0xf]
        %v3578 = vld [vmem:[%s3574 + $0xc] sm:$0xf]
        %v3579 = vld [vmem:[%s3574 + $0x10] sm:$0xf]
        %v3580 = vld [vmem:[%s3574 + $0x14] sm:$0xf]
        %v3581 = vld [vmem:[%s3574 + $0x18] sm:$0xf]
        %v3582 = vld [vmem:[%s3574 + $0x1c] sm:$0xf]
        %v3583 = vld [vmem:[%s3574 + $0x20] sm:$0xf]
        %v3584 = vld [vmem:[%s3574 + $0x24] sm:$0xf]
        %v3585 = vld [vmem:[%s3574 + $0x28] sm:$0xf]
        %v3586 = vld [vmem:[%s3574 + $0x2c] sm:$0xf]
        %v3587 = vld [vmem:[%s3574 + $0x30] sm:$0xf]
        %v3588 = vld [vmem:[%s3574 + $0x34] sm:$0xf]
        %v3589 = vld [vmem:[%s3574 + $0x38] sm:$0xf]
        %v3590 = vld [vmem:[%s3574 + $0x3c] sm:$0xf]
        %v3591 = vunpack.c.l.b16 %v521
        %v3592 = vunpack.c.l.b16 %v524
        %v3593 = vunpack.c.l.b16 %v527
        %v3594 = vunpack.c.l.b16 %v530
        %v3595 = vunpack.c.l.b16 %v533
        %v3596 = vunpack.c.l.b16 %v536
        %v3597 = vunpack.c.l.b16 %v539
        %v3598 = vunpack.c.l.b16 %v542
        %v3599 = vpack.c.b16 %v3591, %v3398
        %v3600 = vpack.c.b16 %v3592, %v3400
        %v3601 = vpack.c.b16 %v3593, %v3402
        %v3602 = vpack.c.b16 %v3594, %v3404
        %v3603 = vpack.c.b16 %v3595, %v3406
        %v3604 = vpack.c.b16 %v3596, %v3408
        %v3605 = vpack.c.b16 %v3597, %v3410
        %v3606 = vpack.c.b16 %v3598, %v3412
        %v3631 = vunpack.c.l.b16 %v3575
        %v3632 = vunpack.c.l.b16 %v3576
        %v3633 = vunpack.c.l.b16 %v3577
        %v3634 = vunpack.c.l.b16 %v3578
        %v3635 = vunpack.c.l.b16 %v3579
        %v3636 = vunpack.c.l.b16 %v3580
        %v3637 = vunpack.c.l.b16 %v3581
        %v3638 = vunpack.c.l.b16 %v3582
        %v3639 = vunpack.c.l.b16 %v3583
        %v3640 = vunpack.c.l.b16 %v3584
        %v3641 = vunpack.c.l.b16 %v3585
        %v3642 = vunpack.c.l.b16 %v3586
        %v3643 = vunpack.c.l.b16 %v3587
        %v3644 = vunpack.c.l.b16 %v3588
        %v3645 = vunpack.c.l.b16 %v3589
        %v3646 = vunpack.c.l.b16 %v3590
        %v3647 = vpack.c.b16 %v3632, %v3631
        %v3648 = vpack.c.b16 %v3634, %v3633
        %v3649 = vpack.c.b16 %v3636, %v3635
        %v3650 = vpack.c.b16 %v3638, %v3637
        %v3651 = vpack.c.b16 %v3640, %v3639
        %v3652 = vpack.c.b16 %v3642, %v3641
        %v3653 = vpack.c.b16 %v3644, %v3643
        %v3654 = vpack.c.b16 %v3646, %v3645
        %3663 = vmatprep.subr.bf16.mxu0 0
        %3664 = vmatpush1.bf16.msra.mxu0 %v3654
        %3665 = vmatprep.subr.bf16.mxu0 0
        %3666 = vmatpush1.bf16.msra.mxu0 %v3653
        %3667 = vmatprep.subr.bf16.mxu0 0
        %3668 = vmatpush1.bf16.msra.mxu0 %v3652
        %3669 = vmatprep.subr.bf16.mxu0 0
        %3670 = vmatpush1.bf16.msra.mxu0 %v3651
        %3671 = vmatprep.subr.bf16.mxu0 0
        %3672 = vmatpush1.bf16.msra.mxu0 %v3650
        %3673 = vmatprep.subr.bf16.mxu0 0
        %3674 = vmatpush1.bf16.msra.mxu0 %v3649
        %3675 = vmatprep.subr.bf16.mxu0 0
        %3676 = vmatpush1.bf16.msra.mxu0 %v3648
        %3677 = vmatprep.subr.bf16.mxu0 0
        %3678 = vmatpush1.bf16.msra.mxu0 %v3647
        %3679 = vmatprep.subr.bf16.mxu0 0
        %3680 = vmatpush2.bf16.msra.mxu0 0
        %3681 = vmatprep.subr.bf16.mxu0 0
        %3682 = vmatpush2.bf16.msra.mxu0 0
        %3683 = vmatprep.subr.bf16.mxu0 0
        %3684 = vmatpush2.bf16.msra.mxu0 0
        %3685 = vmatprep.subr.bf16.mxu0 0
        %3686 = vmatpush2.bf16.msra.mxu0 0
        %3687 = vmatprep.subr.bf16.mxu0 0
        %3688 = vmatpush2.bf16.msra.mxu0 0
        %3689 = vmatprep.subr.bf16.mxu0 0
        %3690 = vmatpush2.bf16.msra.mxu0 0
        %3691 = vmatprep.subr.bf16.mxu0 0
        %3692 = vmatpush2.bf16.msra.mxu0 0
        %3693 = vmatprep.subr.bf16.mxu0 0
        %3694 = vmatpush2.bf16.msra.mxu0 0
        %3695 = vmatprep.mubr.bf16.mxu0 0
        %3696 = vmatmul.mubr.bf16.gmra.mxu0 %v3599
        %v3697 = vpop.f32.mrf.mxu0
        %v3698 = vadd.f32 0.0, %v3697
        %v3699 = vpop.f32.mrf.mxu0
        %v3700 = vpop.f32.mrf.mxu0
        %v3701 = vadd.f32 0.0, %v3700
        %v3702 = vpop.f32.mrf.mxu0
        %3703 = vmatprep.mubr.bf16.mxu0 0
        %3704 = vmatmul.mubr.bf16.gmra.mxu0 %v3600
        %v3705 = vpop.f32.mrf.mxu0
        %v3706 = vadd.f32 0.0, %v3705
        %v3707 = vpop.f32.mrf.mxu0
        %v3708 = vpop.f32.mrf.mxu0
        %v3709 = vadd.f32 0.0, %v3708
        %v3710 = vpop.f32.mrf.mxu0
        %3711 = vmatprep.mubr.bf16.mxu0 0
        %3712 = vmatmul.mubr.bf16.gmra.mxu0 %v3601
        %v3713 = vpop.f32.mrf.mxu0
        %v3714 = vadd.f32 0.0, %v3713
        %v3715 = vpop.f32.mrf.mxu0
        %v3716 = vpop.f32.mrf.mxu0
        %v3717 = vadd.f32 0.0, %v3716
        %v3718 = vpop.f32.mrf.mxu0
        %3719 = vmatprep.mubr.bf16.mxu0 0
        %3720 = vmatmul.mubr.bf16.gmra.mxu0 %v3602
        %v3721 = vpop.f32.mrf.mxu0
        %v3722 = vadd.f32 0.0, %v3721
        %v3723 = vpop.f32.mrf.mxu0
        %v3724 = vpop.f32.mrf.mxu0
        %v3725 = vadd.f32 0.0, %v3724
        %v3726 = vpop.f32.mrf.mxu0
        %3727 = vmatprep.mubr.bf16.mxu0 0
        %3728 = vmatmul.mubr.bf16.gmra.mxu0 %v3603
        %v3729 = vpop.f32.mrf.mxu0
        %v3730 = vadd.f32 0.0, %v3729
        %v3731 = vpop.f32.mrf.mxu0
        %v3732 = vpop.f32.mrf.mxu0
        %v3733 = vadd.f32 0.0, %v3732
        %v3734 = vpop.f32.mrf.mxu0
        %3735 = vmatprep.mubr.bf16.mxu0 0
        %3736 = vmatmul.mubr.bf16.gmra.mxu0 %v3604
        %v3737 = vpop.f32.mrf.mxu0
        %v3738 = vadd.f32 0.0, %v3737
        %v3739 = vpop.f32.mrf.mxu0
        %v3740 = vpop.f32.mrf.mxu0
        %v3741 = vadd.f32 0.0, %v3740
        %v3742 = vpop.f32.mrf.mxu0
        %3743 = vmatprep.mubr.bf16.mxu0 0
        %3744 = vmatmul.mubr.bf16.gmra.mxu0 %v3605
        %v3745 = vpop.f32.mrf.mxu0
        %v3746 = vadd.f32 0.0, %v3745
        %v3747 = vpop.f32.mrf.mxu0
        %v3748 = vpop.f32.mrf.mxu0
        %v3749 = vadd.f32 0.0, %v3748
        %v3750 = vpop.f32.mrf.mxu0
        %3751 = vmatprep.mubr.bf16.mxu0 0
        %3752 = vmatmul.mubr.bf16.gmra.mxu0 %v3606
        %v3753 = vpop.f32.mrf.mxu0
        %v3754 = vadd.f32 0.0, %v3753
        %v3755 = vpop.f32.mrf.mxu0
        %v3756 = vpop.f32.mrf.mxu0
        %v3757 = vadd.f32 0.0, %v3756
        %v3758 = vpop.f32.mrf.mxu0
        %3759 = vdwg.mxu0
        %v3760 = vadd.f32 %v3512, %v3698
        %v3761 = vadd.f32 %v3515, %v3701
        %v3762 = vadd.f32 %v3520, %v3706
        %v3763 = vadd.f32 %v3523, %v3709
        %v3764 = vadd.f32 %v3528, %v3714
        %v3765 = vadd.f32 %v3531, %v3717
        %v3766 = vadd.f32 %v3536, %v3722
        %v3767 = vadd.f32 %v3539, %v3725
        %v3768 = vadd.f32 %v3544, %v3730
        %v3769 = vadd.f32 %v3547, %v3733
        %v3770 = vadd.f32 %v3552, %v3738
        %v3771 = vadd.f32 %v3555, %v3741
        %v3772 = vadd.f32 %v3560, %v3746
        %v3773 = vadd.f32 %v3563, %v3749
        %v3774 = vadd.f32 %v3568, %v3754
        %v3775 = vadd.f32 %v3571, %v3757
        %s3776 = scalar_lea.vmem [#allocation8], 192
        %v3777 = vld [vmem:[%s3776] sm:$0xf]
        %v3778 = vld [vmem:[%s3776 + $0x4] sm:$0xf]
        %v3779 = vld [vmem:[%s3776 + $0x8] sm:$0xf]
        %v3780 = vld [vmem:[%s3776 + $0xc] sm:$0xf]
        %v3781 = vld [vmem:[%s3776 + $0x10] sm:$0xf]
        %v3782 = vld [vmem:[%s3776 + $0x14] sm:$0xf]
        %v3783 = vld [vmem:[%s3776 + $0x18] sm:$0xf]
        %v3784 = vld [vmem:[%s3776 + $0x1c] sm:$0xf]
        %v3785 = vld [vmem:[%s3776 + $0x20] sm:$0xf]
        %v3786 = vld [vmem:[%s3776 + $0x24] sm:$0xf]
        %v3787 = vld [vmem:[%s3776 + $0x28] sm:$0xf]
        %v3788 = vld [vmem:[%s3776 + $0x2c] sm:$0xf]
        %v3789 = vld [vmem:[%s3776 + $0x30] sm:$0xf]
        %v3790 = vld [vmem:[%s3776 + $0x34] sm:$0xf]
        %v3791 = vld [vmem:[%s3776 + $0x38] sm:$0xf]
        %v3792 = vld [vmem:[%s3776 + $0x3c] sm:$0xf]
        %v3793 = vunpack.c.l.b16 %v543
        %v3794 = vunpack.c.l.b16 %v544
        %v3795 = vunpack.c.l.b16 %v546
        %v3796 = vunpack.c.l.b16 %v547
        %v3797 = vunpack.c.l.b16 %v549
        %v3798 = vunpack.c.l.b16 %v550
        %v3799 = vunpack.c.l.b16 %v552
        %v3800 = vunpack.c.l.b16 %v553
        %v3801 = vpack.c.b16 %v3794, %v3793
        %v3802 = vpack.c.b16 %v3796, %v3795
        %v3803 = vpack.c.b16 %v3798, %v3797
        %v3804 = vpack.c.b16 %v3800, %v3799
        %v3825 = vunpack.c.l.b16 %v3777
        %v3826 = vunpack.c.l.b16 %v3778
        %v3827 = vunpack.c.l.b16 %v3779
        %v3828 = vunpack.c.l.b16 %v3780
        %v3829 = vunpack.c.l.b16 %v3781
        %v3830 = vunpack.c.l.b16 %v3782
        %v3831 = vunpack.c.l.b16 %v3783
        %v3832 = vunpack.c.l.b16 %v3784
        %v3833 = vunpack.c.l.b16 %v3785
        %v3834 = vunpack.c.l.b16 %v3786
        %v3835 = vunpack.c.l.b16 %v3787
        %v3836 = vunpack.c.l.b16 %v3788
        %v3837 = vunpack.c.l.b16 %v3789
        %v3838 = vunpack.c.l.b16 %v3790
        %v3839 = vunpack.c.l.b16 %v3791
        %v3840 = vunpack.c.l.b16 %v3792
        %v3841 = vpack.c.b16 %v3826, %v3825
        %v3842 = vpack.c.b16 %v3828, %v3827
        %v3843 = vpack.c.b16 %v3830, %v3829
        %v3844 = vpack.c.b16 %v3832, %v3831
        %v3845 = vpack.c.b16 %v3834, %v3833
        %v3846 = vpack.c.b16 %v3836, %v3835
        %v3847 = vpack.c.b16 %v3838, %v3837
        %v3848 = vpack.c.b16 %v3840, %v3839
        %3857 = vmatprep.subr.bf16.mxu0 0
        %3858 = vmatpush1.bf16.msra.mxu0 %v3848
        %3859 = vmatprep.subr.bf16.mxu0 0
        %3860 = vmatpush1.bf16.msra.mxu0 %v3847
        %3861 = vmatprep.subr.bf16.mxu0 0
        %3862 = vmatpush1.bf16.msra.mxu0 %v3846
        %3863 = vmatprep.subr.bf16.mxu0 0
        %3864 = vmatpush1.bf16.msra.mxu0 %v3845
        %3865 = vmatprep.subr.bf16.mxu0 0
        %3866 = vmatpush1.bf16.msra.mxu0 %v3844
        %3867 = vmatprep.subr.bf16.mxu0 0
        %3868 = vmatpush1.bf16.msra.mxu0 %v3843
        %3869 = vmatprep.subr.bf16.mxu0 0
        %3870 = vmatpush1.bf16.msra.mxu0 %v3842
        %3871 = vmatprep.subr.bf16.mxu0 0
        %3872 = vmatpush1.bf16.msra.mxu0 %v3841
        %3873 = vmatprep.subr.bf16.mxu0 0
        %3874 = vmatpush2.bf16.msra.mxu0 0
        %3875 = vmatprep.subr.bf16.mxu0 0
        %3876 = vmatpush2.bf16.msra.mxu0 0
        %3877 = vmatprep.subr.bf16.mxu0 0
        %3878 = vmatpush2.bf16.msra.mxu0 0
        %3879 = vmatprep.subr.bf16.mxu0 0
        %3880 = vmatpush2.bf16.msra.mxu0 0
        %3881 = vmatprep.subr.bf16.mxu0 0
        %3882 = vmatpush2.bf16.msra.mxu0 0
        %3883 = vmatprep.subr.bf16.mxu0 0
        %3884 = vmatpush2.bf16.msra.mxu0 0
        %3885 = vmatprep.subr.bf16.mxu0 0
        %3886 = vmatpush2.bf16.msra.mxu0 0
        %3887 = vmatprep.subr.bf16.mxu0 0
        %3888 = vmatpush2.bf16.msra.mxu0 0
        %3889 = vmatprep.mubr.bf16.mxu0 0
        %3890 = vmatmul.mubr.bf16.gmra.mxu0 %v3417
        %v3891 = vpop.f32.mrf.mxu0
        %v3892 = vadd.f32 0.0, %v3891
        %v3893 = vpop.f32.mrf.mxu0
        %v3894 = vpop.f32.mrf.mxu0
        %v3895 = vadd.f32 0.0, %v3894
        %v3896 = vpop.f32.mrf.mxu0
        %3897 = vmatprep.mubr.bf16.mxu0 0
        %3898 = vmatmul.mubr.bf16.gmra.mxu0 %v3418
        %v3899 = vpop.f32.mrf.mxu0
        %v3900 = vadd.f32 0.0, %v3899
        %v3901 = vpop.f32.mrf.mxu0
        %v3902 = vpop.f32.mrf.mxu0
        %v3903 = vadd.f32 0.0, %v3902
        %v3904 = vpop.f32.mrf.mxu0
        %3905 = vmatprep.mubr.bf16.mxu0 0
        %3906 = vmatmul.mubr.bf16.gmra.mxu0 %v3419
        %v3907 = vpop.f32.mrf.mxu0
        %v3908 = vadd.f32 0.0, %v3907
        %v3909 = vpop.f32.mrf.mxu0
        %v3910 = vpop.f32.mrf.mxu0
        %v3911 = vadd.f32 0.0, %v3910
        %v3912 = vpop.f32.mrf.mxu0
        %3913 = vmatprep.mubr.bf16.mxu0 0
        %3914 = vmatmul.mubr.bf16.gmra.mxu0 %v3420
        %v3915 = vpop.f32.mrf.mxu0
        %v3916 = vadd.f32 0.0, %v3915
        %v3917 = vpop.f32.mrf.mxu0
        %v3918 = vpop.f32.mrf.mxu0
        %v3919 = vadd.f32 0.0, %v3918
        %v3920 = vpop.f32.mrf.mxu0
        %3921 = vmatprep.mubr.bf16.mxu0 0
        %3922 = vmatmul.mubr.bf16.gmra.mxu0 %v3801
        %v3923 = vpop.f32.mrf.mxu0
        %v3924 = vadd.f32 0.0, %v3923
        %v3925 = vpop.f32.mrf.mxu0
        %v3926 = vpop.f32.mrf.mxu0
        %v3927 = vadd.f32 0.0, %v3926
        %v3928 = vpop.f32.mrf.mxu0
        %3929 = vmatprep.mubr.bf16.mxu0 0
        %3930 = vmatmul.mubr.bf16.gmra.mxu0 %v3802
        %v3931 = vpop.f32.mrf.mxu0
        %v3932 = vadd.f32 0.0, %v3931
        %v3933 = vpop.f32.mrf.mxu0
        %v3934 = vpop.f32.mrf.mxu0
        %v3935 = vadd.f32 0.0, %v3934
        %v3936 = vpop.f32.mrf.mxu0
        %3937 = vmatprep.mubr.bf16.mxu0 0
        %3938 = vmatmul.mubr.bf16.gmra.mxu0 %v3803
        %v3939 = vpop.f32.mrf.mxu0
        %v3940 = vadd.f32 0.0, %v3939
        %v3941 = vpop.f32.mrf.mxu0
        %v3942 = vpop.f32.mrf.mxu0
        %v3943 = vadd.f32 0.0, %v3942
        %v3944 = vpop.f32.mrf.mxu0
        %3945 = vmatprep.mubr.bf16.mxu0 0
        %3946 = vmatmul.mubr.bf16.gmra.mxu0 %v3804
        %v3947 = vpop.f32.mrf.mxu0
        %v3948 = vadd.f32 0.0, %v3947
        %v3949 = vpop.f32.mrf.mxu0
        %v3950 = vpop.f32.mrf.mxu0
        %v3951 = vadd.f32 0.0, %v3950
        %v3952 = vpop.f32.mrf.mxu0
        %3953 = vdwg.mxu0
        %v3954 = vadd.f32 %v3760, %v3892
        %v3955 = vadd.f32 %v3761, %v3895
        %v3956 = vadd.f32 %v3762, %v3900
        %v3957 = vadd.f32 %v3763, %v3903
        %v3958 = vadd.f32 %v3764, %v3908
        %v3959 = vadd.f32 %v3765, %v3911
        %v3960 = vadd.f32 %v3766, %v3916
        %v3961 = vadd.f32 %v3767, %v3919
        %v3962 = vadd.f32 %v3768, %v3924
        %v3963 = vadd.f32 %v3769, %v3927
        %v3964 = vadd.f32 %v3770, %v3932
        %v3965 = vadd.f32 %v3771, %v3935
        %v3966 = vadd.f32 %v3772, %v3940
        %v3967 = vadd.f32 %v3773, %v3943
        %v3968 = vadd.f32 %v3774, %v3948
        %v3969 = vadd.f32 %v3775, %v3951
        %s3970 = scalar_lea.vmem [#allocation8], 256
        %v3971 = vld [vmem:[%s3970] sm:$0xf]
        %v3972 = vld [vmem:[%s3970 + $0x4] sm:$0xf]
        %v3973 = vld [vmem:[%s3970 + $0x8] sm:$0xf]
        %v3974 = vld [vmem:[%s3970 + $0xc] sm:$0xf]
        %v3975 = vld [vmem:[%s3970 + $0x10] sm:$0xf]
        %v3976 = vld [vmem:[%s3970 + $0x14] sm:$0xf]
        %v3977 = vld [vmem:[%s3970 + $0x18] sm:$0xf]
        %v3978 = vld [vmem:[%s3970 + $0x1c] sm:$0xf]
        %v3979 = vld [vmem:[%s3970 + $0x20] sm:$0xf]
        %v3980 = vld [vmem:[%s3970 + $0x24] sm:$0xf]
        %v3981 = vld [vmem:[%s3970 + $0x28] sm:$0xf]
        %v3982 = vld [vmem:[%s3970 + $0x2c] sm:$0xf]
        %v3983 = vld [vmem:[%s3970 + $0x30] sm:$0xf]
        %v3984 = vld [vmem:[%s3970 + $0x34] sm:$0xf]
        %v3985 = vld [vmem:[%s3970 + $0x38] sm:$0xf]
        %v3986 = vld [vmem:[%s3970 + $0x3c] sm:$0xf]
        %v4003 = vunpack.c.l.b16 %v3971
        %v4004 = vunpack.c.l.b16 %v3972
        %v4005 = vunpack.c.l.b16 %v3973
        %v4006 = vunpack.c.l.b16 %v3974
        %v4007 = vunpack.c.l.b16 %v3975
        %v4008 = vunpack.c.l.b16 %v3976
        %v4009 = vunpack.c.l.b16 %v3977
        %v4010 = vunpack.c.l.b16 %v3978
        %v4011 = vunpack.c.l.b16 %v3979
        %v4012 = vunpack.c.l.b16 %v3980
        %v4013 = vunpack.c.l.b16 %v3981
        %v4014 = vunpack.c.l.b16 %v3982
        %v4015 = vunpack.c.l.b16 %v3983
        %v4016 = vunpack.c.l.b16 %v3984
        %v4017 = vunpack.c.l.b16 %v3985
        %v4018 = vunpack.c.l.b16 %v3986
        %v4019 = vpack.c.b16 %v4004, %v4003
        %v4020 = vpack.c.b16 %v4006, %v4005
        %v4021 = vpack.c.b16 %v4008, %v4007
        %v4022 = vpack.c.b16 %v4010, %v4009
        %v4023 = vpack.c.b16 %v4012, %v4011
        %v4024 = vpack.c.b16 %v4014, %v4013
        %v4025 = vpack.c.b16 %v4016, %v4015
        %v4026 = vpack.c.b16 %v4018, %v4017
        %4035 = vmatprep.subr.bf16.mxu0 0
        %4036 = vmatpush1.bf16.msra.mxu0 %v4026
        %4037 = vmatprep.subr.bf16.mxu0 0
        %4038 = vmatpush1.bf16.msra.mxu0 %v4025
        %4039 = vmatprep.subr.bf16.mxu0 0
        %4040 = vmatpush1.bf16.msra.mxu0 %v4024
        %4041 = vmatprep.subr.bf16.mxu0 0
        %4042 = vmatpush1.bf16.msra.mxu0 %v4023
        %4043 = vmatprep.subr.bf16.mxu0 0
        %4044 = vmatpush1.bf16.msra.mxu0 %v4022
        %4045 = vmatprep.subr.bf16.mxu0 0
        %4046 = vmatpush1.bf16.msra.mxu0 %v4021
        %4047 = vmatprep.subr.bf16.mxu0 0
        %4048 = vmatpush1.bf16.msra.mxu0 %v4020
        %4049 = vmatprep.subr.bf16.mxu0 0
        %4050 = vmatpush1.bf16.msra.mxu0 %v4019
        %4051 = vmatprep.subr.bf16.mxu0 0
        %4052 = vmatpush2.bf16.msra.mxu0 0
        %4053 = vmatprep.subr.bf16.mxu0 0
        %4054 = vmatpush2.bf16.msra.mxu0 0
        %4055 = vmatprep.subr.bf16.mxu0 0
        %4056 = vmatpush2.bf16.msra.mxu0 0
        %4057 = vmatprep.subr.bf16.mxu0 0
        %4058 = vmatpush2.bf16.msra.mxu0 0
        %4059 = vmatprep.subr.bf16.mxu0 0
        %4060 = vmatpush2.bf16.msra.mxu0 0
        %4061 = vmatprep.subr.bf16.mxu0 0
        %4062 = vmatpush2.bf16.msra.mxu0 0
        %4063 = vmatprep.subr.bf16.mxu0 0
        %4064 = vmatpush2.bf16.msra.mxu0 0
        %4065 = vmatprep.subr.bf16.mxu0 0
        %4066 = vmatpush2.bf16.msra.mxu0 0
        %4067 = vmatprep.mubr.bf16.mxu0 0
        %4068 = vmatmul.mubr.bf16.gmra.mxu0 %v684
        %v4069 = vpop.f32.mrf.mxu0
        %v4070 = vadd.f32 0.0, %v4069
        %v4071 = vpop.f32.mrf.mxu0
        %v4072 = vpop.f32.mrf.mxu0
        %v4073 = vadd.f32 0.0, %v4072
        %v4074 = vpop.f32.mrf.mxu0
        %4075 = vmatprep.mubr.bf16.mxu0 0
        %4076 = vmatmul.mubr.bf16.gmra.mxu0 %v685
        %v4077 = vpop.f32.mrf.mxu0
        %v4078 = vadd.f32 0.0, %v4077
        %v4079 = vpop.f32.mrf.mxu0
        %v4080 = vpop.f32.mrf.mxu0
        %v4081 = vadd.f32 0.0, %v4080
        %v4082 = vpop.f32.mrf.mxu0
        %4083 = vmatprep.mubr.bf16.mxu0 0
        %4084 = vmatmul.mubr.bf16.gmra.mxu0 %v686
        %v4085 = vpop.f32.mrf.mxu0
        %v4086 = vadd.f32 0.0, %v4085
        %v4087 = vpop.f32.mrf.mxu0
        %v4088 = vpop.f32.mrf.mxu0
        %v4089 = vadd.f32 0.0, %v4088
        %v4090 = vpop.f32.mrf.mxu0
        %4091 = vmatprep.mubr.bf16.mxu0 0
        %4092 = vmatmul.mubr.bf16.gmra.mxu0 %v687
        %v4093 = vpop.f32.mrf.mxu0
        %v4094 = vadd.f32 0.0, %v4093
        %v4095 = vpop.f32.mrf.mxu0
        %v4096 = vpop.f32.mrf.mxu0
        %v4097 = vadd.f32 0.0, %v4096
        %v4098 = vpop.f32.mrf.mxu0
        %4099 = vmatprep.mubr.bf16.mxu0 0
        %4100 = vmatmul.mubr.bf16.gmra.mxu0 %v688
        %v4101 = vpop.f32.mrf.mxu0
        %v4102 = vadd.f32 0.0, %v4101
        %v4103 = vpop.f32.mrf.mxu0
        %v4104 = vpop.f32.mrf.mxu0
        %v4105 = vadd.f32 0.0, %v4104
        %v4106 = vpop.f32.mrf.mxu0
        %4107 = vmatprep.mubr.bf16.mxu0 0
        %4108 = vmatmul.mubr.bf16.gmra.mxu0 %v689
        %v4109 = vpop.f32.mrf.mxu0
        %v4110 = vadd.f32 0.0, %v4109
        %v4111 = vpop.f32.mrf.mxu0
        %v4112 = vpop.f32.mrf.mxu0
        %v4113 = vadd.f32 0.0, %v4112
        %v4114 = vpop.f32.mrf.mxu0
        %4115 = vmatprep.mubr.bf16.mxu0 0
        %4116 = vmatmul.mubr.bf16.gmra.mxu0 %v690
        %v4117 = vpop.f32.mrf.mxu0
        %v4118 = vadd.f32 0.0, %v4117
        %v4119 = vpop.f32.mrf.mxu0
        %v4120 = vpop.f32.mrf.mxu0
        %v4121 = vadd.f32 0.0, %v4120
        %v4122 = vpop.f32.mrf.mxu0
        %4123 = vmatprep.mubr.bf16.mxu0 0
        %4124 = vmatmul.mubr.bf16.gmra.mxu0 %v691
        %v4125 = vpop.f32.mrf.mxu0
        %v4126 = vadd.f32 0.0, %v4125
        %v4127 = vpop.f32.mrf.mxu0
        %v4128 = vpop.f32.mrf.mxu0
        %v4129 = vadd.f32 0.0, %v4128
        %v4130 = vpop.f32.mrf.mxu0
        %4131 = vdwg.mxu0
        %v4132 = vadd.f32 %v3954, %v4070
        %v4133 = vadd.f32 %v3955, %v4073
        %v4134 = vadd.f32 %v3956, %v4078
        %v4135 = vadd.f32 %v3957, %v4081
        %v4136 = vadd.f32 %v3958, %v4086
        %v4137 = vadd.f32 %v3959, %v4089
        %v4138 = vadd.f32 %v3960, %v4094
        %v4139 = vadd.f32 %v3961, %v4097
        %v4140 = vadd.f32 %v3962, %v4102
        %v4141 = vadd.f32 %v3963, %v4105
        %v4142 = vadd.f32 %v3964, %v4110
        %v4143 = vadd.f32 %v3965, %v4113
        %v4144 = vadd.f32 %v3966, %v4118
        %v4145 = vadd.f32 %v3967, %v4121
        %v4146 = vadd.f32 %v3968, %v4126
        %v4147 = vadd.f32 %v3969, %v4129
        %s4148 = scalar_lea.vmem [#allocation8], 320
        %v4149 = vld [vmem:[%s4148] sm:$0xf]
        %v4150 = vld [vmem:[%s4148 + $0x4] sm:$0xf]
        %v4151 = vld [vmem:[%s4148 + $0x8] sm:$0xf]
        %v4152 = vld [vmem:[%s4148 + $0xc] sm:$0xf]
        %v4153 = vld [vmem:[%s4148 + $0x10] sm:$0xf]
        %v4154 = vld [vmem:[%s4148 + $0x14] sm:$0xf]
        %v4155 = vld [vmem:[%s4148 + $0x18] sm:$0xf]
        %v4156 = vld [vmem:[%s4148 + $0x1c] sm:$0xf]
        %v4157 = vld [vmem:[%s4148 + $0x20] sm:$0xf]
        %v4158 = vld [vmem:[%s4148 + $0x24] sm:$0xf]
        %v4159 = vld [vmem:[%s4148 + $0x28] sm:$0xf]
        %v4160 = vld [vmem:[%s4148 + $0x2c] sm:$0xf]
        %v4161 = vld [vmem:[%s4148 + $0x30] sm:$0xf]
        %v4162 = vld [vmem:[%s4148 + $0x34] sm:$0xf]
        %v4163 = vld [vmem:[%s4148 + $0x38] sm:$0xf]
        %v4164 = vld [vmem:[%s4148 + $0x3c] sm:$0xf]
        %v4165 = vunpack.c.l.b16 %v545
        %v4166 = vunpack.c.l.b16 %v548
        %v4167 = vunpack.c.l.b16 %v551
        %v4168 = vunpack.c.l.b16 %v554
        %v4169 = vpack.c.b16 %v4165, %v3794
        %v4170 = vpack.c.b16 %v4166, %v3796
        %v4171 = vpack.c.b16 %v4167, %v3798
        %v4172 = vpack.c.b16 %v4168, %v3800
        %v4193 = vunpack.c.l.b16 %v4149
        %v4194 = vunpack.c.l.b16 %v4150
        %v4195 = vunpack.c.l.b16 %v4151
        %v4196 = vunpack.c.l.b16 %v4152
        %v4197 = vunpack.c.l.b16 %v4153
        %v4198 = vunpack.c.l.b16 %v4154
        %v4199 = vunpack.c.l.b16 %v4155
        %v4200 = vunpack.c.l.b16 %v4156
        %v4201 = vunpack.c.l.b16 %v4157
        %v4202 = vunpack.c.l.b16 %v4158
        %v4203 = vunpack.c.l.b16 %v4159
        %v4204 = vunpack.c.l.b16 %v4160
        %v4205 = vunpack.c.l.b16 %v4161
        %v4206 = vunpack.c.l.b16 %v4162
        %v4207 = vunpack.c.l.b16 %v4163
        %v4208 = vunpack.c.l.b16 %v4164
        %v4209 = vpack.c.b16 %v4194, %v4193
        %v4210 = vpack.c.b16 %v4196, %v4195
        %v4211 = vpack.c.b16 %v4198, %v4197
        %v4212 = vpack.c.b16 %v4200, %v4199
        %v4213 = vpack.c.b16 %v4202, %v4201
        %v4214 = vpack.c.b16 %v4204, %v4203
        %v4215 = vpack.c.b16 %v4206, %v4205
        %v4216 = vpack.c.b16 %v4208, %v4207
        %4225 = vmatprep.subr.bf16.mxu0 0
        %4226 = vmatpush1.bf16.msra.mxu0 %v4216
        %4227 = vmatprep.subr.bf16.mxu0 0
        %4228 = vmatpush1.bf16.msra.mxu0 %v4215
        %4229 = vmatprep.subr.bf16.mxu0 0
        %4230 = vmatpush1.bf16.msra.mxu0 %v4214
        %4231 = vmatprep.subr.bf16.mxu0 0
        %4232 = vmatpush1.bf16.msra.mxu0 %v4213
        %4233 = vmatprep.subr.bf16.mxu0 0
        %4234 = vmatpush1.bf16.msra.mxu0 %v4212
        %4235 = vmatprep.subr.bf16.mxu0 0
        %4236 = vmatpush1.bf16.msra.mxu0 %v4211
        %4237 = vmatprep.subr.bf16.mxu0 0
        %4238 = vmatpush1.bf16.msra.mxu0 %v4210
        %4239 = vmatprep.subr.bf16.mxu0 0
        %4240 = vmatpush1.bf16.msra.mxu0 %v4209
        %4241 = vmatprep.subr.bf16.mxu0 0
        %4242 = vmatpush2.bf16.msra.mxu0 0
        %4243 = vmatprep.subr.bf16.mxu0 0
        %4244 = vmatpush2.bf16.msra.mxu0 0
        %4245 = vmatprep.subr.bf16.mxu0 0
        %4246 = vmatpush2.bf16.msra.mxu0 0
        %4247 = vmatprep.subr.bf16.mxu0 0
        %4248 = vmatpush2.bf16.msra.mxu0 0
        %4249 = vmatprep.subr.bf16.mxu0 0
        %4250 = vmatpush2.bf16.msra.mxu0 0
        %4251 = vmatprep.subr.bf16.mxu0 0
        %4252 = vmatpush2.bf16.msra.mxu0 0
        %4253 = vmatprep.subr.bf16.mxu0 0
        %4254 = vmatpush2.bf16.msra.mxu0 0
        %4255 = vmatprep.subr.bf16.mxu0 0
        %4256 = vmatpush2.bf16.msra.mxu0 0
        %4257 = vmatprep.mubr.bf16.mxu0 0
        %4258 = vmatmul.mubr.bf16.gmra.mxu0 %v3603
        %v4259 = vpop.f32.mrf.mxu0
        %v4260 = vadd.f32 0.0, %v4259
        %v4261 = vpop.f32.mrf.mxu0
        %v4262 = vpop.f32.mrf.mxu0
        %v4263 = vadd.f32 0.0, %v4262
        %v4264 = vpop.f32.mrf.mxu0
        %4265 = vmatprep.mubr.bf16.mxu0 0
        %4266 = vmatmul.mubr.bf16.gmra.mxu0 %v3604
        %v4267 = vpop.f32.mrf.mxu0
        %v4268 = vadd.f32 0.0, %v4267
        %v4269 = vpop.f32.mrf.mxu0
        %v4270 = vpop.f32.mrf.mxu0
        %v4271 = vadd.f32 0.0, %v4270
        %v4272 = vpop.f32.mrf.mxu0
        %4273 = vmatprep.mubr.bf16.mxu0 0
        %4274 = vmatmul.mubr.bf16.gmra.mxu0 %v3605
        %v4275 = vpop.f32.mrf.mxu0
        %v4276 = vadd.f32 0.0, %v4275
        %v4277 = vpop.f32.mrf.mxu0
        %v4278 = vpop.f32.mrf.mxu0
        %v4279 = vadd.f32 0.0, %v4278
        %v4280 = vpop.f32.mrf.mxu0
        %4281 = vmatprep.mubr.bf16.mxu0 0
        %4282 = vmatmul.mubr.bf16.gmra.mxu0 %v3606
        %v4283 = vpop.f32.mrf.mxu0
        %v4284 = vadd.f32 0.0, %v4283
        %v4285 = vpop.f32.mrf.mxu0
        %v4286 = vpop.f32.mrf.mxu0
        %v4287 = vadd.f32 0.0, %v4286
        %v4288 = vpop.f32.mrf.mxu0
        %4289 = vmatprep.mubr.bf16.mxu0 0
        %4290 = vmatmul.mubr.bf16.gmra.mxu0 %v4169
        %v4291 = vpop.f32.mrf.mxu0
        %v4292 = vadd.f32 0.0, %v4291
        %v4293 = vpop.f32.mrf.mxu0
        %v4294 = vpop.f32.mrf.mxu0
        %v4295 = vadd.f32 0.0, %v4294
        %v4296 = vpop.f32.mrf.mxu0
        %4297 = vmatprep.mubr.bf16.mxu0 0
        %4298 = vmatmul.mubr.bf16.gmra.mxu0 %v4170
        %v4299 = vpop.f32.mrf.mxu0
        %v4300 = vadd.f32 0.0, %v4299
        %v4301 = vpop.f32.mrf.mxu0
        %v4302 = vpop.f32.mrf.mxu0
        %v4303 = vadd.f32 0.0, %v4302
        %v4304 = vpop.f32.mrf.mxu0
        %4305 = vmatprep.mubr.bf16.mxu0 0
        %4306 = vmatmul.mubr.bf16.gmra.mxu0 %v4171
        %v4307 = vpop.f32.mrf.mxu0
        %v4308 = vadd.f32 0.0, %v4307
        %v4309 = vpop.f32.mrf.mxu0
        %v4310 = vpop.f32.mrf.mxu0
        %v4311 = vadd.f32 0.0, %v4310
        %v4312 = vpop.f32.mrf.mxu0
        %4313 = vmatprep.mubr.bf16.mxu0 0
        %4314 = vmatmul.mubr.bf16.gmra.mxu0 %v4172
        %v4315 = vpop.f32.mrf.mxu0
        %v4316 = vadd.f32 0.0, %v4315
        %v4317 = vpop.f32.mrf.mxu0
        %v4318 = vpop.f32.mrf.mxu0
        %v4319 = vadd.f32 0.0, %v4318
        %v4320 = vpop.f32.mrf.mxu0
        %4321 = vdwg.mxu0
        %v4322 = vadd.f32 %v4132, %v4260
        %v4323 = vadd.f32 %v4133, %v4263
        %v4324 = vadd.f32 %v4134, %v4268
        %v4325 = vadd.f32 %v4135, %v4271
        %v4326 = vadd.f32 %v4136, %v4276
        %v4327 = vadd.f32 %v4137, %v4279
        %v4328 = vadd.f32 %v4138, %v4284
        %v4329 = vadd.f32 %v4139, %v4287
        %v4330 = vadd.f32 %v4140, %v4292
        %v4331 = vadd.f32 %v4141, %v4295
        %v4332 = vadd.f32 %v4142, %v4300
        %v4333 = vadd.f32 %v4143, %v4303
        %v4334 = vadd.f32 %v4144, %v4308
        %v4335 = vadd.f32 %v4145, %v4311
        %v4336 = vadd.f32 %v4146, %v4316
        %v4337 = vadd.f32 %v4147, %v4319
        %s4338 = scalar_lea.vmem [#allocation8], 384
        %v4339 = vld [vmem:[%s4338] sm:$0xf]
        %v4340 = vld [vmem:[%s4338 + $0x4] sm:$0xf]
        %v4341 = vld [vmem:[%s4338 + $0x8] sm:$0xf]
        %v4342 = vld [vmem:[%s4338 + $0xc] sm:$0xf]
        %v4343 = vld [vmem:[%s4338 + $0x10] sm:$0xf]
        %v4344 = vld [vmem:[%s4338 + $0x14] sm:$0xf]
        %v4345 = vld [vmem:[%s4338 + $0x18] sm:$0xf]
        %v4346 = vld [vmem:[%s4338 + $0x1c] sm:$0xf]
        %v4347 = vld [vmem:[%s4338 + $0x20] sm:$0xf]
        %v4348 = vld [vmem:[%s4338 + $0x24] sm:$0xf]
        %v4349 = vld [vmem:[%s4338 + $0x28] sm:$0xf]
        %v4350 = vld [vmem:[%s4338 + $0x2c] sm:$0xf]
        %v4351 = vld [vmem:[%s4338 + $0x30] sm:$0xf]
        %v4352 = vld [vmem:[%s4338 + $0x34] sm:$0xf]
        %v4353 = vld [vmem:[%s4338 + $0x38] sm:$0xf]
        %v4354 = vld [vmem:[%s4338 + $0x3c] sm:$0xf]
        %v4359 = vunpack.c.l.b16 %v555
        %v4360 = vunpack.c.l.b16 %v556
        %v4361 = vunpack.c.l.b16 %v558
        %v4362 = vunpack.c.l.b16 %v559
        %v4363 = vunpack.c.l.b16 %v561
        %v4364 = vunpack.c.l.b16 %v562
        %v4365 = vunpack.c.l.b16 %v564
        %v4366 = vunpack.c.l.b16 %v565
        %v4367 = vpack.c.b16 %v4360, %v4359
        %v4368 = vpack.c.b16 %v4362, %v4361
        %v4369 = vpack.c.b16 %v4364, %v4363
        %v4370 = vpack.c.b16 %v4366, %v4365
        %v4391 = vunpack.c.l.b16 %v4339
        %v4392 = vunpack.c.l.b16 %v4340
        %v4393 = vunpack.c.l.b16 %v4341
        %v4394 = vunpack.c.l.b16 %v4342
        %v4395 = vunpack.c.l.b16 %v4343
        %v4396 = vunpack.c.l.b16 %v4344
        %v4397 = vunpack.c.l.b16 %v4345
        %v4398 = vunpack.c.l.b16 %v4346
        %v4399 = vunpack.c.l.b16 %v4347
        %v4400 = vunpack.c.l.b16 %v4348
        %v4401 = vunpack.c.l.b16 %v4349
        %v4402 = vunpack.c.l.b16 %v4350
        %v4403 = vunpack.c.l.b16 %v4351
        %v4404 = vunpack.c.l.b16 %v4352
        %v4405 = vunpack.c.l.b16 %v4353
        %v4406 = vunpack.c.l.b16 %v4354
        %v4407 = vpack.c.b16 %v4392, %v4391
        %v4408 = vpack.c.b16 %v4394, %v4393
        %v4409 = vpack.c.b16 %v4396, %v4395
        %v4410 = vpack.c.b16 %v4398, %v4397
        %v4411 = vpack.c.b16 %v4400, %v4399
        %v4412 = vpack.c.b16 %v4402, %v4401
        %v4413 = vpack.c.b16 %v4404, %v4403
        %v4414 = vpack.c.b16 %v4406, %v4405
        %4423 = vmatprep.subr.bf16.mxu0 0
        %4424 = vmatpush1.bf16.msra.mxu0 %v4414
        %4425 = vmatprep.subr.bf16.mxu0 0
        %4426 = vmatpush1.bf16.msra.mxu0 %v4413
        %4427 = vmatprep.subr.bf16.mxu0 0
        %4428 = vmatpush1.bf16.msra.mxu0 %v4412
        %4429 = vmatprep.subr.bf16.mxu0 0
        %4430 = vmatpush1.bf16.msra.mxu0 %v4411
        %4431 = vmatprep.subr.bf16.mxu0 0
        %4432 = vmatpush1.bf16.msra.mxu0 %v4410
        %4433 = vmatprep.subr.bf16.mxu0 0
        %4434 = vmatpush1.bf16.msra.mxu0 %v4409
        %4435 = vmatprep.subr.bf16.mxu0 0
        %4436 = vmatpush1.bf16.msra.mxu0 %v4408
        %4437 = vmatprep.subr.bf16.mxu0 0
        %4438 = vmatpush1.bf16.msra.mxu0 %v4407
        %4439 = vmatprep.subr.bf16.mxu0 0
        %4440 = vmatpush2.bf16.msra.mxu0 0
        %4441 = vmatprep.subr.bf16.mxu0 0
        %4442 = vmatpush2.bf16.msra.mxu0 0
        %4443 = vmatprep.subr.bf16.mxu0 0
        %4444 = vmatpush2.bf16.msra.mxu0 0
        %4445 = vmatprep.subr.bf16.mxu0 0
        %4446 = vmatpush2.bf16.msra.mxu0 0
        %4447 = vmatprep.subr.bf16.mxu0 0
        %4448 = vmatpush2.bf16.msra.mxu0 0
        %4449 = vmatprep.subr.bf16.mxu0 0
        %4450 = vmatpush2.bf16.msra.mxu0 0
        %4451 = vmatprep.subr.bf16.mxu0 0
        %4452 = vmatpush2.bf16.msra.mxu0 0
        %4453 = vmatprep.subr.bf16.mxu0 0
        %4454 = vmatpush2.bf16.msra.mxu0 0
        %4455 = vmatprep.mubr.bf16.mxu0 0
        %4456 = vmatmul.mubr.bf16.gmra.mxu0 %v3801
        %v4457 = vpop.f32.mrf.mxu0
        %v4458 = vadd.f32 0.0, %v4457
        %v4459 = vpop.f32.mrf.mxu0
        %v4460 = vpop.f32.mrf.mxu0
        %v4461 = vadd.f32 0.0, %v4460
        %v4462 = vpop.f32.mrf.mxu0
        %4463 = vmatprep.mubr.bf16.mxu0 0
        %4464 = vmatmul.mubr.bf16.gmra.mxu0 %v3802
        %v4465 = vpop.f32.mrf.mxu0
        %v4466 = vadd.f32 0.0, %v4465
        %v4467 = vpop.f32.mrf.mxu0
        %v4468 = vpop.f32.mrf.mxu0
        %v4469 = vadd.f32 0.0, %v4468
        %v4470 = vpop.f32.mrf.mxu0
        %4471 = vmatprep.mubr.bf16.mxu0 0
        %4472 = vmatmul.mubr.bf16.gmra.mxu0 %v3803
        %v4473 = vpop.f32.mrf.mxu0
        %v4474 = vadd.f32 0.0, %v4473
        %v4475 = vpop.f32.mrf.mxu0
        %v4476 = vpop.f32.mrf.mxu0
        %v4477 = vadd.f32 0.0, %v4476
        %v4478 = vpop.f32.mrf.mxu0
        %4479 = vmatprep.mubr.bf16.mxu0 0
        %4480 = vmatmul.mubr.bf16.gmra.mxu0 %v3804
        %v4481 = vpop.f32.mrf.mxu0
        %v4482 = vadd.f32 0.0, %v4481
        %v4483 = vpop.f32.mrf.mxu0
        %v4484 = vpop.f32.mrf.mxu0
        %v4485 = vadd.f32 0.0, %v4484
        %v4486 = vpop.f32.mrf.mxu0
        %4487 = vmatprep.mubr.bf16.mxu0 0
        %4488 = vmatmul.mubr.bf16.gmra.mxu0 %v4367
        %v4489 = vpop.f32.mrf.mxu0
        %v4490 = vadd.f32 0.0, %v4489
        %v4491 = vpop.f32.mrf.mxu0
        %v4492 = vpop.f32.mrf.mxu0
        %v4493 = vadd.f32 0.0, %v4492
        %v4494 = vpop.f32.mrf.mxu0
        %4495 = vmatprep.mubr.bf16.mxu0 0
        %4496 = vmatmul.mubr.bf16.gmra.mxu0 %v4368
        %v4497 = vpop.f32.mrf.mxu0
        %v4498 = vadd.f32 0.0, %v4497
        %v4499 = vpop.f32.mrf.mxu0
        %v4500 = vpop.f32.mrf.mxu0
        %v4501 = vadd.f32 0.0, %v4500
        %v4502 = vpop.f32.mrf.mxu0
        %4503 = vmatprep.mubr.bf16.mxu0 0
        %4504 = vmatmul.mubr.bf16.gmra.mxu0 %v4369
        %v4505 = vpop.f32.mrf.mxu0
        %v4506 = vadd.f32 0.0, %v4505
        %v4507 = vpop.f32.mrf.mxu0
        %v4508 = vpop.f32.mrf.mxu0
        %v4509 = vadd.f32 0.0, %v4508
        %v4510 = vpop.f32.mrf.mxu0
        %4511 = vmatprep.mubr.bf16.mxu0 0
        %4512 = vmatmul.mubr.bf16.gmra.mxu0 %v4370
        %v4513 = vpop.f32.mrf.mxu0
        %v4514 = vadd.f32 0.0, %v4513
        %v4515 = vpop.f32.mrf.mxu0
        %v4516 = vpop.f32.mrf.mxu0
        %v4517 = vadd.f32 0.0, %v4516
        %v4518 = vpop.f32.mrf.mxu0
        %4519 = vdwg.mxu0
        %v4520 = vadd.f32 %v4322, %v4458
        %v4521 = vadd.f32 %v4323, %v4461
        %v4522 = vadd.f32 %v4324, %v4466
        %v4523 = vadd.f32 %v4325, %v4469
        %v4524 = vadd.f32 %v4326, %v4474
        %v4525 = vadd.f32 %v4327, %v4477
        %v4526 = vadd.f32 %v4328, %v4482
        %v4527 = vadd.f32 %v4329, %v4485
        %v4528 = vadd.f32 %v4330, %v4490
        %v4529 = vadd.f32 %v4331, %v4493
        %v4530 = vadd.f32 %v4332, %v4498
        %v4531 = vadd.f32 %v4333, %v4501
        %v4532 = vadd.f32 %v4334, %v4506
        %v4533 = vadd.f32 %v4335, %v4509
        %v4534 = vadd.f32 %v4336, %v4514
        %v4535 = vadd.f32 %v4337, %v4517
        %v4538 = vrot.slane %v561, 6
        %v4539 = vrot.slane %v4538, 4
        %v4540 = vrot.slane %v562, 6
        %v4541 = vsel %vm595, %v4539, %v4540
        %v4542 = vrot.slane %v4540, 4
        %v4543 = vrot.slane %v563, 6
        %v4544 = vsel %vm595, %v4542, %v4543
        %v4545 = vrot.slane %v564, 6
        %v4546 = vrot.slane %v4545, 4
        %v4547 = vrot.slane %v565, 6
        %v4548 = vsel %vm595, %v4546, %v4547
        %v4549 = vrot.slane %v4547, 4
        %v4550 = vrot.slane %v566, 6
        %v4551 = vsel %vm595, %v4549, %v4550
        %s4552 = scalar_lea.vmem [#allocation8], 448
        %v4553 = vld [vmem:[%s4552] sm:$0xf]
        %v4554 = vld [vmem:[%s4552 + $0x4] sm:$0xf]
        %v4555 = vld [vmem:[%s4552 + $0x8] sm:$0xf]
        %v4556 = vld [vmem:[%s4552 + $0xc] sm:$0xf]
        %v4557 = vld [vmem:[%s4552 + $0x10] sm:$0xf]
        %v4558 = vld [vmem:[%s4552 + $0x14] sm:$0xf]
        %v4559 = vld [vmem:[%s4552 + $0x18] sm:$0xf]
        %v4560 = vld [vmem:[%s4552 + $0x1c] sm:$0xf]
        %v4561 = vld [vmem:[%s4552 + $0x20] sm:$0xf]
        %v4562 = vld [vmem:[%s4552 + $0x24] sm:$0xf]
        %v4563 = vld [vmem:[%s4552 + $0x28] sm:$0xf]
        %v4564 = vld [vmem:[%s4552 + $0x2c] sm:$0xf]
        %v4565 = vld [vmem:[%s4552 + $0x30] sm:$0xf]
        %v4566 = vld [vmem:[%s4552 + $0x34] sm:$0xf]
        %v4567 = vld [vmem:[%s4552 + $0x38] sm:$0xf]
        %v4568 = vld [vmem:[%s4552 + $0x3c] sm:$0xf]
        %v4569 = vunpack.c.l.b16 %v4541
        %v4570 = vunpack.c.l.b16 %v4544
        %v4571 = vunpack.c.l.b16 %v4548
        %v4572 = vunpack.c.l.b16 %v4551
        %v4573 = vpack.c.b16 %v4570, %v4569
        %v4574 = vpack.c.b16 %v4572, %v4571
        %v4593 = vunpack.c.l.b16 %v4553
        %v4594 = vunpack.c.l.b16 %v4554
        %v4595 = vunpack.c.l.b16 %v4555
        %v4596 = vunpack.c.l.b16 %v4556
        %v4597 = vunpack.c.l.b16 %v4557
        %v4598 = vunpack.c.l.b16 %v4558
        %v4599 = vunpack.c.l.b16 %v4559
        %v4600 = vunpack.c.l.b16 %v4560
        %v4601 = vunpack.c.l.b16 %v4561
        %v4602 = vunpack.c.l.b16 %v4562
        %v4603 = vunpack.c.l.b16 %v4563
        %v4604 = vunpack.c.l.b16 %v4564
        %v4605 = vunpack.c.l.b16 %v4565
        %v4606 = vunpack.c.l.b16 %v4566
        %v4607 = vunpack.c.l.b16 %v4567
        %v4608 = vunpack.c.l.b16 %v4568
        %v4609 = vpack.c.b16 %v4594, %v4593
        %v4610 = vpack.c.b16 %v4596, %v4595
        %v4611 = vpack.c.b16 %v4598, %v4597
        %v4612 = vpack.c.b16 %v4600, %v4599
        %v4613 = vpack.c.b16 %v4602, %v4601
        %v4614 = vpack.c.b16 %v4604, %v4603
        %v4615 = vpack.c.b16 %v4606, %v4605
        %v4616 = vpack.c.b16 %v4608, %v4607
        %4625 = vmatprep.subr.bf16.mxu0 0
        %4626 = vmatpush1.bf16.msra.mxu0 %v4616
        %4627 = vmatprep.subr.bf16.mxu0 0
        %4628 = vmatpush1.bf16.msra.mxu0 %v4615
        %4629 = vmatprep.subr.bf16.mxu0 0
        %4630 = vmatpush1.bf16.msra.mxu0 %v4614
        %4631 = vmatprep.subr.bf16.mxu0 0
        %4632 = vmatpush1.bf16.msra.mxu0 %v4613
        %4633 = vmatprep.subr.bf16.mxu0 0
        %4634 = vmatpush1.bf16.msra.mxu0 %v4612
        %4635 = vmatprep.subr.bf16.mxu0 0
        %4636 = vmatpush1.bf16.msra.mxu0 %v4611
        %4637 = vmatprep.subr.bf16.mxu0 0
        %4638 = vmatpush1.bf16.msra.mxu0 %v4610
        %4639 = vmatprep.subr.bf16.mxu0 0
        %4640 = vmatpush1.bf16.msra.mxu0 %v4609
        %4641 = vmatprep.subr.bf16.mxu0 0
        %4642 = vmatpush2.bf16.msra.mxu0 0
        %4643 = vmatprep.subr.bf16.mxu0 0
        %4644 = vmatpush2.bf16.msra.mxu0 0
        %4645 = vmatprep.subr.bf16.mxu0 0
        %4646 = vmatpush2.bf16.msra.mxu0 0
        %4647 = vmatprep.subr.bf16.mxu0 0
        %4648 = vmatpush2.bf16.msra.mxu0 0
        %4649 = vmatprep.subr.bf16.mxu0 0
        %4650 = vmatpush2.bf16.msra.mxu0 0
        %4651 = vmatprep.subr.bf16.mxu0 0
        %4652 = vmatpush2.bf16.msra.mxu0 0
        %4653 = vmatprep.subr.bf16.mxu0 0
        %4654 = vmatpush2.bf16.msra.mxu0 0
        %4655 = vmatprep.subr.bf16.mxu0 0
        %4656 = vmatpush2.bf16.msra.mxu0 0
        %4657 = vmatprep.mubr.bf16.mxu0 0
        %4658 = vmatmul.mubr.bf16.gmra.mxu0 %v688
        %v4659 = vpop.f32.mrf.mxu0
        %v4660 = vadd.f32 0.0, %v4659
        %v4661 = vpop.f32.mrf.mxu0
        %v4662 = vpop.f32.mrf.mxu0
        %v4663 = vadd.f32 0.0, %v4662
        %v4664 = vpop.f32.mrf.mxu0
        %4665 = vmatprep.mubr.bf16.mxu0 0
        %4666 = vmatmul.mubr.bf16.gmra.mxu0 %v689
        %v4667 = vpop.f32.mrf.mxu0
        %v4668 = vadd.f32 0.0, %v4667
        %v4669 = vpop.f32.mrf.mxu0
        %v4670 = vpop.f32.mrf.mxu0
        %v4671 = vadd.f32 0.0, %v4670
        %v4672 = vpop.f32.mrf.mxu0
        %4673 = vmatprep.mubr.bf16.mxu0 0
        %4674 = vmatmul.mubr.bf16.gmra.mxu0 %v690
        %v4675 = vpop.f32.mrf.mxu0
        %v4676 = vadd.f32 0.0, %v4675
        %v4677 = vpop.f32.mrf.mxu0
        %v4678 = vpop.f32.mrf.mxu0
        %v4679 = vadd.f32 0.0, %v4678
        %v4680 = vpop.f32.mrf.mxu0
        %4681 = vmatprep.mubr.bf16.mxu0 0
        %4682 = vmatmul.mubr.bf16.gmra.mxu0 %v691
        %v4683 = vpop.f32.mrf.mxu0
        %v4684 = vadd.f32 0.0, %v4683
        %v4685 = vpop.f32.mrf.mxu0
        %v4686 = vpop.f32.mrf.mxu0
        %v4687 = vadd.f32 0.0, %v4686
        %v4688 = vpop.f32.mrf.mxu0
        %4689 = vmatprep.mubr.bf16.mxu0 0
        %4690 = vmatmul.mubr.bf16.gmra.mxu0 %v2455
        %v4691 = vpop.f32.mrf.mxu0
        %v4692 = vadd.f32 0.0, %v4691
        %v4693 = vpop.f32.mrf.mxu0
        %v4694 = vpop.f32.mrf.mxu0
        %v4695 = vadd.f32 0.0, %v4694
        %v4696 = vpop.f32.mrf.mxu0
        %4697 = vmatprep.mubr.bf16.mxu0 0
        %4698 = vmatmul.mubr.bf16.gmra.mxu0 %v2456
        %v4699 = vpop.f32.mrf.mxu0
        %v4700 = vadd.f32 0.0, %v4699
        %v4701 = vpop.f32.mrf.mxu0
        %v4702 = vpop.f32.mrf.mxu0
        %v4703 = vadd.f32 0.0, %v4702
        %v4704 = vpop.f32.mrf.mxu0
        %4705 = vmatprep.mubr.bf16.mxu0 0
        %4706 = vmatmul.mubr.bf16.gmra.mxu0 %v4573
        %v4707 = vpop.f32.mrf.mxu0
        %v4708 = vadd.f32 0.0, %v4707
        %v4709 = vpop.f32.mrf.mxu0
        %v4710 = vpop.f32.mrf.mxu0
        %v4711 = vadd.f32 0.0, %v4710
        %v4712 = vpop.f32.mrf.mxu0
        %4713 = vmatprep.mubr.bf16.mxu0 0
        %4714 = vmatmul.mubr.bf16.gmra.mxu0 %v4574
        %v4715 = vpop.f32.mrf.mxu0
        %v4716 = vadd.f32 0.0, %v4715
        %v4717 = vpop.f32.mrf.mxu0
        %v4718 = vpop.f32.mrf.mxu0
        %v4719 = vadd.f32 0.0, %v4718
        %v4720 = vpop.f32.mrf.mxu0
        %4721 = vdwg.mxu0
        %v4722 = vadd.f32 %v4520, %v4660
        %v4723 = vadd.f32 %v4521, %v4663
        %v4724 = vadd.f32 %v4522, %v4668
        %v4725 = vadd.f32 %v4523, %v4671
        %v4726 = vadd.f32 %v4524, %v4676
        %v4727 = vadd.f32 %v4525, %v4679
        %v4728 = vadd.f32 %v4526, %v4684
        %v4729 = vadd.f32 %v4527, %v4687
        %v4730 = vadd.f32 %v4528, %v4692
        %v4731 = vadd.f32 %v4529, %v4695
        %v4732 = vadd.f32 %v4530, %v4700
        %v4733 = vadd.f32 %v4531, %v4703
        %v4734 = vadd.f32 %v4532, %v4708
        %v4735 = vadd.f32 %v4533, %v4711
        %v4736 = vadd.f32 %v4534, %v4716
        %v4737 = vadd.f32 %v4535, %v4719
        %s4738 = scalar_lea.vmem [#allocation8], 512
        %v4739 = vld [vmem:[%s4738] sm:$0xf]
        %v4740 = vld [vmem:[%s4738 + $0x4] sm:$0xf]
        %v4741 = vld [vmem:[%s4738 + $0x8] sm:$0xf]
        %v4742 = vld [vmem:[%s4738 + $0xc] sm:$0xf]
        %v4743 = vld [vmem:[%s4738 + $0x10] sm:$0xf]
        %v4744 = vld [vmem:[%s4738 + $0x14] sm:$0xf]
        %v4745 = vld [vmem:[%s4738 + $0x18] sm:$0xf]
        %v4746 = vld [vmem:[%s4738 + $0x1c] sm:$0xf]
        %v4747 = vld [vmem:[%s4738 + $0x20] sm:$0xf]
        %v4748 = vld [vmem:[%s4738 + $0x24] sm:$0xf]
        %v4749 = vld [vmem:[%s4738 + $0x28] sm:$0xf]
        %v4750 = vld [vmem:[%s4738 + $0x2c] sm:$0xf]
        %v4751 = vld [vmem:[%s4738 + $0x30] sm:$0xf]
        %v4752 = vld [vmem:[%s4738 + $0x34] sm:$0xf]
        %v4753 = vld [vmem:[%s4738 + $0x38] sm:$0xf]
        %v4754 = vld [vmem:[%s4738 + $0x3c] sm:$0xf]
        %v4755 = vunpack.c.l.b16 %v557
        %v4756 = vunpack.c.l.b16 %v560
        %v4757 = vunpack.c.l.b16 %v563
        %v4758 = vunpack.c.l.b16 %v566
        %v4759 = vpack.c.b16 %v4755, %v4360
        %v4760 = vpack.c.b16 %v4756, %v4362
        %v4761 = vpack.c.b16 %v4757, %v4364
        %v4762 = vpack.c.b16 %v4758, %v4366
        %v4783 = vunpack.c.l.b16 %v4739
        %v4784 = vunpack.c.l.b16 %v4740
        %v4785 = vunpack.c.l.b16 %v4741
        %v4786 = vunpack.c.l.b16 %v4742
        %v4787 = vunpack.c.l.b16 %v4743
        %v4788 = vunpack.c.l.b16 %v4744
        %v4789 = vunpack.c.l.b16 %v4745
        %v4790 = vunpack.c.l.b16 %v4746
        %v4791 = vunpack.c.l.b16 %v4747
        %v4792 = vunpack.c.l.b16 %v4748
        %v4793 = vunpack.c.l.b16 %v4749
        %v4794 = vunpack.c.l.b16 %v4750
        %v4795 = vunpack.c.l.b16 %v4751
        %v4796 = vunpack.c.l.b16 %v4752
        %v4797 = vunpack.c.l.b16 %v4753
        %v4798 = vunpack.c.l.b16 %v4754
        %v4799 = vpack.c.b16 %v4784, %v4783
        %v4800 = vpack.c.b16 %v4786, %v4785
        %v4801 = vpack.c.b16 %v4788, %v4787
        %v4802 = vpack.c.b16 %v4790, %v4789
        %v4803 = vpack.c.b16 %v4792, %v4791
        %v4804 = vpack.c.b16 %v4794, %v4793
        %v4805 = vpack.c.b16 %v4796, %v4795
        %v4806 = vpack.c.b16 %v4798, %v4797
        %4815 = vmatprep.subr.bf16.mxu0 0
        %4816 = vmatpush1.bf16.msra.mxu0 %v4806
        %4817 = vmatprep.subr.bf16.mxu0 0
        %4818 = vmatpush1.bf16.msra.mxu0 %v4805
        %4819 = vmatprep.subr.bf16.mxu0 0
        %4820 = vmatpush1.bf16.msra.mxu0 %v4804
        %4821 = vmatprep.subr.bf16.mxu0 0
        %4822 = vmatpush1.bf16.msra.mxu0 %v4803
        %4823 = vmatprep.subr.bf16.mxu0 0
        %4824 = vmatpush1.bf16.msra.mxu0 %v4802
        %4825 = vmatprep.subr.bf16.mxu0 0
        %4826 = vmatpush1.bf16.msra.mxu0 %v4801
        %4827 = vmatprep.subr.bf16.mxu0 0
        %4828 = vmatpush1.bf16.msra.mxu0 %v4800
        %4829 = vmatprep.subr.bf16.mxu0 0
        %4830 = vmatpush1.bf16.msra.mxu0 %v4799
        %4831 = vmatprep.subr.bf16.mxu0 0
        %4832 = vmatpush2.bf16.msra.mxu0 0
        %4833 = vmatprep.subr.bf16.mxu0 0
        %4834 = vmatpush2.bf16.msra.mxu0 0
        %4835 = vmatprep.subr.bf16.mxu0 0
        %4836 = vmatpush2.bf16.msra.mxu0 0
        %4837 = vmatprep.subr.bf16.mxu0 0
        %4838 = vmatpush2.bf16.msra.mxu0 0
        %4839 = vmatprep.subr.bf16.mxu0 0
        %4840 = vmatpush2.bf16.msra.mxu0 0
        %4841 = vmatprep.subr.bf16.mxu0 0
        %4842 = vmatpush2.bf16.msra.mxu0 0
        %4843 = vmatprep.subr.bf16.mxu0 0
        %4844 = vmatpush2.bf16.msra.mxu0 0
        %4845 = vmatprep.subr.bf16.mxu0 0
        %4846 = vmatpush2.bf16.msra.mxu0 0
        %4847 = vmatprep.mubr.bf16.mxu0 0
        %4848 = vmatmul.mubr.bf16.gmra.mxu0 %v4169
        %v4849 = vpop.f32.mrf.mxu0
        %v4850 = vadd.f32 0.0, %v4849
        %v4851 = vpop.f32.mrf.mxu0
        %v4852 = vpop.f32.mrf.mxu0
        %v4853 = vadd.f32 0.0, %v4852
        %v4854 = vpop.f32.mrf.mxu0
        %4855 = vmatprep.mubr.bf16.mxu0 0
        %4856 = vmatmul.mubr.bf16.gmra.mxu0 %v4170
        %v4857 = vpop.f32.mrf.mxu0
        %v4858 = vadd.f32 0.0, %v4857
        %v4859 = vpop.f32.mrf.mxu0
        %v4860 = vpop.f32.mrf.mxu0
        %v4861 = vadd.f32 0.0, %v4860
        %v4862 = vpop.f32.mrf.mxu0
        %4863 = vmatprep.mubr.bf16.mxu0 0
        %4864 = vmatmul.mubr.bf16.gmra.mxu0 %v4171
        %v4865 = vpop.f32.mrf.mxu0
        %v4866 = vadd.f32 0.0, %v4865
        %v4867 = vpop.f32.mrf.mxu0
        %v4868 = vpop.f32.mrf.mxu0
        %v4869 = vadd.f32 0.0, %v4868
        %v4870 = vpop.f32.mrf.mxu0
        %4871 = vmatprep.mubr.bf16.mxu0 0
        %4872 = vmatmul.mubr.bf16.gmra.mxu0 %v4172
        %v4873 = vpop.f32.mrf.mxu0
        %v4874 = vadd.f32 0.0, %v4873
        %v4875 = vpop.f32.mrf.mxu0
        %v4876 = vpop.f32.mrf.mxu0
        %v4877 = vadd.f32 0.0, %v4876
        %v4878 = vpop.f32.mrf.mxu0
        %4879 = vmatprep.mubr.bf16.mxu0 0
        %4880 = vmatmul.mubr.bf16.gmra.mxu0 %v4759
        %v4881 = vpop.f32.mrf.mxu0
        %v4882 = vadd.f32 0.0, %v4881
        %v4883 = vpop.f32.mrf.mxu0
        %v4884 = vpop.f32.mrf.mxu0
        %v4885 = vadd.f32 0.0, %v4884
        %v4886 = vpop.f32.mrf.mxu0
        %4887 = vmatprep.mubr.bf16.mxu0 0
        %4888 = vmatmul.mubr.bf16.gmra.mxu0 %v4760
        %v4889 = vpop.f32.mrf.mxu0
        %v4890 = vadd.f32 0.0, %v4889
        %v4891 = vpop.f32.mrf.mxu0
        %v4892 = vpop.f32.mrf.mxu0
        %v4893 = vadd.f32 0.0, %v4892
        %v4894 = vpop.f32.mrf.mxu0
        %4895 = vmatprep.mubr.bf16.mxu0 0
        %4896 = vmatmul.mubr.bf16.gmra.mxu0 %v4761
        %v4897 = vpop.f32.mrf.mxu0
        %v4898 = vadd.f32 0.0, %v4897
        %v4899 = vpop.f32.mrf.mxu0
        %v4900 = vpop.f32.mrf.mxu0
        %v4901 = vadd.f32 0.0, %v4900
        %v4902 = vpop.f32.mrf.mxu0
        %4903 = vmatprep.mubr.bf16.mxu0 0
        %4904 = vmatmul.mubr.bf16.gmra.mxu0 %v4762
        %v4905 = vpop.f32.mrf.mxu0
        %v4906 = vadd.f32 0.0, %v4905
        %v4907 = vpop.f32.mrf.mxu0
        %v4908 = vpop.f32.mrf.mxu0
        %v4909 = vadd.f32 0.0, %v4908
        %v4910 = vpop.f32.mrf.mxu0
        %4911 = vdwg.mxu0
        %v4912 = vadd.f32 %v4722, %v4850
        %v4913 = vadd.f32 %v4723, %v4853
        %v4914 = vadd.f32 %v4724, %v4858
        %v4915 = vadd.f32 %v4725, %v4861
        %v4916 = vadd.f32 %v4726, %v4866
        %v4917 = vadd.f32 %v4727, %v4869
        %v4918 = vadd.f32 %v4728, %v4874
        %v4919 = vadd.f32 %v4729, %v4877
        %v4920 = vadd.f32 %v4730, %v4882
        %v4921 = vadd.f32 %v4731, %v4885
        %v4922 = vadd.f32 %v4732, %v4890
        %v4923 = vadd.f32 %v4733, %v4893
        %v4924 = vadd.f32 %v4734, %v4898
        %v4925 = vadd.f32 %v4735, %v4901
        %v4926 = vadd.f32 %v4736, %v4906
        %v4927 = vadd.f32 %v4737, %v4909
        %v4928 = vlaneseq
        %v4929 = vshrl.u32 %v4928, 7
        %v4930 = vsub.s32 2, %v4929
        %v4931 = vrot.slane %v567, %v4930
        %v4932 = vmul.f32 %v4912, %v4931
        %v4933 = vmul.f32 %v4913, %v4931
        %v4934 = vmul.f32 %v4914, %v4931
        %v4935 = vmul.f32 %v4915, %v4931
        %v4936 = vmul.f32 %v4916, %v4931
        %v4937 = vmul.f32 %v4917, %v4931
        %v4938 = vmul.f32 %v4918, %v4931
        %v4939 = vmul.f32 %v4919, %v4931
        %v4940 = vmul.f32 %v4920, %v4931
        %v4941 = vmul.f32 %v4921, %v4931
        %v4942 = vmul.f32 %v4922, %v4931
        %v4943 = vmul.f32 %v4923, %v4931
        %v4944 = vmul.f32 %v4924, %v4931
        %v4945 = vmul.f32 %v4925, %v4931
        %v4946 = vmul.f32 %v4926, %v4931
        %v4947 = vmul.f32 %v4927, %v4931
        %v4948 = vlaneseq
        %v4949 = vshrl.u32 %v4948, 7
        %v4950 = vsub.s32 2, %v4949
        %v4951 = vrot.slane %v568, %v4950
        %v4952 = vadd.f32 %v4932, %v4951
        %v4953 = vadd.f32 %v4933, %v4951
        %v4954 = vadd.f32 %v4934, %v4951
        %v4955 = vadd.f32 %v4935, %v4951
        %v4956 = vadd.f32 %v4936, %v4951
        %v4957 = vadd.f32 %v4937, %v4951
        %v4958 = vadd.f32 %v4938, %v4951
        %v4959 = vadd.f32 %v4939, %v4951
        %v4960 = vadd.f32 %v4940, %v4951
        %v4961 = vadd.f32 %v4941, %v4951
        %v4962 = vadd.f32 %v4942, %v4951
        %v4963 = vadd.f32 %v4943, %v4951
        %v4964 = vadd.f32 %v4944, %v4951
        %v4965 = vadd.f32 %v4945, %v4951
        %v4966 = vadd.f32 %v4946, %v4951
        %v4967 = vadd.f32 %v4947, %v4951
        %v4968 = vmax.f32 %v4952, 0.0
        %v4969 = vmax.f32 %v4953, 0.0
        %v4970 = vmax.f32 %v4954, 0.0
        %v4971 = vmax.f32 %v4955, 0.0
        %v4972 = vmax.f32 %v4956, 0.0
        %v4973 = vmax.f32 %v4957, 0.0
        %v4974 = vmax.f32 %v4958, 0.0
        %v4975 = vmax.f32 %v4959, 0.0
        %v4976 = vmax.f32 %v4960, 0.0
        %v4977 = vmax.f32 %v4961, 0.0
        %v4978 = vmax.f32 %v4962, 0.0
        %v4979 = vmax.f32 %v4963, 0.0
        %v4980 = vmax.f32 %v4964, 0.0
        %v4981 = vmax.f32 %v4965, 0.0
        %v4982 = vmax.f32 %v4966, 0.0
        %v4983 = vmax.f32 %v4967, 0.0
        %v4984 = vpack.c.bf16 %v4969, %v4968
        %v4985 = vpack.c.bf16 %v4971, %v4970
        %v4986 = vpack.c.bf16 %v4973, %v4972
        %v4987 = vpack.c.bf16 %v4975, %v4974
        %v4988 = vpack.c.bf16 %v4977, %v4976
        %v4989 = vpack.c.bf16 %v4979, %v4978
        %v4990 = vpack.c.bf16 %v4981, %v4980
        %v4991 = vpack.c.bf16 %v4983, %v4982
        %s4992 = scalar_lea.vmem [#allocation11], 128
        %v4993 = vld [vmem:[%s4992] sm:$0xf]
        %v4994 = vld [vmem:[%s4992 + $0x4] sm:$0xf]
        %v4995 = vld [vmem:[%s4992 + $0x8] sm:$0xf]
        %v4996 = vld [vmem:[%s4992 + $0xc] sm:$0xf]
        %v4997 = vld [vmem:[%s4992 + $0x10] sm:$0xf]
        %v4998 = vld [vmem:[%s4992 + $0x14] sm:$0xf]
        %v4999 = vld [vmem:[%s4992 + $0x18] sm:$0xf]
        %v5000 = vld [vmem:[%s4992 + $0x1c] sm:$0xf]
        %v5001 = vld [vmem:[%s4992 + $0x20] sm:$0xf]
        %v5002 = vld [vmem:[%s4992 + $0x24] sm:$0xf]
        %v5003 = vld [vmem:[%s4992 + $0x28] sm:$0xf]
        %v5004 = vld [vmem:[%s4992 + $0x2c] sm:$0xf]
        %v5005 = vld [vmem:[%s4992 + $0x30] sm:$0xf]
        %v5006 = vld [vmem:[%s4992 + $0x34] sm:$0xf]
        %v5007 = vld [vmem:[%s4992 + $0x38] sm:$0xf]
        %v5008 = vld [vmem:[%s4992 + $0x3c] sm:$0xf]
        %v5025 = vunpack.c.l.b16 %v4993
        %v5026 = vunpack.c.l.b16 %v4994
        %v5027 = vunpack.c.l.b16 %v4995
        %v5028 = vunpack.c.l.b16 %v4996
        %v5029 = vunpack.c.l.b16 %v4997
        %v5030 = vunpack.c.l.b16 %v4998
        %v5031 = vunpack.c.l.b16 %v4999
        %v5032 = vunpack.c.l.b16 %v5000
        %v5033 = vunpack.c.l.b16 %v5001
        %v5034 = vunpack.c.l.b16 %v5002
        %v5035 = vunpack.c.l.b16 %v5003
        %v5036 = vunpack.c.l.b16 %v5004
        %v5037 = vunpack.c.l.b16 %v5005
        %v5038 = vunpack.c.l.b16 %v5006
        %v5039 = vunpack.c.l.b16 %v5007
        %v5040 = vunpack.c.l.b16 %v5008
        %v5041 = vpack.c.b16 %v5026, %v5025
        %v5042 = vpack.c.b16 %v5028, %v5027
        %v5043 = vpack.c.b16 %v5030, %v5029
        %v5044 = vpack.c.b16 %v5032, %v5031
        %v5045 = vpack.c.b16 %v5034, %v5033
        %v5046 = vpack.c.b16 %v5036, %v5035
        %v5047 = vpack.c.b16 %v5038, %v5037
        %v5048 = vpack.c.b16 %v5040, %v5039
        %5057 = vmatprep.subr.bf16.mxu0 0
        %5058 = vmatpush1.bf16.msra.mxu0 %v5048
        %5059 = vmatprep.subr.bf16.mxu0 0
        %5060 = vmatpush1.bf16.msra.mxu0 %v5047
        %5061 = vmatprep.subr.bf16.mxu0 0
        %5062 = vmatpush1.bf16.msra.mxu0 %v5046
        %5063 = vmatprep.subr.bf16.mxu0 0
        %5064 = vmatpush1.bf16.msra.mxu0 %v5045
        %5065 = vmatprep.subr.bf16.mxu0 0
        %5066 = vmatpush1.bf16.msra.mxu0 %v5044
        %5067 = vmatprep.subr.bf16.mxu0 0
        %5068 = vmatpush1.bf16.msra.mxu0 %v5043
        %5069 = vmatprep.subr.bf16.mxu0 0
        %5070 = vmatpush1.bf16.msra.mxu0 %v5042
        %5071 = vmatprep.subr.bf16.mxu0 0
        %5072 = vmatpush1.bf16.msra.mxu0 %v5041
        %5073 = vmatprep.subr.bf16.mxu0 0
        %5074 = vmatpush2.bf16.msra.mxu0 0
        %5075 = vmatprep.subr.bf16.mxu0 0
        %5076 = vmatpush2.bf16.msra.mxu0 0
        %5077 = vmatprep.subr.bf16.mxu0 0
        %5078 = vmatpush2.bf16.msra.mxu0 0
        %5079 = vmatprep.subr.bf16.mxu0 0
        %5080 = vmatpush2.bf16.msra.mxu0 0
        %5081 = vmatprep.subr.bf16.mxu0 0
        %5082 = vmatpush2.bf16.msra.mxu0 0
        %5083 = vmatprep.subr.bf16.mxu0 0
        %5084 = vmatpush2.bf16.msra.mxu0 0
        %5085 = vmatprep.subr.bf16.mxu0 0
        %5086 = vmatpush2.bf16.msra.mxu0 0
        %5087 = vmatprep.subr.bf16.mxu0 0
        %5088 = vmatpush2.bf16.msra.mxu0 0
        %5089 = vmatprep.mubr.bf16.mxu0 0
        %5090 = vmatmul.mubr.bf16.gmra.mxu0 %v4984
        %v5091 = vpop.f32.mrf.mxu0
        %v5092 = vadd.f32 0.0, %v5091
        %v5093 = vpop.f32.mrf.mxu0
        %v5094 = vpop.f32.mrf.mxu0
        %v5095 = vadd.f32 0.0, %v5094
        %v5096 = vpop.f32.mrf.mxu0
        %5097 = vmatprep.mubr.bf16.mxu0 0
        %5098 = vmatmul.mubr.bf16.gmra.mxu0 %v4985
        %v5099 = vpop.f32.mrf.mxu0
        %v5100 = vadd.f32 0.0, %v5099
        %v5101 = vpop.f32.mrf.mxu0
        %v5102 = vpop.f32.mrf.mxu0
        %v5103 = vadd.f32 0.0, %v5102
        %v5104 = vpop.f32.mrf.mxu0
        %5105 = vmatprep.mubr.bf16.mxu0 0
        %5106 = vmatmul.mubr.bf16.gmra.mxu0 %v4986
        %v5107 = vpop.f32.mrf.mxu0
        %v5108 = vadd.f32 0.0, %v5107
        %v5109 = vpop.f32.mrf.mxu0
        %v5110 = vpop.f32.mrf.mxu0
        %v5111 = vadd.f32 0.0, %v5110
        %v5112 = vpop.f32.mrf.mxu0
        %5113 = vmatprep.mubr.bf16.mxu0 0
        %5114 = vmatmul.mubr.bf16.gmra.mxu0 %v4987
        %v5115 = vpop.f32.mrf.mxu0
        %v5116 = vadd.f32 0.0, %v5115
        %v5117 = vpop.f32.mrf.mxu0
        %v5118 = vpop.f32.mrf.mxu0
        %v5119 = vadd.f32 0.0, %v5118
        %v5120 = vpop.f32.mrf.mxu0
        %5121 = vmatprep.mubr.bf16.mxu0 0
        %5122 = vmatmul.mubr.bf16.gmra.mxu0 %v4988
        %v5123 = vpop.f32.mrf.mxu0
        %v5124 = vadd.f32 0.0, %v5123
        %v5125 = vpop.f32.mrf.mxu0
        %v5126 = vpop.f32.mrf.mxu0
        %v5127 = vadd.f32 0.0, %v5126
        %v5128 = vpop.f32.mrf.mxu0
        %5129 = vmatprep.mubr.bf16.mxu0 0
        %5130 = vmatmul.mubr.bf16.gmra.mxu0 %v4989
        %v5131 = vpop.f32.mrf.mxu0
        %v5132 = vadd.f32 0.0, %v5131
        %v5133 = vpop.f32.mrf.mxu0
        %v5134 = vpop.f32.mrf.mxu0
        %v5135 = vadd.f32 0.0, %v5134
        %v5136 = vpop.f32.mrf.mxu0
        %5137 = vmatprep.mubr.bf16.mxu0 0
        %5138 = vmatmul.mubr.bf16.gmra.mxu0 %v4990
        %v5139 = vpop.f32.mrf.mxu0
        %v5140 = vadd.f32 0.0, %v5139
        %v5141 = vpop.f32.mrf.mxu0
        %v5142 = vpop.f32.mrf.mxu0
        %v5143 = vadd.f32 0.0, %v5142
        %v5144 = vpop.f32.mrf.mxu0
        %5145 = vmatprep.mubr.bf16.mxu0 0
        %5146 = vmatmul.mubr.bf16.gmra.mxu0 %v4991
        %v5147 = vpop.f32.mrf.mxu0
        %v5148 = vadd.f32 0.0, %v5147
        %v5149 = vpop.f32.mrf.mxu0
        %v5150 = vpop.f32.mrf.mxu0
        %v5151 = vadd.f32 0.0, %v5150
        %v5152 = vpop.f32.mrf.mxu0
        %5153 = vdwg.mxu0
        %v5154 = vadd.f32 %v3129, %v5092
        %v5155 = vadd.f32 %v3132, %v5095
        %v5156 = vadd.f32 %v3137, %v5100
        %v5157 = vadd.f32 %v3140, %v5103
        %v5158 = vadd.f32 %v3145, %v5108
        %v5159 = vadd.f32 %v3148, %v5111
        %v5160 = vadd.f32 %v3153, %v5116
        %v5161 = vadd.f32 %v3156, %v5119
        %v5162 = vadd.f32 %v3161, %v5124
        %v5163 = vadd.f32 %v3164, %v5127
        %v5164 = vadd.f32 %v3169, %v5132
        %v5165 = vadd.f32 %v3172, %v5135
        %v5166 = vadd.f32 %v3177, %v5140
        %v5167 = vadd.f32 %v3180, %v5143
        %v5168 = vadd.f32 %v3185, %v5148
        %v5169 = vadd.f32 %v3188, %v5151
        %v5170 = vld [vmem:[%s515] sm:$0x1]
        %v5171 = vld [vmem:[#allocation10] sm:$0xf]
        %v5172 = vld [vmem:[#allocation10 + $0x4] sm:$0xf]
        %v5173 = vld [vmem:[#allocation10 + $0x8] sm:$0xf]
        %v5174 = vld [vmem:[#allocation10 + $0xc] sm:$0xf]
        %v5175 = vld [vmem:[#allocation10 + $0x10] sm:$0xf]
        %v5176 = vld [vmem:[#allocation10 + $0x14] sm:$0xf]
        %v5177 = vld [vmem:[#allocation10 + $0x18] sm:$0xf]
        %v5178 = vld [vmem:[#allocation10 + $0x1c] sm:$0xf]
        %v5179 = vld [vmem:[#allocation10 + $0x20] sm:$0xf]
        %v5180 = vld [vmem:[#allocation10 + $0x24] sm:$0xf]
        %v5181 = vld [vmem:[#allocation10 + $0x28] sm:$0xf]
        %v5182 = vld [vmem:[#allocation10 + $0x2c] sm:$0xf]
        %v5183 = vld [vmem:[#allocation10 + $0x30] sm:$0xf]
        %v5184 = vld [vmem:[#allocation10 + $0x34] sm:$0xf]
        %v5185 = vld [vmem:[#allocation10 + $0x38] sm:$0xf]
        %v5186 = vld [vmem:[#allocation10 + $0x3c] sm:$0xf]
        %v5203 = vunpack.c.l.b16 %v5171
        %v5204 = vunpack.c.l.b16 %v5172
        %v5205 = vunpack.c.l.b16 %v5173
        %v5206 = vunpack.c.l.b16 %v5174
        %v5207 = vunpack.c.l.b16 %v5175
        %v5208 = vunpack.c.l.b16 %v5176
        %v5209 = vunpack.c.l.b16 %v5177
        %v5210 = vunpack.c.l.b16 %v5178
        %v5211 = vunpack.c.l.b16 %v5179
        %v5212 = vunpack.c.l.b16 %v5180
        %v5213 = vunpack.c.l.b16 %v5181
        %v5214 = vunpack.c.l.b16 %v5182
        %v5215 = vunpack.c.l.b16 %v5183
        %v5216 = vunpack.c.l.b16 %v5184
        %v5217 = vunpack.c.l.b16 %v5185
        %v5218 = vunpack.c.l.b16 %v5186
        %v5219 = vpack.c.b16 %v5204, %v5203
        %v5220 = vpack.c.b16 %v5206, %v5205
        %v5221 = vpack.c.b16 %v5208, %v5207
        %v5222 = vpack.c.b16 %v5210, %v5209
        %v5223 = vpack.c.b16 %v5212, %v5211
        %v5224 = vpack.c.b16 %v5214, %v5213
        %v5225 = vpack.c.b16 %v5216, %v5215
        %v5226 = vpack.c.b16 %v5218, %v5217
        %5235 = vmatprep.subr.bf16.mxu0 0
        %5236 = vmatpush1.bf16.msra.mxu0 %v5226
        %5237 = vmatprep.subr.bf16.mxu0 0
        %5238 = vmatpush1.bf16.msra.mxu0 %v5225
        %5239 = vmatprep.subr.bf16.mxu0 0
        %5240 = vmatpush1.bf16.msra.mxu0 %v5224
        %5241 = vmatprep.subr.bf16.mxu0 0
        %5242 = vmatpush1.bf16.msra.mxu0 %v5223
        %5243 = vmatprep.subr.bf16.mxu0 0
        %5244 = vmatpush1.bf16.msra.mxu0 %v5222
        %5245 = vmatprep.subr.bf16.mxu0 0
        %5246 = vmatpush1.bf16.msra.mxu0 %v5221
        %5247 = vmatprep.subr.bf16.mxu0 0
        %5248 = vmatpush1.bf16.msra.mxu0 %v5220
        %5249 = vmatprep.subr.bf16.mxu0 0
        %5250 = vmatpush1.bf16.msra.mxu0 %v5219
        %5251 = vmatprep.subr.bf16.mxu0 0
        %5252 = vmatpush2.bf16.msra.mxu0 0
        %5253 = vmatprep.subr.bf16.mxu0 0
        %5254 = vmatpush2.bf16.msra.mxu0 0
        %5255 = vmatprep.subr.bf16.mxu0 0
        %5256 = vmatpush2.bf16.msra.mxu0 0
        %5257 = vmatprep.subr.bf16.mxu0 0
        %5258 = vmatpush2.bf16.msra.mxu0 0
        %5259 = vmatprep.subr.bf16.mxu0 0
        %5260 = vmatpush2.bf16.msra.mxu0 0
        %5261 = vmatprep.subr.bf16.mxu0 0
        %5262 = vmatpush2.bf16.msra.mxu0 0
        %5263 = vmatprep.subr.bf16.mxu0 0
        %5264 = vmatpush2.bf16.msra.mxu0 0
        %5265 = vmatprep.subr.bf16.mxu0 0
        %5266 = vmatpush2.bf16.msra.mxu0 0
        %5267 = vmatprep.mubr.bf16.mxu0 0
        %5268 = vmatmul.mubr.bf16.gmra.mxu0 %v5170
        %v5269 = vpop.f32.mrf.mxu0
        %v5270 = vadd.f32 0.0, %v5269
        %v5271 = vpop.f32.mrf.mxu0
        %v5272 = vpop.f32.mrf.mxu0
        %v5273 = vpop.f32.mrf.mxu0
        %5274 = vdwg.mxu0
        %v5276 = vrot.slane %v567, 3
        %v5278 = vmul.f32 %v5270, %v5276
        %v5280 = vrot.slane %v568, 3
        %v5282 = vadd.f32 %v5278, %v5280
        %v5283 = vmax.f32 %v5282, 0.0
        %v5284 = vpack.c.bf16 %v5283, %v5283
        %s5285 = scalar_lea.vmem [#allocation11], 192
        %v5286 = vld [vmem:[%s5285] sm:$0xf]
        %v5287 = vld [vmem:[%s5285 + $0x4] sm:$0xf]
        %v5288 = vld [vmem:[%s5285 + $0x8] sm:$0xf]
        %v5289 = vld [vmem:[%s5285 + $0xc] sm:$0xf]
        %v5290 = vld [vmem:[%s5285 + $0x10] sm:$0xf]
        %v5291 = vld [vmem:[%s5285 + $0x14] sm:$0xf]
        %v5292 = vld [vmem:[%s5285 + $0x18] sm:$0xf]
        %v5293 = vld [vmem:[%s5285 + $0x1c] sm:$0xf]
        %v5294 = vld [vmem:[%s5285 + $0x20] sm:$0xf]
        %v5295 = vld [vmem:[%s5285 + $0x24] sm:$0xf]
        %v5296 = vld [vmem:[%s5285 + $0x28] sm:$0xf]
        %v5297 = vld [vmem:[%s5285 + $0x2c] sm:$0xf]
        %v5298 = vld [vmem:[%s5285 + $0x30] sm:$0xf]
        %v5299 = vld [vmem:[%s5285 + $0x34] sm:$0xf]
        %v5300 = vld [vmem:[%s5285 + $0x38] sm:$0xf]
        %v5301 = vld [vmem:[%s5285 + $0x3c] sm:$0xf]
        %v5318 = vunpack.c.l.b16 %v5286
        %v5319 = vunpack.c.l.b16 %v5287
        %v5320 = vunpack.c.l.b16 %v5288
        %v5321 = vunpack.c.l.b16 %v5289
        %v5322 = vunpack.c.l.b16 %v5290
        %v5323 = vunpack.c.l.b16 %v5291
        %v5324 = vunpack.c.l.b16 %v5292
        %v5325 = vunpack.c.l.b16 %v5293
        %v5326 = vunpack.c.l.b16 %v5294
        %v5327 = vunpack.c.l.b16 %v5295
        %v5328 = vunpack.c.l.b16 %v5296
        %v5329 = vunpack.c.l.b16 %v5297
        %v5330 = vunpack.c.l.b16 %v5298
        %v5331 = vunpack.c.l.b16 %v5299
        %v5332 = vunpack.c.l.b16 %v5300
        %v5333 = vunpack.c.l.b16 %v5301
        %v5334 = vpack.c.b16 %v5319, %v5318
        %v5335 = vpack.c.b16 %v5321, %v5320
        %v5336 = vpack.c.b16 %v5323, %v5322
        %v5337 = vpack.c.b16 %v5325, %v5324
        %v5338 = vpack.c.b16 %v5327, %v5326
        %v5339 = vpack.c.b16 %v5329, %v5328
        %v5340 = vpack.c.b16 %v5331, %v5330
        %v5341 = vpack.c.b16 %v5333, %v5332
        %5350 = vmatprep.subr.bf16.mxu0 0
        %5351 = vmatpush1.bf16.msra.mxu0 %v5341
        %5352 = vmatprep.subr.bf16.mxu0 0
        %5353 = vmatpush1.bf16.msra.mxu0 %v5340
        %5354 = vmatprep.subr.bf16.mxu0 0
        %5355 = vmatpush1.bf16.msra.mxu0 %v5339
        %5356 = vmatprep.subr.bf16.mxu0 0
        %5357 = vmatpush1.bf16.msra.mxu0 %v5338
        %5358 = vmatprep.subr.bf16.mxu0 0
        %5359 = vmatpush1.bf16.msra.mxu0 %v5337
        %5360 = vmatprep.subr.bf16.mxu0 0
        %5361 = vmatpush1.bf16.msra.mxu0 %v5336
        %5362 = vmatprep.subr.bf16.mxu0 0
        %5363 = vmatpush1.bf16.msra.mxu0 %v5335
        %5364 = vmatprep.subr.bf16.mxu0 0
        %5365 = vmatpush1.bf16.msra.mxu0 %v5334
        %5366 = vmatprep.subr.bf16.mxu0 0
        %5367 = vmatpush2.bf16.msra.mxu0 0
        %5368 = vmatprep.subr.bf16.mxu0 0
        %5369 = vmatpush2.bf16.msra.mxu0 0
        %5370 = vmatprep.subr.bf16.mxu0 0
        %5371 = vmatpush2.bf16.msra.mxu0 0
        %5372 = vmatprep.subr.bf16.mxu0 0
        %5373 = vmatpush2.bf16.msra.mxu0 0
        %5374 = vmatprep.subr.bf16.mxu0 0
        %5375 = vmatpush2.bf16.msra.mxu0 0
        %5376 = vmatprep.subr.bf16.mxu0 0
        %5377 = vmatpush2.bf16.msra.mxu0 0
        %5378 = vmatprep.subr.bf16.mxu0 0
        %5379 = vmatpush2.bf16.msra.mxu0 0
        %5380 = vmatprep.subr.bf16.mxu0 0
        %5381 = vmatpush2.bf16.msra.mxu0 0
        %5382 = vmatprep.mubr.bf16.mxu0 0
        %5383 = vmatmul.mubr.bf16.gmra.mxu0 %v5284
        %v5384 = vpop.f32.mrf.mxu0
        %v5385 = vadd.f32 0.0, %v5384
        %v5386 = vpop.f32.mrf.mxu0
        %v5387 = vpop.f32.mrf.mxu0
        %v5388 = vpop.f32.mrf.mxu0
        %5389 = vdwg.mxu0
        %v5390 = vlaneseq
        %v5391 = vshrl.u32 %v5390, 7
        %v5392 = vsub.s32 0, %v5391
        %v5393 = vrot.slane %v5385, %v5392
        %v5394 = vadd.f32 %v5154, %v5393
        %v5395 = vadd.f32 %v5155, %v5393
        %v5396 = vadd.f32 %v5156, %v5393
        %v5397 = vadd.f32 %v5157, %v5393
        %v5398 = vadd.f32 %v5158, %v5393
        %v5399 = vadd.f32 %v5159, %v5393
        %v5400 = vadd.f32 %v5160, %v5393
        %v5401 = vadd.f32 %v5161, %v5393
        %v5402 = vadd.f32 %v5162, %v5393
        %v5403 = vadd.f32 %v5163, %v5393
        %v5404 = vadd.f32 %v5164, %v5393
        %v5405 = vadd.f32 %v5165, %v5393
        %v5406 = vadd.f32 %v5166, %v5393
        %v5407 = vadd.f32 %v5167, %v5393
        %v5408 = vadd.f32 %v5168, %v5393
        %v5409 = vadd.f32 %v5169, %v5393
        %v5410 = vld [vmem:[%s9] sm:$0x1]
        %v5412 = vlaneseq
        %v5413 = vshrl.u32 %v5412, 7
        %v5414 = vsub.s32 0, %v5413
        %v5415 = vrot.slane %v5410, %v5414
        %v5417 = vmul.f32 %v5394, %v5415
        %v5418 = vmul.f32 %v5395, %v5415
        %v5419 = vmul.f32 %v5396, %v5415
        %v5420 = vmul.f32 %v5397, %v5415
        %v5421 = vmul.f32 %v5398, %v5415
        %v5422 = vmul.f32 %v5399, %v5415
        %v5423 = vmul.f32 %v5400, %v5415
        %v5424 = vmul.f32 %v5401, %v5415
        %v5425 = vmul.f32 %v5402, %v5415
        %v5426 = vmul.f32 %v5403, %v5415
        %v5427 = vmul.f32 %v5404, %v5415
        %v5428 = vmul.f32 %v5405, %v5415
        %v5429 = vmul.f32 %v5406, %v5415
        %v5430 = vmul.f32 %v5407, %v5415
        %v5431 = vmul.f32 %v5408, %v5415
        %v5432 = vmul.f32 %v5409, %v5415
        %v5433 = vld [vmem:[%s10] sm:$0x1]
        %v5435 = vlaneseq
        %v5436 = vshrl.u32 %v5435, 7
        %v5437 = vsub.s32 0, %v5436
        %v5438 = vrot.slane %v5433, %v5437
        %v5440 = vadd.f32 %v5417, %v5438
        %v5441 = vadd.f32 %v5418, %v5438
        %v5442 = vadd.f32 %v5419, %v5438
        %v5443 = vadd.f32 %v5420, %v5438
        %v5444 = vadd.f32 %v5421, %v5438
        %v5445 = vadd.f32 %v5422, %v5438
        %v5446 = vadd.f32 %v5423, %v5438
        %v5447 = vadd.f32 %v5424, %v5438
        %v5448 = vadd.f32 %v5425, %v5438
        %v5449 = vadd.f32 %v5426, %v5438
        %v5450 = vadd.f32 %v5427, %v5438
        %v5451 = vadd.f32 %v5428, %v5438
        %v5452 = vadd.f32 %v5429, %v5438
        %v5453 = vadd.f32 %v5430, %v5438
        %v5454 = vadd.f32 %v5431, %v5438
        %v5455 = vadd.f32 %v5432, %v5438
        %v5456 = vmax.f32 %v5440, 0.0
        %v5457 = vmax.f32 %v5441, 0.0
        %v5458 = vmax.f32 %v5442, 0.0
        %v5459 = vmax.f32 %v5443, 0.0
        %v5460 = vmax.f32 %v5444, 0.0
        %v5461 = vmax.f32 %v5445, 0.0
        %v5462 = vmax.f32 %v5446, 0.0
        %v5463 = vmax.f32 %v5447, 0.0
        %v5464 = vmax.f32 %v5448, 0.0
        %v5465 = vmax.f32 %v5449, 0.0
        %v5466 = vmax.f32 %v5450, 0.0
        %v5467 = vmax.f32 %v5451, 0.0
        %v5468 = vmax.f32 %v5452, 0.0
        %v5469 = vmax.f32 %v5453, 0.0
        %v5470 = vmax.f32 %v5454, 0.0
        %v5471 = vmax.f32 %v5455, 0.0
        %5472 = vst [vmem:[%s510] sm:$0xff] %v5456
        %5473 = vst [vmem:[%s510 + $0x8] sm:$0xff] %v5457
        %5474 = vst [vmem:[%s510 + $0x10] sm:$0xff] %v5458
        %5475 = vst [vmem:[%s510 + $0x18] sm:$0xff] %v5459
        %5476 = vst [vmem:[%s510 + $0x20] sm:$0xff] %v5460
        %5477 = vst [vmem:[%s510 + $0x28] sm:$0xff] %v5461
        %5478 = vst [vmem:[%s510 + $0x30] sm:$0xff] %v5462
        %5479 = vst [vmem:[%s510 + $0x38] sm:$0xff] %v5463
        %5480 = vst [vmem:[%s510 + $0x40] sm:$0xff] %v5464
        %5481 = vst [vmem:[%s510 + $0x48] sm:$0xff] %v5465
        %5482 = vst [vmem:[%s510 + $0x50] sm:$0xff] %v5466
        %5483 = vst [vmem:[%s510 + $0x58] sm:$0xff] %v5467
        %5484 = vst [vmem:[%s510 + $0x60] sm:$0xff] %v5468
        %5485 = vst [vmem:[%s510 + $0x68] sm:$0xff] %v5469
        %5486 = vst [vmem:[%s510 + $0x70] sm:$0xff] %v5470
        %5487 = vst [vmem:[%s510 + $0x78] sm:$0xff] %v5471
        %s5488 = sand.u32 %s300, 1
        %s5489 = scalar_lea.sflag [#allocation4], %s5488
        %s5490 = sand.u32 %s300, 1
        %s5491 = smul.addr %s5490, 128
        %s5492 = scalar_lea.vmem [#allocation13], %s5491
        // Predicated region
        $region89: #{tpu_custom_call.1} parent=63 // pred_check
          %p5493 = pneg %p310
        $region90: #{tpu_custom_call.1} parent=63 // pred_check_branch
          %5495 = sbr.rel (%p5493) target = $region92
        $region91: #{tpu_custom_call.1} parent=63 // pred_region
          %s5496 = smul.u32 %s35, 2
          %s5497 = sadd.s32 %s5496, %s36
          %s5499 = ssub.s32 2048, 2048
          %5500 = vsyncadd %s5489, %s5499
          %s5501 = smul.addr %s5497, 16
          %s5502 = smul.addr %s5501, 128
          %s5503 = scalar_lea.hbm %s11, %s5502
          %s5504 = sshll.u32 %s5492, 4
          %s5505 = int_to_ptr.vmem [resolvable:$true] %s5504
          %5510 = dma.vmem_to_hbm [thread:$0]  %s5505, 2048, %s5503, %s5489, 128, 128, 8
        $region92: #{tpu_custom_call.1} parent=63 // pred_fallthru
          _
      $region64: #{tpu_custom_call.1} parent=5 // pred_fallthru
        _
      %p5511 = scmp.le.s32.totalorder 2, %s26
      // Predicated region
      $region93: #{tpu_custom_call.1} parent=5 // pred_check
        %p5512 = pneg %p5511
      $region94: #{tpu_custom_call.1} parent=5 // pred_check_branch
        %5514 = sbr.rel (%p5512) target = $region96
      $region95: #{tpu_custom_call.1} parent=5 // pred_region
        %s5515 = ssub.s32 %s26, 2
        // Predicated region
        $region97: #{tpu_custom_call.1} parent=95 // pred_check
          %p5516 = pneg %p316
        $region98: #{tpu_custom_call.1} parent=95 // pred_check_branch
          %5518 = sbr.rel (%p5516) target = $region100
        $region99: #{tpu_custom_call.1} parent=95 // pred_region
          %s5519 = sand.u32 %s301, 1
          %s5520 = scalar_lea.sflag [#allocation4], %s5519
          %s5521 = sand.u32 %s301, 1
          %s5522 = smul.addr %s5521, 128
          %s5523 = scalar_lea.vmem [#allocation13], %s5522
          %5524 = dma.done %s5520, 2048
        $region100: #{tpu_custom_call.1} parent=95 // pred_fallthru
          _
      $region96: #{tpu_custom_call.1} parent=5 // pred_fallthru
        _
    $region6: #{tpu_custom_call.1} parent=1 // loop_footer
      %s30 = sadd.s32 1, %s26
    $region7: #{tpu_custom_call.1} parent=1 // loop_footer_branch
      %25 = sbr.rel target = $region3
    $region8: #{tpu_custom_call.1} parent=1 // loop_exit
      _
    %5525 = vsyncpa [#allocation3], 1
    %s5526 = scalar_lea.sflag [#allocation3], 1
    %5527 = vsyncpa %s5526, 1
    %5528 = vsyncpa [#allocation6], 1
    %5529 = vsyncpa [#allocation9], 1
    %5530 = vsyncpa [#allocation12], 1
    %5531 = vsyncpa [#allocation4], 1
    %s5532 = scalar_lea.sflag [#allocation4], 1
    %5533 = vsyncpa %s5532, 1

</llo_original>
